<compile_context>
chip_gen: v7x
topology: tpu7x:2x2x1
jax: 0.10.0
libtpu: 0.0.40
codegen_flags: <defaults>
</compile_context>

<pallas_src>
import functools

import jax
import jax.numpy as jnp
from jax.experimental import pallas as pl
from jax.experimental.pallas import tpu as pltpu


CFG = dict(vocab=100, max_pos=64, type_vocab=2,
           hidden=32, heads=4, layers=2, inter=64, classes=4, c_pad=128)


# ----------------------------- fused Pallas kernel ---------------------------

def _bert_fused_kernel(x_ref, mask_ref,
                       qkv_w_ref, qkv_b_ref, wo_w_ref, w1_ref, w2_ref,
                       lvec_ref, gvec_ref, pre_w_ref, cls_w_ref,
                       out_ref, *, n_layers, n_heads, eps):
    BL, S, H = x_ref.shape
    Dh = H // n_heads
    M = BL * S                       # batch folded into the matmul M dimension
    G = BL * n_heads                 # batched-head dimension for attention
    bf16 = jnp.bfloat16
    f32 = jnp.float32
    inv_h = 1.0 / H

    def mm(a_bf, w_bf):
        # bf16 MXU matmul, f32 accumulate.
        return jnp.dot(a_bf, w_bf, preferred_element_type=f32)

    def layer_norm(y, g, b):
        # Single-pass statistics: var = E[x^2] - mu^2 (one elementwise pass,
        # two independent lane reductions instead of two sequential means).
        mu = jnp.sum(y, axis=-1, keepdims=True) * inv_h
        m2 = jnp.sum(y * y, axis=-1, keepdims=True) * inv_h
        var = m2 - mu * mu
        return (y - mu) * jax.lax.rsqrt(var + eps) * g + b

    def gelu(y):
        # TODO(synk): tanh approximation; HF BERT uses erf-GELU (tiny drift).
        return 0.5 * y * (1.0 + jnp.tanh(
            0.7978845608028654 * (y + 0.044715 * y * y * y)))

    # ---- global packed vectors: emb-LN gamma/beta, pooler bias, cls bias ----
    gv = gvec_ref[...]                                    # [4, CP] f32
    emb_g, emb_b = gv[0:1, :H], gv[1:2, :H]
    pre_b, cls_b = gv[2:3, :H], gv[3:4, :]

    # Embedding LayerNorm on the folded [M, H] slab (tokens are independent).
    x = layer_norm(x_ref[...].astype(f32).reshape(M, H), emb_g, emb_b)

    # Additive attention mask broadcast over heads -> [G, 1, S].
    am = jnp.broadcast_to(mask_ref[...].reshape(BL, 1, 1, S),
                          (BL, n_heads, 1, S)).reshape(G, 1, S)

    def head_batch(w):
        # [heads, ...] weight -> [G, ...] by replicating over the BL sequences
        # folded into this grid step (no-op when BL == 1).
        return jnp.broadcast_to(w[None], (BL,) + w.shape).reshape((G,) + w.shape[1:])

    for l in range(n_layers):
        # ---- per-layer packed bias / LayerNorm vectors ----
        lv = lvec_ref[l]                                  # [8, I] f32
        wo_b = lv[0:1, :H]
        b1 = lv[1:2, :]
        b2 = lv[2:3, :H]
        ln1_g, ln1_b = lv[3:4, :H], lv[4:5, :H]
        ln2_g, ln2_b = lv[5:6, :H], lv[6:7, :H]

        # ---- self-attention: head-batched projections (no lane slicing) ----
        x_bf = x.astype(bf16)                             # cast hoisted: once
        xg = jnp.broadcast_to(x_bf.reshape(BL, 1, S, H),
                              (BL, n_heads, S, H)).reshape(G, S, H)
        wqkv = qkv_w_ref[l]                               # [3, nH, H, Dh] bf16
        bqkv = qkv_b_ref[l]                               # [3, nH, 1, Dh] f32
        # 1/sqrt(Dh) is pre-folded into the Q weights/bias host-side.
        q = jnp.einsum('gsd,gdf->gsf', xg, head_batch(wqkv[0]),
                       preferred_element_type=f32) + head_batch(bqkv[0])
        k = jnp.einsum('gsd,gdf->gsf', xg, head_batch(wqkv[1]),
                       preferred_element_type=f32) + head_batch(bqkv[1])
        v = jnp.einsum('gsd,gdf->gsf', xg, head_batch(wqkv[2]),
                       preferred_element_type=f32) + head_batch(bqkv[2])

        s = jnp.einsum('gqd,gkd->gqk', q.astype(bf16), k.astype(bf16),
                       preferred_element_type=f32)        # [G, S, S]
        s = s + am
        s = s - jnp.max(s, axis=-1, keepdims=True)
        p = jnp.exp(s)
        p = p * pl.reciprocal(jnp.sum(p, axis=-1, keepdims=True), approx=True)

        ctx = jnp.einsum('gqk,gkd->gqd', p.astype(bf16), v.astype(bf16),
                         preferred_element_type=f32)      # [G, S, Dh]
        # Per-head output projection accumulated over heads (no concat).
        og = jnp.einsum('gsd,gdf->gsf', ctx.astype(bf16),
                        head_batch(wo_w_ref[l]),
                        preferred_element_type=f32)       # [G, S, H]
        attn = og.reshape(BL, n_heads, S, H).sum(axis=1).reshape(M, H) + wo_b

        x = layer_norm(x + attn, ln1_g, ln1_b)            # fused residual + LN1

        # ---- FFN ----
        x_bf = x.astype(bf16)
        hmid = gelu(mm(x_bf, w1_ref[l]) + b1)             # [M, I]
        ffn = mm(hmid.astype(bf16), w2_ref[l]) + b2       # [M, H]
        x = layer_norm(x + ffn, ln2_g, ln2_b)             # fused residual + LN2

    # ---- pooler epilogue: CLS rows (one per folded sequence) ----
    cls = x.reshape(BL, S, H)[:, 0, :]                    # [BL, H]
    pooled = jnp.maximum(mm(cls.astype(bf16), pre_w_ref[...]) + pre_b, 0.0)
    # Dropout(0.1) is identity at inference.
    logits = mm(pooled.astype(bf16), cls_w_ref[...]) + cls_b   # [BL, CP] lane-dense
    out_ref[...] = logits.reshape(1, BL, -1).astype(out_ref.dtype)


# ------------------------------- parameters ----------------------------------

def init_params(key):
    H, I, L, nH = CFG["hidden"], CFG["inter"], CFG["layers"], CFG["heads"]
    Dh = H // nH
    C, CP = CFG["classes"], CFG["c_pad"]
    scale = 1.0 / (Dh ** 0.5)

    def nrm(k, shape):
        return (0.02 * jax.random.normal(k, shape)).astype(jnp.float32)

    keys = iter(jax.random.split(key, 64))
    qkv_w, wo_w, w1, w2 = [], [], [], []
    for _ in range(L):
        wq = nrm(next(keys), (H, H)) * scale              # fold 1/sqrt(Dh) into Q
        wk = nrm(next(keys), (H, H))
        wv = nrm(next(keys), (H, H))
        # [H, H] -> [heads, H, Dh]  (head-major weights -> no in-kernel reshape)
        per_head = [w.reshape(H, nH, Dh).transpose(1, 0, 2) for w in (wq, wk, wv)]
        qkv_w.append(jnp.stack(per_head))                 # [3, nH, H, Dh]
        wo_w.append(nrm(next(keys), (H, H)).reshape(nH, Dh, H))
        w1.append(nrm(next(keys), (H, I)))
        w2.append(nrm(next(keys), (I, H)))

    # Per-layer bias / LayerNorm vectors packed into one [L, 8, I] f32 slab:
    #   row 0: wo_b   row 1: b1   row 2: b2
    #   row 3: ln1_g  row 4: ln1_b  row 5: ln2_g  row 6: ln2_b  row 7: unused
    lvec = jnp.zeros((L, 8, I), jnp.float32)
    lvec = lvec.at[:, 3, :H].set(1.0)
    lvec = lvec.at[:, 5, :H].set(1.0)

    # Global vectors packed into [4, CP]:
    #   row 0: emb_ln gamma  row 1: emb_ln beta  row 2: pre_b  row 3: cls_b
    gvec = jnp.zeros((4, CP), jnp.float32)
    gvec = gvec.at[0, :H].set(1.0)

    cls_w = jnp.zeros((H, CP), jnp.float32).at[:, :C].set(nrm(next(keys), (H, C)))

    return dict(
        word_emb=nrm(next(keys), (CFG["vocab"], H)),
        pos_emb=nrm(next(keys), (CFG["max_pos"], H)),
        type_emb=nrm(next(keys), (CFG["type_vocab"], H)),
        # matmul weights stored bf16 (native MXU input); biases/LN stay f32.
        qkv_w=jnp.stack(qkv_w).astype(jnp.bfloat16),      # [L, 3, nH, H, Dh]
        qkv_b=jnp.zeros((L, 3, nH, 1, Dh), jnp.float32),  # (Q bias pre-scaled=0)
        wo_w=jnp.stack(wo_w).astype(jnp.bfloat16),        # [L, nH, Dh, H]
        w1=jnp.stack(w1).astype(jnp.bfloat16),            # [L, H, I]
        w2=jnp.stack(w2).astype(jnp.bfloat16),            # [L, I, H]
        lvec=lvec, gvec=gvec,
        pre_w=nrm(next(keys), (H, H)).astype(jnp.bfloat16),
        cls_w=cls_w.astype(jnp.bfloat16),                 # classifier, lane-padded
    )


# --------------------------------- forward -----------------------------------

_WEIGHT_NAMES = ["qkv_w", "qkv_b", "wo_w", "w1", "w2",
                 "lvec", "gvec", "pre_w", "cls_w"]


def bert_classifier_forward(params, input_ids, attention_mask, token_type_ids):
    H, nH, L, C, CP = (CFG["hidden"], CFG["heads"], CFG["layers"],
                       CFG["classes"], CFG["c_pad"])
    B, S = input_ids.shape
    NB = 2 if (B % 2 == 0 and B >= 2) else 1   # >=2-way split -> both TCs on v7x
    BL = B // NB                               # sequences folded into M per step

    # TODO(synk): embedding gathers are tiny integer table lookups kept as
    # plain-JAX glue (fused into the same XLA program under jit).
    x_emb = (params["word_emb"][input_ids]
             + params["pos_emb"][:S][None, :, :]
             + params["type_emb"][token_type_ids]).astype(jnp.bfloat16)  # [B,S,H]
    add_mask = ((1.0 - attention_mask.astype(jnp.float32)) * -1e9
                ).reshape(B, 1, S)

    weights = [params[n] for n in _WEIGHT_NAMES]

    def full_block(a):
        # Whole-array block, constant index_map -> stays VMEM-resident across
        # grid steps.  (At real model scale these must become per-layer
        # streamed blocks instead — see header note.)
        return pl.BlockSpec(a.shape, lambda b, _nd=a.ndim: (0,) * _nd)

    kernel = functools.partial(_bert_fused_kernel,
                               n_layers=L, n_heads=nH, eps=1e-12)

    out = pl.pallas_call(
        kernel,
        out_shape=jax.ShapeDtypeStruct((NB, BL, CP), jnp.float32),
        grid=(NB,),
        in_specs=[pl.BlockSpec((BL, S, H), lambda b: (b, 0, 0)),   # activations
                  pl.BlockSpec((BL, 1, S), lambda b: (b, 0, 0))]   # additive mask
                 + [full_block(w) for w in weights],
        out_specs=pl.BlockSpec((1, BL, CP), lambda b: (b, 0, 0)),
        compiler_params=pltpu.CompilerParams(
            dimension_semantics=("parallel",)),
    )(x_emb, add_mask, *weights)

    return out.reshape(B, CP)[:, :C]                               # [B, 4] logits


# ---------------------------------- driver -----------------------------------

if __name__ == "__main__":
    key = jax.random.PRNGKey(0)
    k_param, k_ids, k_type = jax.random.split(key, 3)

    B, S = 2, 8
    params = init_params(k_param)
    input_ids = jax.random.randint(k_ids, (B, S), 0, CFG["vocab"], dtype=jnp.int32)
    token_type_ids = jax.random.randint(k_type, (B, S), 0, CFG["type_vocab"],
                                        dtype=jnp.int32)
    # First 6 tokens valid, last 2 padded (exercises the attention mask).
    attention_mask = jnp.concatenate(
        [jnp.ones((B, 6), jnp.int32), jnp.zeros((B, 2), jnp.int32)], axis=1)

    fwd = jax.jit(bert_classifier_forward)
    logits = fwd(params, input_ids, attention_mask, token_type_ids)
    logits = jax.block_until_ready(logits)

    assert logits.shape == (B, CFG["classes"])
    assert bool(jnp.all(jnp.isfinite(logits)))
    print("KERNEL_OK")
</pallas_src>

<mosaic_0001>
module attributes {stable_mosaic.version = 11 : i64} {
  func.func @_bert_fused_kernel(%arg0: i32, %arg1: memref<1x8x32xbf16, #tpu.memory_space<vmem>>, %arg2: memref<1x1x8xf32, #tpu.memory_space<vmem>>, %arg3: memref<2x3x4x32x8xbf16, #tpu.memory_space<vmem>>, %arg4: memref<2x3x4x1x8xf32, #tpu.memory_space<vmem>>, %arg5: memref<2x4x8x32xbf16, #tpu.memory_space<vmem>>, %arg6: memref<2x32x64xbf16, #tpu.memory_space<vmem>>, %arg7: memref<2x64x32xbf16, #tpu.memory_space<vmem>>, %arg8: memref<2x8x64xf32, #tpu.memory_space<vmem>>, %arg9: memref<4x128xf32, #tpu.memory_space<vmem>>, %arg10: memref<32x32xbf16, #tpu.memory_space<vmem>>, %arg11: memref<32x128xbf16, #tpu.memory_space<vmem>>, %arg12: memref<1x1x128xf32, #tpu.memory_space<vmem>>) attributes {dimension_semantics = [#tpu.dimension_semantics<parallel>], iteration_bounds = array<i64: 2>, scalar_prefetch = 0 : i64, scratch_operands = 0 : i64, tpu.core_type = #tpu.core_type<tc>, window_params = [{transform_indices = @transform_0, window_bounds = array<i64: 1, 8, 32>}, {transform_indices = @transform_1, window_bounds = array<i64: 1, 1, 8>}, {pipeline_mode = #tpu.pipeline_mode<synchronous>, transform_indices = @transform_2, window_bounds = array<i64: 2, 3, 4, 32, 8>}, {pipeline_mode = #tpu.pipeline_mode<synchronous>, transform_indices = @transform_3, window_bounds = array<i64: 2, 3, 4, 1, 8>}, {pipeline_mode = #tpu.pipeline_mode<synchronous>, transform_indices = @transform_4, window_bounds = array<i64: 2, 4, 8, 32>}, {pipeline_mode = #tpu.pipeline_mode<synchronous>, transform_indices = @transform_5, window_bounds = array<i64: 2, 32, 64>}, {pipeline_mode = #tpu.pipeline_mode<synchronous>, transform_indices = @transform_6, window_bounds = array<i64: 2, 64, 32>}, {pipeline_mode = #tpu.pipeline_mode<synchronous>, transform_indices = @transform_7, window_bounds = array<i64: 2, 8, 64>}, {pipeline_mode = #tpu.pipeline_mode<synchronous>, transform_indices = @transform_8, window_bounds = array<i64: 4, 128>}, {pipeline_mode = #tpu.pipeline_mode<synchronous>, transform_indices = @transform_9, window_bounds = array<i64: 32, 32>}, {pipeline_mode = #tpu.pipeline_mode<synchronous>, transform_indices = @transform_10, window_bounds = array<i64: 32, 128>}, {transform_indices = @transform_11, window_bounds = array<i64: 1, 1, 128>}]} {
    %c0 = arith.constant 0 : index
    %c0_0 = arith.constant 0 : index
    %0 = vector.load %arg9[%c0, %c0_0] : memref<4x128xf32, #tpu.memory_space<vmem>>, vector<4x128xf32>
    %1 = vector.extract_strided_slice %0 {offsets = [0, 0], sizes = [1, 32], strides = [1, 1]} : vector<4x128xf32> to vector<1x32xf32>
    %2 = vector.extract_strided_slice %0 {offsets = [1, 0], sizes = [1, 32], strides = [1, 1]} : vector<4x128xf32> to vector<1x32xf32>
    %3 = vector.extract_strided_slice %0 {offsets = [2, 0], sizes = [1, 32], strides = [1, 1]} : vector<4x128xf32> to vector<1x32xf32>
    %4 = vector.extract_strided_slice %0 {offsets = [3, 0], sizes = [1, 128], strides = [1, 1]} : vector<4x128xf32> to vector<1x128xf32>
    %c0_1 = arith.constant 0 : index
    %c0_2 = arith.constant 0 : index
    %c0_3 = arith.constant 0 : index
    %5 = vector.load %arg1[%c0_1, %c0_2, %c0_3] : memref<1x8x32xbf16, #tpu.memory_space<vmem>>, vector<1x8x32xbf16>
    %6 = arith.extf %5 : vector<1x8x32xbf16> to vector<1x8x32xf32>
    %7 = vector.shape_cast %6 : vector<1x8x32xf32> to vector<8x32xf32>
    %cst = arith.constant dense<0.000000e+00> : vector<8xf32>
    %8 = vector.multi_reduction <add>, %7, %cst [1] : vector<8x32xf32> to vector<8xf32>
    %9 = vector.shape_cast %8 : vector<8xf32> to vector<8x1xf32>
    %cst_4 = arith.constant 3.125000e-02 : f32
    %10 = vector.broadcast %cst_4 : f32 to vector<8x1xf32>
    %11 = arith.mulf %9, %10 : vector<8x1xf32>
    %12 = arith.mulf %7, %7 : vector<8x32xf32>
    %cst_5 = arith.constant dense<0.000000e+00> : vector<8xf32>
    %13 = vector.multi_reduction <add>, %12, %cst_5 [1] : vector<8x32xf32> to vector<8xf32>
    %14 = vector.shape_cast %13 : vector<8xf32> to vector<8x1xf32>
    %cst_6 = arith.constant 3.125000e-02 : f32
    %15 = vector.broadcast %cst_6 : f32 to vector<8x1xf32>
    %16 = arith.mulf %14, %15 : vector<8x1xf32>
    %17 = arith.mulf %11, %11 : vector<8x1xf32>
    %18 = arith.subf %16, %17 : vector<8x1xf32>
    %19 = vector.broadcast %11 : vector<8x1xf32> to vector<8x32xf32>
    %20 = arith.subf %7, %19 : vector<8x32xf32>
    %cst_7 = arith.constant 9.99999996E-13 : f32
    %21 = vector.broadcast %cst_7 : f32 to vector<8x1xf32>
    %22 = arith.addf %18, %21 : vector<8x1xf32>
    %23 = math.rsqrt %22 : vector<8x1xf32>
    %24 = vector.broadcast %23 : vector<8x1xf32> to vector<8x32xf32>
    %25 = arith.mulf %20, %24 : vector<8x32xf32>
    %26 = vector.broadcast %1 : vector<1x32xf32> to vector<8x32xf32>
    %27 = arith.mulf %25, %26 : vector<8x32xf32>
    %28 = vector.broadcast %2 : vector<1x32xf32> to vector<8x32xf32>
    %29 = arith.addf %27, %28 : vector<8x32xf32>
    %c0_8 = arith.constant 0 : index
    %c0_9 = arith.constant 0 : index
    %c0_10 = arith.constant 0 : index
    %30 = vector.load %arg2[%c0_8, %c0_9, %c0_10] : memref<1x1x8xf32, #tpu.memory_space<vmem>>, vector<1x1x8xf32>
    %31 = vector.shape_cast %30 : vector<1x1x8xf32> to vector<1x1x1x8xf32>
    %32 = vector.shape_cast %31 : vector<1x1x1x8xf32> to vector<1x1x1x8xf32>
    %33 = vector.broadcast %32 : vector<1x1x1x8xf32> to vector<1x4x1x8xf32>
    %34 = vector.shape_cast %33 : vector<1x4x1x8xf32> to vector<4x1x8xf32>
    %c0_11 = arith.constant 0 : index
    %c0_12 = arith.constant 0 : index
    %c0_13 = arith.constant 0 : index
    %35 = vector.load %arg8[%c0_11, %c0_12, %c0_13] : memref<2x8x64xf32, #tpu.memory_space<vmem>>, vector<1x8x64xf32>
    %36 = vector.shape_cast %35 : vector<1x8x64xf32> to vector<8x64xf32>
    %37 = vector.extract_strided_slice %36 {offsets = [0, 0], sizes = [1, 32], strides = [1, 1]} : vector<8x64xf32> to vector<1x32xf32>
    %38 = vector.extract_strided_slice %36 {offsets = [1, 0], sizes = [1, 64], strides = [1, 1]} : vector<8x64xf32> to vector<1x64xf32>
    %39 = vector.extract_strided_slice %36 {offsets = [2, 0], sizes = [1, 32], strides = [1, 1]} : vector<8x64xf32> to vector<1x32xf32>
    %40 = vector.extract_strided_slice %36 {offsets = [3, 0], sizes = [1, 32], strides = [1, 1]} : vector<8x64xf32> to vector<1x32xf32>
    %41 = vector.extract_strided_slice %36 {offsets = [4, 0], sizes = [1, 32], strides = [1, 1]} : vector<8x64xf32> to vector<1x32xf32>
    %42 = vector.extract_strided_slice %36 {offsets = [5, 0], sizes = [1, 32], strides = [1, 1]} : vector<8x64xf32> to vector<1x32xf32>
    %43 = vector.extract_strided_slice %36 {offsets = [6, 0], sizes = [1, 32], strides = [1, 1]} : vector<8x64xf32> to vector<1x32xf32>
    %44 = arith.truncf %29 : vector<8x32xf32> to vector<8x32xbf16>
    %45 = vector.shape_cast %44 : vector<8x32xbf16> to vector<1x1x8x32xbf16>
    %46 = vector.shape_cast %45 : vector<1x1x8x32xbf16> to vector<1x1x8x32xbf16>
    %47 = vector.broadcast %46 : vector<1x1x8x32xbf16> to vector<1x4x8x32xbf16>
    %48 = vector.shape_cast %47 : vector<1x4x8x32xbf16> to vector<4x8x32xbf16>
    %c0_14 = arith.constant 0 : index
    %c0_15 = arith.constant 0 : index
    %c0_16 = arith.constant 0 : index
    %c0_17 = arith.constant 0 : index
    %c0_18 = arith.constant 0 : index
    %49 = vector.load %arg3[%c0_14, %c0_15, %c0_16, %c0_17, %c0_18] : memref<2x3x4x32x8xbf16, #tpu.memory_space<vmem>>, vector<1x3x4x32x8xbf16>
    %50 = vector.shape_cast %49 : vector<1x3x4x32x8xbf16> to vector<3x4x32x8xbf16>
    %c0_19 = arith.constant 0 : index
    %c0_20 = arith.constant 0 : index
    %c0_21 = arith.constant 0 : index
    %c0_22 = arith.constant 0 : index
    %c0_23 = arith.constant 0 : index
    %51 = vector.load %arg4[%c0_19, %c0_20, %c0_21, %c0_22, %c0_23] : memref<2x3x4x1x8xf32, #tpu.memory_space<vmem>>, vector<1x3x4x1x8xf32>
    %52 = vector.shape_cast %51 : vector<1x3x4x1x8xf32> to vector<3x4x1x8xf32>
    %53 = vector.extract_strided_slice %50 {offsets = [0, 0, 0, 0], sizes = [1, 4, 32, 8], strides = [1, 1, 1, 1]} : vector<3x4x32x8xbf16> to vector<1x4x32x8xbf16>
    %54 = vector.shape_cast %53 : vector<1x4x32x8xbf16> to vector<4x32x8xbf16>
    %55 = vector.shape_cast %54 : vector<4x32x8xbf16> to vector<1x4x32x8xbf16>
    %56 = vector.shape_cast %55 : vector<1x4x32x8xbf16> to vector<4x32x8xbf16>
    "tpu.trace_start"() <{level = 10 : i32, message = "gsd,gdf->gsf"}> : () -> ()
    %cst_24 = arith.constant dense<0.000000e+00> : vector<4x8x8xf32>
    %57 = tpu.matmul %48, %56, %cst_24 {dimension_numbers = #tpu.dot_dimension_numbers<[2], [1], [1], [2], [0, 0, 0, 1, 1, 2], [0], [0]>} : vector<4x8x32xbf16>, vector<4x32x8xbf16>, vector<4x8x8xf32> -> vector<4x8x8xf32>
    "tpu.trace_stop"() : () -> ()
    %58 = vector.extract_strided_slice %52 {offsets = [0, 0, 0, 0], sizes = [1, 4, 1, 8], strides = [1, 1, 1, 1]} : vector<3x4x1x8xf32> to vector<1x4x1x8xf32>
    %59 = vector.shape_cast %58 : vector<1x4x1x8xf32> to vector<4x1x8xf32>
    %60 = vector.shape_cast %59 : vector<4x1x8xf32> to vector<1x4x1x8xf32>
    %61 = vector.shape_cast %60 : vector<1x4x1x8xf32> to vector<4x1x8xf32>
    %62 = vector.broadcast %61 : vector<4x1x8xf32> to vector<4x8x8xf32>
    %63 = arith.addf %57, %62 : vector<4x8x8xf32>
    %64 = vector.extract_strided_slice %50 {offsets = [1, 0, 0, 0], sizes = [1, 4, 32, 8], strides = [1, 1, 1, 1]} : vector<3x4x32x8xbf16> to vector<1x4x32x8xbf16>
    %65 = vector.shape_cast %64 : vector<1x4x32x8xbf16> to vector<4x32x8xbf16>
    %66 = vector.shape_cast %65 : vector<4x32x8xbf16> to vector<1x4x32x8xbf16>
    %67 = vector.shape_cast %66 : vector<1x4x32x8xbf16> to vector<4x32x8xbf16>
    "tpu.trace_start"() <{level = 10 : i32, message = "gsd,gdf->gsf"}> : () -> ()
    %cst_25 = arith.constant dense<0.000000e+00> : vector<4x8x8xf32>
    %68 = tpu.matmul %48, %67, %cst_25 {dimension_numbers = #tpu.dot_dimension_numbers<[2], [1], [1], [2], [0, 0, 0, 1, 1, 2], [0], [0]>} : vector<4x8x32xbf16>, vector<4x32x8xbf16>, vector<4x8x8xf32> -> vector<4x8x8xf32>
    "tpu.trace_stop"() : () -> ()
    %69 = vector.extract_strided_slice %52 {offsets = [1, 0, 0, 0], sizes = [1, 4, 1, 8], strides = [1, 1, 1, 1]} : vector<3x4x1x8xf32> to vector<1x4x1x8xf32>
    %70 = vector.shape_cast %69 : vector<1x4x1x8xf32> to vector<4x1x8xf32>
    %71 = vector.shape_cast %70 : vector<4x1x8xf32> to vector<1x4x1x8xf32>
    %72 = vector.shape_cast %71 : vector<1x4x1x8xf32> to vector<4x1x8xf32>
    %73 = vector.broadcast %72 : vector<4x1x8xf32> to vector<4x8x8xf32>
    %74 = arith.addf %68, %73 : vector<4x8x8xf32>
    %75 = vector.extract_strided_slice %50 {offsets = [2, 0, 0, 0], sizes = [1, 4, 32, 8], strides = [1, 1, 1, 1]} : vector<3x4x32x8xbf16> to vector<1x4x32x8xbf16>
    %76 = vector.shape_cast %75 : vector<1x4x32x8xbf16> to vector<4x32x8xbf16>
    %77 = vector.shape_cast %76 : vector<4x32x8xbf16> to vector<1x4x32x8xbf16>
    %78 = vector.shape_cast %77 : vector<1x4x32x8xbf16> to vector<4x32x8xbf16>
    "tpu.trace_start"() <{level = 10 : i32, message = "gsd,gdf->gsf"}> : () -> ()
    %cst_26 = arith.constant dense<0.000000e+00> : vector<4x8x8xf32>
    %79 = tpu.matmul %48, %78, %cst_26 {dimension_numbers = #tpu.dot_dimension_numbers<[2], [1], [1], [2], [0, 0, 0, 1, 1, 2], [0], [0]>} : vector<4x8x32xbf16>, vector<4x32x8xbf16>, vector<4x8x8xf32> -> vector<4x8x8xf32>
    "tpu.trace_stop"() : () -> ()
    %80 = vector.extract_strided_slice %52 {offsets = [2, 0, 0, 0], sizes = [1, 4, 1, 8], strides = [1, 1, 1, 1]} : vector<3x4x1x8xf32> to vector<1x4x1x8xf32>
    %81 = vector.shape_cast %80 : vector<1x4x1x8xf32> to vector<4x1x8xf32>
    %82 = vector.shape_cast %81 : vector<4x1x8xf32> to vector<1x4x1x8xf32>
    %83 = vector.shape_cast %82 : vector<1x4x1x8xf32> to vector<4x1x8xf32>
    %84 = vector.broadcast %83 : vector<4x1x8xf32> to vector<4x8x8xf32>
    %85 = arith.addf %79, %84 : vector<4x8x8xf32>
    %86 = arith.truncf %63 : vector<4x8x8xf32> to vector<4x8x8xbf16>
    %87 = arith.truncf %74 : vector<4x8x8xf32> to vector<4x8x8xbf16>
    "tpu.trace_start"() <{level = 10 : i32, message = "gqd,gkd->gqk"}> : () -> ()
    %cst_27 = arith.constant dense<0.000000e+00> : vector<4x8x8xf32>
    %88 = tpu.matmul %86, %87, %cst_27 {dimension_numbers = #tpu.dot_dimension_numbers<[2], [2], [1], [1], [0, 0, 0, 1, 1, 1], [0], [0]>} : vector<4x8x8xbf16>, vector<4x8x8xbf16>, vector<4x8x8xf32> -> vector<4x8x8xf32>
    "tpu.trace_stop"() : () -> ()
    %89 = vector.broadcast %34 : vector<4x1x8xf32> to vector<4x8x8xf32>
    %90 = arith.addf %88, %89 : vector<4x8x8xf32>
    %cst_28 = arith.constant dense<0xFF800000> : vector<4x8xf32>
    %91 = vector.multi_reduction <maximumf>, %90, %cst_28 [2] : vector<4x8x8xf32> to vector<4x8xf32>
    %92 = vector.shape_cast %91 : vector<4x8xf32> to vector<4x8x1xf32>
    %93 = vector.broadcast %92 : vector<4x8x1xf32> to vector<4x8x8xf32>
    %94 = arith.subf %90, %93 : vector<4x8x8xf32>
    %95 = math.exp %94 : vector<4x8x8xf32>
    %cst_29 = arith.constant dense<0.000000e+00> : vector<4x8xf32>
    %96 = vector.multi_reduction <add>, %95, %cst_29 [2] : vector<4x8x8xf32> to vector<4x8xf32>
    %97 = vector.shape_cast %96 : vector<4x8xf32> to vector<4x8x1xf32>
    %98 = tpu.reciprocal %97 {approx = true} : vector<4x8x1xf32> -> vector<4x8x1xf32>
    %99 = vector.broadcast %98 : vector<4x8x1xf32> to vector<4x8x8xf32>
    %100 = arith.mulf %95, %99 : vector<4x8x8xf32>
    %101 = arith.truncf %100 : vector<4x8x8xf32> to vector<4x8x8xbf16>
    %102 = arith.truncf %85 : vector<4x8x8xf32> to vector<4x8x8xbf16>
    "tpu.trace_start"() <{level = 10 : i32, message = "gqk,gkd->gqd"}> : () -> ()
    %cst_30 = arith.constant dense<0.000000e+00> : vector<4x8x8xf32>
    %103 = tpu.matmul %101, %102, %cst_30 {dimension_numbers = #tpu.dot_dimension_numbers<[2], [1], [1], [2], [0, 0, 0, 1, 1, 2], [0], [0]>} : vector<4x8x8xbf16>, vector<4x8x8xbf16>, vector<4x8x8xf32> -> vector<4x8x8xf32>
    "tpu.trace_stop"() : () -> ()
    %104 = arith.truncf %103 : vector<4x8x8xf32> to vector<4x8x8xbf16>
    %c0_31 = arith.constant 0 : index
    %c0_32 = arith.constant 0 : index
    %c0_33 = arith.constant 0 : index
    %c0_34 = arith.constant 0 : index
    %105 = vector.load %arg5[%c0_31, %c0_32, %c0_33, %c0_34] : memref<2x4x8x32xbf16, #tpu.memory_space<vmem>>, vector<1x4x8x32xbf16>
    %106 = vector.shape_cast %105 : vector<1x4x8x32xbf16> to vector<4x8x32xbf16>
    %107 = vector.shape_cast %106 : vector<4x8x32xbf16> to vector<1x4x8x32xbf16>
    %108 = vector.shape_cast %107 : vector<1x4x8x32xbf16> to vector<4x8x32xbf16>
    "tpu.trace_start"() <{level = 10 : i32, message = "gsd,gdf->gsf"}> : () -> ()
    %cst_35 = arith.constant dense<0.000000e+00> : vector<4x8x32xf32>
    %109 = tpu.matmul %104, %108, %cst_35 {dimension_numbers = #tpu.dot_dimension_numbers<[2], [1], [1], [2], [0, 0, 0, 1, 1, 2], [0], [0]>} : vector<4x8x8xbf16>, vector<4x8x32xbf16>, vector<4x8x32xf32> -> vector<4x8x32xf32>
    "tpu.trace_stop"() : () -> ()
    %110 = vector.shape_cast %109 : vector<4x8x32xf32> to vector<1x4x8x32xf32>
    %cst_36 = arith.constant dense<0.000000e+00> : vector<1x8x32xf32>
    %111 = vector.multi_reduction <add>, %110, %cst_36 [1] : vector<1x4x8x32xf32> to vector<1x8x32xf32>
    %112 = vector.shape_cast %111 : vector<1x8x32xf32> to vector<8x32xf32>
    %113 = vector.broadcast %37 : vector<1x32xf32> to vector<8x32xf32>
    %114 = arith.addf %112, %113 : vector<8x32xf32>
    %115 = arith.addf %29, %114 : vector<8x32xf32>
    %cst_37 = arith.constant dense<0.000000e+00> : vector<8xf32>
    %116 = vector.multi_reduction <add>, %115, %cst_37 [1] : vector<8x32xf32> to vector<8xf32>
    %117 = vector.shape_cast %116 : vector<8xf32> to vector<8x1xf32>
    %cst_38 = arith.constant 3.125000e-02 : f32
    %118 = vector.broadcast %cst_38 : f32 to vector<8x1xf32>
    %119 = arith.mulf %117, %118 : vector<8x1xf32>
    %120 = arith.mulf %115, %115 : vector<8x32xf32>
    %cst_39 = arith.constant dense<0.000000e+00> : vector<8xf32>
    %121 = vector.multi_reduction <add>, %120, %cst_39 [1] : vector<8x32xf32> to vector<8xf32>
    %122 = vector.shape_cast %121 : vector<8xf32> to vector<8x1xf32>
    %cst_40 = arith.constant 3.125000e-02 : f32
    %123 = vector.broadcast %cst_40 : f32 to vector<8x1xf32>
    %124 = arith.mulf %122, %123 : vector<8x1xf32>
    %125 = arith.mulf %119, %119 : vector<8x1xf32>
    %126 = arith.subf %124, %125 : vector<8x1xf32>
    %127 = vector.broadcast %119 : vector<8x1xf32> to vector<8x32xf32>
    %128 = arith.subf %115, %127 : vector<8x32xf32>
    %cst_41 = arith.constant 9.99999996E-13 : f32
    %129 = vector.broadcast %cst_41 : f32 to vector<8x1xf32>
    %130 = arith.addf %126, %129 : vector<8x1xf32>
    %131 = math.rsqrt %130 : vector<8x1xf32>
    %132 = vector.broadcast %131 : vector<8x1xf32> to vector<8x32xf32>
    %133 = arith.mulf %128, %132 : vector<8x32xf32>
    %134 = vector.broadcast %40 : vector<1x32xf32> to vector<8x32xf32>
    %135 = arith.mulf %133, %134 : vector<8x32xf32>
    %136 = vector.broadcast %41 : vector<1x32xf32> to vector<8x32xf32>
    %137 = arith.addf %135, %136 : vector<8x32xf32>
    %138 = arith.truncf %137 : vector<8x32xf32> to vector<8x32xbf16>
    %c0_42 = arith.constant 0 : index
    %c0_43 = arith.constant 0 : index
    %c0_44 = arith.constant 0 : index
    %139 = vector.load %arg6[%c0_42, %c0_43, %c0_44] : memref<2x32x64xbf16, #tpu.memory_space<vmem>>, vector<1x32x64xbf16>
    %140 = vector.shape_cast %139 : vector<1x32x64xbf16> to vector<32x64xbf16>
    %cst_45 = arith.constant dense<0.000000e+00> : vector<8x64xf32>
    %141 = tpu.matmul %138, %140, %cst_45 {dimension_numbers = #tpu.dot_dimension_numbers<[1], [0], [0], [1], [0, 0, 1, 1], [], []>} : vector<8x32xbf16>, vector<32x64xbf16>, vector<8x64xf32> -> vector<8x64xf32>
    %142 = vector.broadcast %38 : vector<1x64xf32> to vector<8x64xf32>
    %143 = arith.addf %141, %142 : vector<8x64xf32>
    %cst_46 = arith.constant 5.000000e-01 : f32
    %144 = vector.broadcast %cst_46 : f32 to vector<8x64xf32>
    %145 = arith.mulf %144, %143 : vector<8x64xf32>
    %cst_47 = arith.constant 4.471500e-02 : f32
    %146 = vector.broadcast %cst_47 : f32 to vector<8x64xf32>
    %147 = arith.mulf %146, %143 : vector<8x64xf32>
    %148 = arith.mulf %147, %143 : vector<8x64xf32>
    %149 = arith.mulf %148, %143 : vector<8x64xf32>
    %150 = arith.addf %143, %149 : vector<8x64xf32>
    %cst_48 = arith.constant 0.797884583 : f32
    %151 = vector.broadcast %cst_48 : f32 to vector<8x64xf32>
    %152 = arith.mulf %151, %150 : vector<8x64xf32>
    %153 = math.tanh %152 : vector<8x64xf32>
    %cst_49 = arith.constant 1.000000e+00 : f32
    %154 = vector.broadcast %cst_49 : f32 to vector<8x64xf32>
    %155 = arith.addf %154, %153 : vector<8x64xf32>
    %156 = arith.mulf %145, %155 : vector<8x64xf32>
    %157 = arith.truncf %156 : vector<8x64xf32> to vector<8x64xbf16>
    %c0_50 = arith.constant 0 : index
    %c0_51 = arith.constant 0 : index
    %c0_52 = arith.constant 0 : index
    %158 = vector.load %arg7[%c0_50, %c0_51, %c0_52] : memref<2x64x32xbf16, #tpu.memory_space<vmem>>, vector<1x64x32xbf16>
    %159 = vector.shape_cast %158 : vector<1x64x32xbf16> to vector<64x32xbf16>
    %cst_53 = arith.constant dense<0.000000e+00> : vector<8x32xf32>
    %160 = tpu.matmul %157, %159, %cst_53 {dimension_numbers = #tpu.dot_dimension_numbers<[1], [0], [0], [1], [0, 0, 1, 1], [], []>} : vector<8x64xbf16>, vector<64x32xbf16>, vector<8x32xf32> -> vector<8x32xf32>
    %161 = vector.broadcast %39 : vector<1x32xf32> to vector<8x32xf32>
    %162 = arith.addf %160, %161 : vector<8x32xf32>
    %163 = arith.addf %137, %162 : vector<8x32xf32>
    %cst_54 = arith.constant dense<0.000000e+00> : vector<8xf32>
    %164 = vector.multi_reduction <add>, %163, %cst_54 [1] : vector<8x32xf32> to vector<8xf32>
    %165 = vector.shape_cast %164 : vector<8xf32> to vector<8x1xf32>
    %cst_55 = arith.constant 3.125000e-02 : f32
    %166 = vector.broadcast %cst_55 : f32 to vector<8x1xf32>
    %167 = arith.mulf %165, %166 : vector<8x1xf32>
    %168 = arith.mulf %163, %163 : vector<8x32xf32>
    %cst_56 = arith.constant dense<0.000000e+00> : vector<8xf32>
    %169 = vector.multi_reduction <add>, %168, %cst_56 [1] : vector<8x32xf32> to vector<8xf32>
    %170 = vector.shape_cast %169 : vector<8xf32> to vector<8x1xf32>
    %cst_57 = arith.constant 3.125000e-02 : f32
    %171 = vector.broadcast %cst_57 : f32 to vector<8x1xf32>
    %172 = arith.mulf %170, %171 : vector<8x1xf32>
    %173 = arith.mulf %167, %167 : vector<8x1xf32>
    %174 = arith.subf %172, %173 : vector<8x1xf32>
    %175 = vector.broadcast %167 : vector<8x1xf32> to vector<8x32xf32>
    %176 = arith.subf %163, %175 : vector<8x32xf32>
    %cst_58 = arith.constant 9.99999996E-13 : f32
    %177 = vector.broadcast %cst_58 : f32 to vector<8x1xf32>
    %178 = arith.addf %174, %177 : vector<8x1xf32>
    %179 = math.rsqrt %178 : vector<8x1xf32>
    %180 = vector.broadcast %179 : vector<8x1xf32> to vector<8x32xf32>
    %181 = arith.mulf %176, %180 : vector<8x32xf32>
    %182 = vector.broadcast %42 : vector<1x32xf32> to vector<8x32xf32>
    %183 = arith.mulf %181, %182 : vector<8x32xf32>
    %184 = vector.broadcast %43 : vector<1x32xf32> to vector<8x32xf32>
    %185 = arith.addf %183, %184 : vector<8x32xf32>
    %c1 = arith.constant 1 : index
    %c0_59 = arith.constant 0 : index
    %c0_60 = arith.constant 0 : index
    %186 = vector.load %arg8[%c1, %c0_59, %c0_60] : memref<2x8x64xf32, #tpu.memory_space<vmem>>, vector<1x8x64xf32>
    %187 = vector.shape_cast %186 : vector<1x8x64xf32> to vector<8x64xf32>
    %188 = vector.extract_strided_slice %187 {offsets = [0, 0], sizes = [1, 32], strides = [1, 1]} : vector<8x64xf32> to vector<1x32xf32>
    %189 = vector.extract_strided_slice %187 {offsets = [1, 0], sizes = [1, 64], strides = [1, 1]} : vector<8x64xf32> to vector<1x64xf32>
    %190 = vector.extract_strided_slice %187 {offsets = [2, 0], sizes = [1, 32], strides = [1, 1]} : vector<8x64xf32> to vector<1x32xf32>
    %191 = vector.extract_strided_slice %187 {offsets = [3, 0], sizes = [1, 32], strides = [1, 1]} : vector<8x64xf32> to vector<1x32xf32>
    %192 = vector.extract_strided_slice %187 {offsets = [4, 0], sizes = [1, 32], strides = [1, 1]} : vector<8x64xf32> to vector<1x32xf32>
    %193 = vector.extract_strided_slice %187 {offsets = [5, 0], sizes = [1, 32], strides = [1, 1]} : vector<8x64xf32> to vector<1x32xf32>
    %194 = vector.extract_strided_slice %187 {offsets = [6, 0], sizes = [1, 32], strides = [1, 1]} : vector<8x64xf32> to vector<1x32xf32>
    %195 = arith.truncf %185 : vector<8x32xf32> to vector<8x32xbf16>
    %196 = vector.shape_cast %195 : vector<8x32xbf16> to vector<1x1x8x32xbf16>
    %197 = vector.shape_cast %196 : vector<1x1x8x32xbf16> to vector<1x1x8x32xbf16>
    %198 = vector.broadcast %197 : vector<1x1x8x32xbf16> to vector<1x4x8x32xbf16>
    %199 = vector.shape_cast %198 : vector<1x4x8x32xbf16> to vector<4x8x32xbf16>
    %c1_61 = arith.constant 1 : index
    %c0_62 = arith.constant 0 : index
    %c0_63 = arith.constant 0 : index
    %c0_64 = arith.constant 0 : index
    %c0_65 = arith.constant 0 : index
    %200 = vector.load %arg3[%c1_61, %c0_62, %c0_63, %c0_64, %c0_65] : memref<2x3x4x32x8xbf16, #tpu.memory_space<vmem>>, vector<1x3x4x32x8xbf16>
    %201 = vector.shape_cast %200 : vector<1x3x4x32x8xbf16> to vector<3x4x32x8xbf16>
    %c1_66 = arith.constant 1 : index
    %c0_67 = arith.constant 0 : index
    %c0_68 = arith.constant 0 : index
    %c0_69 = arith.constant 0 : index
    %c0_70 = arith.constant 0 : index
    %202 = vector.load %arg4[%c1_66, %c0_67, %c0_68, %c0_69, %c0_70] : memref<2x3x4x1x8xf32, #tpu.memory_space<vmem>>, vector<1x3x4x1x8xf32>
    %203 = vector.shape_cast %202 : vector<1x3x4x1x8xf32> to vector<3x4x1x8xf32>
    %204 = vector.extract_strided_slice %201 {offsets = [0, 0, 0, 0], sizes = [1, 4, 32, 8], strides = [1, 1, 1, 1]} : vector<3x4x32x8xbf16> to vector<1x4x32x8xbf16>
    %205 = vector.shape_cast %204 : vector<1x4x32x8xbf16> to vector<4x32x8xbf16>
    %206 = vector.shape_cast %205 : vector<4x32x8xbf16> to vector<1x4x32x8xbf16>
    %207 = vector.shape_cast %206 : vector<1x4x32x8xbf16> to vector<4x32x8xbf16>
    "tpu.trace_start"() <{level = 10 : i32, message = "gsd,gdf->gsf"}> : () -> ()
    %cst_71 = arith.constant dense<0.000000e+00> : vector<4x8x8xf32>
    %208 = tpu.matmul %199, %207, %cst_71 {dimension_numbers = #tpu.dot_dimension_numbers<[2], [1], [1], [2], [0, 0, 0, 1, 1, 2], [0], [0]>} : vector<4x8x32xbf16>, vector<4x32x8xbf16>, vector<4x8x8xf32> -> vector<4x8x8xf32>
    "tpu.trace_stop"() : () -> ()
    %209 = vector.extract_strided_slice %203 {offsets = [0, 0, 0, 0], sizes = [1, 4, 1, 8], strides = [1, 1, 1, 1]} : vector<3x4x1x8xf32> to vector<1x4x1x8xf32>
    %210 = vector.shape_cast %209 : vector<1x4x1x8xf32> to vector<4x1x8xf32>
    %211 = vector.shape_cast %210 : vector<4x1x8xf32> to vector<1x4x1x8xf32>
    %212 = vector.shape_cast %211 : vector<1x4x1x8xf32> to vector<4x1x8xf32>
    %213 = vector.broadcast %212 : vector<4x1x8xf32> to vector<4x8x8xf32>
    %214 = arith.addf %208, %213 : vector<4x8x8xf32>
    %215 = vector.extract_strided_slice %201 {offsets = [1, 0, 0, 0], sizes = [1, 4, 32, 8], strides = [1, 1, 1, 1]} : vector<3x4x32x8xbf16> to vector<1x4x32x8xbf16>
    %216 = vector.shape_cast %215 : vector<1x4x32x8xbf16> to vector<4x32x8xbf16>
    %217 = vector.shape_cast %216 : vector<4x32x8xbf16> to vector<1x4x32x8xbf16>
    %218 = vector.shape_cast %217 : vector<1x4x32x8xbf16> to vector<4x32x8xbf16>
    "tpu.trace_start"() <{level = 10 : i32, message = "gsd,gdf->gsf"}> : () -> ()
    %cst_72 = arith.constant dense<0.000000e+00> : vector<4x8x8xf32>
    %219 = tpu.matmul %199, %218, %cst_72 {dimension_numbers = #tpu.dot_dimension_numbers<[2], [1], [1], [2], [0, 0, 0, 1, 1, 2], [0], [0]>} : vector<4x8x32xbf16>, vector<4x32x8xbf16>, vector<4x8x8xf32> -> vector<4x8x8xf32>
    "tpu.trace_stop"() : () -> ()
    %220 = vector.extract_strided_slice %203 {offsets = [1, 0, 0, 0], sizes = [1, 4, 1, 8], strides = [1, 1, 1, 1]} : vector<3x4x1x8xf32> to vector<1x4x1x8xf32>
    %221 = vector.shape_cast %220 : vector<1x4x1x8xf32> to vector<4x1x8xf32>
    %222 = vector.shape_cast %221 : vector<4x1x8xf32> to vector<1x4x1x8xf32>
    %223 = vector.shape_cast %222 : vector<1x4x1x8xf32> to vector<4x1x8xf32>
    %224 = vector.broadcast %223 : vector<4x1x8xf32> to vector<4x8x8xf32>
    %225 = arith.addf %219, %224 : vector<4x8x8xf32>
    %226 = vector.extract_strided_slice %201 {offsets = [2, 0, 0, 0], sizes = [1, 4, 32, 8], strides = [1, 1, 1, 1]} : vector<3x4x32x8xbf16> to vector<1x4x32x8xbf16>
    %227 = vector.shape_cast %226 : vector<1x4x32x8xbf16> to vector<4x32x8xbf16>
    %228 = vector.shape_cast %227 : vector<4x32x8xbf16> to vector<1x4x32x8xbf16>
    %229 = vector.shape_cast %228 : vector<1x4x32x8xbf16> to vector<4x32x8xbf16>
    "tpu.trace_start"() <{level = 10 : i32, message = "gsd,gdf->gsf"}> : () -> ()
    %cst_73 = arith.constant dense<0.000000e+00> : vector<4x8x8xf32>
    %230 = tpu.matmul %199, %229, %cst_73 {dimension_numbers = #tpu.dot_dimension_numbers<[2], [1], [1], [2], [0, 0, 0, 1, 1, 2], [0], [0]>} : vector<4x8x32xbf16>, vector<4x32x8xbf16>, vector<4x8x8xf32> -> vector<4x8x8xf32>
    "tpu.trace_stop"() : () -> ()
    %231 = vector.extract_strided_slice %203 {offsets = [2, 0, 0, 0], sizes = [1, 4, 1, 8], strides = [1, 1, 1, 1]} : vector<3x4x1x8xf32> to vector<1x4x1x8xf32>
    %232 = vector.shape_cast %231 : vector<1x4x1x8xf32> to vector<4x1x8xf32>
    %233 = vector.shape_cast %232 : vector<4x1x8xf32> to vector<1x4x1x8xf32>
    %234 = vector.shape_cast %233 : vector<1x4x1x8xf32> to vector<4x1x8xf32>
    %235 = vector.broadcast %234 : vector<4x1x8xf32> to vector<4x8x8xf32>
    %236 = arith.addf %230, %235 : vector<4x8x8xf32>
    %237 = arith.truncf %214 : vector<4x8x8xf32> to vector<4x8x8xbf16>
    %238 = arith.truncf %225 : vector<4x8x8xf32> to vector<4x8x8xbf16>
    "tpu.trace_start"() <{level = 10 : i32, message = "gqd,gkd->gqk"}> : () -> ()
    %cst_74 = arith.constant dense<0.000000e+00> : vector<4x8x8xf32>
    %239 = tpu.matmul %237, %238, %cst_74 {dimension_numbers = #tpu.dot_dimension_numbers<[2], [2], [1], [1], [0, 0, 0, 1, 1, 1], [0], [0]>} : vector<4x8x8xbf16>, vector<4x8x8xbf16>, vector<4x8x8xf32> -> vector<4x8x8xf32>
    "tpu.trace_stop"() : () -> ()
    %240 = vector.broadcast %34 : vector<4x1x8xf32> to vector<4x8x8xf32>
    %241 = arith.addf %239, %240 : vector<4x8x8xf32>
    %cst_75 = arith.constant dense<0xFF800000> : vector<4x8xf32>
    %242 = vector.multi_reduction <maximumf>, %241, %cst_75 [2] : vector<4x8x8xf32> to vector<4x8xf32>
    %243 = vector.shape_cast %242 : vector<4x8xf32> to vector<4x8x1xf32>
    %244 = vector.broadcast %243 : vector<4x8x1xf32> to vector<4x8x8xf32>
    %245 = arith.subf %241, %244 : vector<4x8x8xf32>
    %246 = math.exp %245 : vector<4x8x8xf32>
    %cst_76 = arith.constant dense<0.000000e+00> : vector<4x8xf32>
    %247 = vector.multi_reduction <add>, %246, %cst_76 [2] : vector<4x8x8xf32> to vector<4x8xf32>
    %248 = vector.shape_cast %247 : vector<4x8xf32> to vector<4x8x1xf32>
    %249 = tpu.reciprocal %248 {approx = true} : vector<4x8x1xf32> -> vector<4x8x1xf32>
    %250 = vector.broadcast %249 : vector<4x8x1xf32> to vector<4x8x8xf32>
    %251 = arith.mulf %246, %250 : vector<4x8x8xf32>
    %252 = arith.truncf %251 : vector<4x8x8xf32> to vector<4x8x8xbf16>
    %253 = arith.truncf %236 : vector<4x8x8xf32> to vector<4x8x8xbf16>
    "tpu.trace_start"() <{level = 10 : i32, message = "gqk,gkd->gqd"}> : () -> ()
    %cst_77 = arith.constant dense<0.000000e+00> : vector<4x8x8xf32>
    %254 = tpu.matmul %252, %253, %cst_77 {dimension_numbers = #tpu.dot_dimension_numbers<[2], [1], [1], [2], [0, 0, 0, 1, 1, 2], [0], [0]>} : vector<4x8x8xbf16>, vector<4x8x8xbf16>, vector<4x8x8xf32> -> vector<4x8x8xf32>
    "tpu.trace_stop"() : () -> ()
    %255 = arith.truncf %254 : vector<4x8x8xf32> to vector<4x8x8xbf16>
    %c1_78 = arith.constant 1 : index
    %c0_79 = arith.constant 0 : index
    %c0_80 = arith.constant 0 : index
    %c0_81 = arith.constant 0 : index
    %256 = vector.load %arg5[%c1_78, %c0_79, %c0_80, %c0_81] : memref<2x4x8x32xbf16, #tpu.memory_space<vmem>>, vector<1x4x8x32xbf16>
    %257 = vector.shape_cast %256 : vector<1x4x8x32xbf16> to vector<4x8x32xbf16>
    %258 = vector.shape_cast %257 : vector<4x8x32xbf16> to vector<1x4x8x32xbf16>
    %259 = vector.shape_cast %258 : vector<1x4x8x32xbf16> to vector<4x8x32xbf16>
    "tpu.trace_start"() <{level = 10 : i32, message = "gsd,gdf->gsf"}> : () -> ()
    %cst_82 = arith.constant dense<0.000000e+00> : vector<4x8x32xf32>
    %260 = tpu.matmul %255, %259, %cst_82 {dimension_numbers = #tpu.dot_dimension_numbers<[2], [1], [1], [2], [0, 0, 0, 1, 1, 2], [0], [0]>} : vector<4x8x8xbf16>, vector<4x8x32xbf16>, vector<4x8x32xf32> -> vector<4x8x32xf32>
    "tpu.trace_stop"() : () -> ()
    %261 = vector.shape_cast %260 : vector<4x8x32xf32> to vector<1x4x8x32xf32>
    %cst_83 = arith.constant dense<0.000000e+00> : vector<1x8x32xf32>
    %262 = vector.multi_reduction <add>, %261, %cst_83 [1] : vector<1x4x8x32xf32> to vector<1x8x32xf32>
    %263 = vector.shape_cast %262 : vector<1x8x32xf32> to vector<8x32xf32>
    %264 = vector.broadcast %188 : vector<1x32xf32> to vector<8x32xf32>
    %265 = arith.addf %263, %264 : vector<8x32xf32>
    %266 = arith.addf %185, %265 : vector<8x32xf32>
    %cst_84 = arith.constant dense<0.000000e+00> : vector<8xf32>
    %267 = vector.multi_reduction <add>, %266, %cst_84 [1] : vector<8x32xf32> to vector<8xf32>
    %268 = vector.shape_cast %267 : vector<8xf32> to vector<8x1xf32>
    %cst_85 = arith.constant 3.125000e-02 : f32
    %269 = vector.broadcast %cst_85 : f32 to vector<8x1xf32>
    %270 = arith.mulf %268, %269 : vector<8x1xf32>
    %271 = arith.mulf %266, %266 : vector<8x32xf32>
    %cst_86 = arith.constant dense<0.000000e+00> : vector<8xf32>
    %272 = vector.multi_reduction <add>, %271, %cst_86 [1] : vector<8x32xf32> to vector<8xf32>
    %273 = vector.shape_cast %272 : vector<8xf32> to vector<8x1xf32>
    %cst_87 = arith.constant 3.125000e-02 : f32
    %274 = vector.broadcast %cst_87 : f32 to vector<8x1xf32>
    %275 = arith.mulf %273, %274 : vector<8x1xf32>
    %276 = arith.mulf %270, %270 : vector<8x1xf32>
    %277 = arith.subf %275, %276 : vector<8x1xf32>
    %278 = vector.broadcast %270 : vector<8x1xf32> to vector<8x32xf32>
    %279 = arith.subf %266, %278 : vector<8x32xf32>
    %cst_88 = arith.constant 9.99999996E-13 : f32
    %280 = vector.broadcast %cst_88 : f32 to vector<8x1xf32>
    %281 = arith.addf %277, %280 : vector<8x1xf32>
    %282 = math.rsqrt %281 : vector<8x1xf32>
    %283 = vector.broadcast %282 : vector<8x1xf32> to vector<8x32xf32>
    %284 = arith.mulf %279, %283 : vector<8x32xf32>
    %285 = vector.broadcast %191 : vector<1x32xf32> to vector<8x32xf32>
    %286 = arith.mulf %284, %285 : vector<8x32xf32>
    %287 = vector.broadcast %192 : vector<1x32xf32> to vector<8x32xf32>
    %288 = arith.addf %286, %287 : vector<8x32xf32>
    %289 = arith.truncf %288 : vector<8x32xf32> to vector<8x32xbf16>
    %c1_89 = arith.constant 1 : index
    %c0_90 = arith.constant 0 : index
    %c0_91 = arith.constant 0 : index
    %290 = vector.load %arg6[%c1_89, %c0_90, %c0_91] : memref<2x32x64xbf16, #tpu.memory_space<vmem>>, vector<1x32x64xbf16>
    %291 = vector.shape_cast %290 : vector<1x32x64xbf16> to vector<32x64xbf16>
    %cst_92 = arith.constant dense<0.000000e+00> : vector<8x64xf32>
    %292 = tpu.matmul %289, %291, %cst_92 {dimension_numbers = #tpu.dot_dimension_numbers<[1], [0], [0], [1], [0, 0, 1, 1], [], []>} : vector<8x32xbf16>, vector<32x64xbf16>, vector<8x64xf32> -> vector<8x64xf32>
    %293 = vector.broadcast %189 : vector<1x64xf32> to vector<8x64xf32>
    %294 = arith.addf %292, %293 : vector<8x64xf32>
    %cst_93 = arith.constant 5.000000e-01 : f32
    %295 = vector.broadcast %cst_93 : f32 to vector<8x64xf32>
    %296 = arith.mulf %295, %294 : vector<8x64xf32>
    %cst_94 = arith.constant 4.471500e-02 : f32
    %297 = vector.broadcast %cst_94 : f32 to vector<8x64xf32>
    %298 = arith.mulf %297, %294 : vector<8x64xf32>
    %299 = arith.mulf %298, %294 : vector<8x64xf32>
    %300 = arith.mulf %299, %294 : vector<8x64xf32>
    %301 = arith.addf %294, %300 : vector<8x64xf32>
    %cst_95 = arith.constant 0.797884583 : f32
    %302 = vector.broadcast %cst_95 : f32 to vector<8x64xf32>
    %303 = arith.mulf %302, %301 : vector<8x64xf32>
    %304 = math.tanh %303 : vector<8x64xf32>
    %cst_96 = arith.constant 1.000000e+00 : f32
    %305 = vector.broadcast %cst_96 : f32 to vector<8x64xf32>
    %306 = arith.addf %305, %304 : vector<8x64xf32>
    %307 = arith.mulf %296, %306 : vector<8x64xf32>
    %308 = arith.truncf %307 : vector<8x64xf32> to vector<8x64xbf16>
    %c1_97 = arith.constant 1 : index
    %c0_98 = arith.constant 0 : index
    %c0_99 = arith.constant 0 : index
    %309 = vector.load %arg7[%c1_97, %c0_98, %c0_99] : memref<2x64x32xbf16, #tpu.memory_space<vmem>>, vector<1x64x32xbf16>
    %310 = vector.shape_cast %309 : vector<1x64x32xbf16> to vector<64x32xbf16>
    %cst_100 = arith.constant dense<0.000000e+00> : vector<8x32xf32>
    %311 = tpu.matmul %308, %310, %cst_100 {dimension_numbers = #tpu.dot_dimension_numbers<[1], [0], [0], [1], [0, 0, 1, 1], [], []>} : vector<8x64xbf16>, vector<64x32xbf16>, vector<8x32xf32> -> vector<8x32xf32>
    %312 = vector.broadcast %190 : vector<1x32xf32> to vector<8x32xf32>
    %313 = arith.addf %311, %312 : vector<8x32xf32>
    %314 = arith.addf %288, %313 : vector<8x32xf32>
    %cst_101 = arith.constant dense<0.000000e+00> : vector<8xf32>
    %315 = vector.multi_reduction <add>, %314, %cst_101 [1] : vector<8x32xf32> to vector<8xf32>
    %316 = vector.shape_cast %315 : vector<8xf32> to vector<8x1xf32>
    %cst_102 = arith.constant 3.125000e-02 : f32
    %317 = vector.broadcast %cst_102 : f32 to vector<8x1xf32>
    %318 = arith.mulf %316, %317 : vector<8x1xf32>
    %319 = arith.mulf %314, %314 : vector<8x32xf32>
    %cst_103 = arith.constant dense<0.000000e+00> : vector<8xf32>
    %320 = vector.multi_reduction <add>, %319, %cst_103 [1] : vector<8x32xf32> to vector<8xf32>
    %321 = vector.shape_cast %320 : vector<8xf32> to vector<8x1xf32>
    %cst_104 = arith.constant 3.125000e-02 : f32
    %322 = vector.broadcast %cst_104 : f32 to vector<8x1xf32>
    %323 = arith.mulf %321, %322 : vector<8x1xf32>
    %324 = arith.mulf %318, %318 : vector<8x1xf32>
    %325 = arith.subf %323, %324 : vector<8x1xf32>
    %326 = vector.broadcast %318 : vector<8x1xf32> to vector<8x32xf32>
    %327 = arith.subf %314, %326 : vector<8x32xf32>
    %cst_105 = arith.constant 9.99999996E-13 : f32
    %328 = vector.broadcast %cst_105 : f32 to vector<8x1xf32>
    %329 = arith.addf %325, %328 : vector<8x1xf32>
    %330 = math.rsqrt %329 : vector<8x1xf32>
    %331 = vector.broadcast %330 : vector<8x1xf32> to vector<8x32xf32>
    %332 = arith.mulf %327, %331 : vector<8x32xf32>
    %333 = vector.broadcast %193 : vector<1x32xf32> to vector<8x32xf32>
    %334 = arith.mulf %332, %333 : vector<8x32xf32>
    %335 = vector.broadcast %194 : vector<1x32xf32> to vector<8x32xf32>
    %336 = arith.addf %334, %335 : vector<8x32xf32>
    %337 = vector.shape_cast %336 : vector<8x32xf32> to vector<1x8x32xf32>
    %338 = vector.extract_strided_slice %337 {offsets = [0, 0, 0], sizes = [1, 1, 32], strides = [1, 1, 1]} : vector<1x8x32xf32> to vector<1x1x32xf32>
    %339 = vector.shape_cast %338 : vector<1x1x32xf32> to vector<1x32xf32>
    %340 = arith.truncf %339 : vector<1x32xf32> to vector<1x32xbf16>
    %c0_106 = arith.constant 0 : index
    %c0_107 = arith.constant 0 : index
    %341 = vector.load %arg10[%c0_106, %c0_107] : memref<32x32xbf16, #tpu.memory_space<vmem>>, vector<32x32xbf16>
    %cst_108 = arith.constant dense<0.000000e+00> : vector<1x32xf32>
    %342 = tpu.matmul %340, %341, %cst_108 {dimension_numbers = #tpu.dot_dimension_numbers<[1], [0], [0], [1], [0, 0, 1, 1], [], []>} : vector<1x32xbf16>, vector<32x32xbf16>, vector<1x32xf32> -> vector<1x32xf32>
    %343 = arith.addf %342, %3 : vector<1x32xf32>
    %cst_109 = arith.constant 0.000000e+00 : f32
    %344 = vector.broadcast %cst_109 : f32 to vector<1x32xf32>
    %345 = arith.maximumf %343, %344 : vector<1x32xf32>
    %346 = arith.truncf %345 : vector<1x32xf32> to vector<1x32xbf16>
    %c0_110 = arith.constant 0 : index
    %c0_111 = arith.constant 0 : index
    %347 = vector.load %arg11[%c0_110, %c0_111] : memref<32x128xbf16, #tpu.memory_space<vmem>>, vector<32x128xbf16>
    %cst_112 = arith.constant dense<0.000000e+00> : vector<1x128xf32>
    %348 = tpu.matmul %346, %347, %cst_112 {dimension_numbers = #tpu.dot_dimension_numbers<[1], [0], [0], [1], [0, 0, 1, 1], [], []>} : vector<1x32xbf16>, vector<32x128xbf16>, vector<1x128xf32> -> vector<1x128xf32>
    %349 = arith.addf %348, %4 : vector<1x128xf32>
    %350 = vector.shape_cast %349 : vector<1x128xf32> to vector<1x1x128xf32>
    %c0_113 = arith.constant 0 : index
    %c0_114 = arith.constant 0 : index
    %c0_115 = arith.constant 0 : index
    %351 = vector.load %arg12[%c0_113, %c0_114, %c0_115] : memref<1x1x128xf32, #tpu.memory_space<vmem>>, vector<1x1x128xf32>
    tpu.vector_store %arg12[%c0_113, %c0_114, %c0_115], %350 {strides = array<i32>} : memref<1x1x128xf32, #tpu.memory_space<vmem>>, vector<1x1x128xf32>,
    return
  }
  func.func @transform_0(%arg0: i32) -> (i32, i32, i32) {
    %c0_i32 = arith.constant 0 : i32
    %c0_i32_0 = arith.constant 0 : i32
    %c0_i32_1 = arith.constant 0 : i32
    return %arg0, %c0_i32, %c0_i32_0 : i32, i32, i32
  }
  func.func @transform_1(%arg0: i32) -> (i32, i32, i32) {
    %c0_i32 = arith.constant 0 : i32
    %c0_i32_0 = arith.constant 0 : i32
    %c0_i32_1 = arith.constant 0 : i32
    return %arg0, %c0_i32, %c0_i32_0 : i32, i32, i32
  }
  func.func @transform_2(%arg0: i32) -> (i32, i32, i32, i32, i32) {
    %c0_i32 = arith.constant 0 : i32
    %c0_i32_0 = arith.constant 0 : i32
    %c0_i32_1 = arith.constant 0 : i32
    %c0_i32_2 = arith.constant 0 : i32
    %c0_i32_3 = arith.constant 0 : i32
    %c0_i32_4 = arith.constant 0 : i32
    return %c0_i32, %c0_i32_0, %c0_i32_1, %c0_i32_2, %c0_i32_3 : i32, i32, i32, i32, i32
  }
  func.func @transform_3(%arg0: i32) -> (i32, i32, i32, i32, i32) {
    %c0_i32 = arith.constant 0 : i32
    %c0_i32_0 = arith.constant 0 : i32
    %c0_i32_1 = arith.constant 0 : i32
    %c0_i32_2 = arith.constant 0 : i32
    %c0_i32_3 = arith.constant 0 : i32
    %c0_i32_4 = arith.constant 0 : i32
    return %c0_i32, %c0_i32_0, %c0_i32_1, %c0_i32_2, %c0_i32_3 : i32, i32, i32, i32, i32
  }
  func.func @transform_4(%arg0: i32) -> (i32, i32, i32, i32) {
    %c0_i32 = arith.constant 0 : i32
    %c0_i32_0 = arith.constant 0 : i32
    %c0_i32_1 = arith.constant 0 : i32
    %c0_i32_2 = arith.constant 0 : i32
    %c0_i32_3 = arith.constant 0 : i32
    return %c0_i32, %c0_i32_0, %c0_i32_1, %c0_i32_2 : i32, i32, i32, i32
  }
  func.func @transform_5(%arg0: i32) -> (i32, i32, i32) {
    %c0_i32 = arith.constant 0 : i32
    %c0_i32_0 = arith.constant 0 : i32
    %c0_i32_1 = arith.constant 0 : i32
    %c0_i32_2 = arith.constant 0 : i32
    return %c0_i32, %c0_i32_0, %c0_i32_1 : i32, i32, i32
  }
  func.func @transform_6(%arg0: i32) -> (i32, i32, i32) {
    %c0_i32 = arith.constant 0 : i32
    %c0_i32_0 = arith.constant 0 : i32
    %c0_i32_1 = arith.constant 0 : i32
    %c0_i32_2 = arith.constant 0 : i32
    return %c0_i32, %c0_i32_0, %c0_i32_1 : i32, i32, i32
  }
  func.func @transform_7(%arg0: i32) -> (i32, i32, i32) {
    %c0_i32 = arith.constant 0 : i32
    %c0_i32_0 = arith.constant 0 : i32
    %c0_i32_1 = arith.constant 0 : i32
    %c0_i32_2 = arith.constant 0 : i32
    return %c0_i32, %c0_i32_0, %c0_i32_1 : i32, i32, i32
  }
  func.func @transform_8(%arg0: i32) -> (i32, i32) {
    %c0_i32 = arith.constant 0 : i32
    %c0_i32_0 = arith.constant 0 : i32
    %c0_i32_1 = arith.constant 0 : i32
    return %c0_i32, %c0_i32_0 : i32, i32
  }
  func.func @transform_9(%arg0: i32) -> (i32, i32) {
    %c0_i32 = arith.constant 0 : i32
    %c0_i32_0 = arith.constant 0 : i32
    %c0_i32_1 = arith.constant 0 : i32
    return %c0_i32, %c0_i32_0 : i32, i32
  }
  func.func @transform_10(%arg0: i32) -> (i32, i32) {
    %c0_i32 = arith.constant 0 : i32
    %c0_i32_0 = arith.constant 0 : i32
    %c0_i32_1 = arith.constant 0 : i32
    return %c0_i32, %c0_i32_0 : i32, i32
  }
  func.func @transform_11(%arg0: i32) -> (i32, i32, i32) {
    %c0_i32 = arith.constant 0 : i32
    %c0_i32_0 = arith.constant 0 : i32
    %c0_i32_1 = arith.constant 0 : i32
    return %arg0, %c0_i32, %c0_i32_0 : i32, i32, i32
  }
}

</mosaic_0001>

<llo_original>
// kernel: bert_classifier_forward.1
$region0: #{bert_classifier_forward.1}
  #allocation0 [shape = 'u32[]', space=smem, size = 0x4, offset = 0x4, fixed_abs, tag = 'smem constant byte address 0x4 - core index']
  #allocation1 [shape = 'u32[144,128]{1,0:T(1,128)}', space=vmem, size = 0x12000, scoped, tag = 'internal scratch']
  %s0 = inlined_call_operand.vmem [shape: bf16[2,8,32], index: 0, kind: input, shape index: {}]
  %s1 = inlined_call_operand.vmem [shape: f32[2,1,8], index: 1, kind: input, shape index: {}]
  %s2 = inlined_call_operand.vmem [shape: bf16[2,3,4,32,8], index: 2, kind: input, shape index: {}]
  %s3 = inlined_call_operand.vmem [shape: f32[2,3,4,1,8], index: 3, kind: input, shape index: {}]
  %s4 = inlined_call_operand.vmem [shape: bf16[2,4,8,32], index: 4, kind: input, shape index: {}]
  %s5 = inlined_call_operand.vmem [shape: bf16[2,32,64], index: 5, kind: input, shape index: {}]
  %s6 = inlined_call_operand.vmem [shape: bf16[2,64,32], index: 6, kind: input, shape index: {}]
  %s7 = inlined_call_operand.vmem [shape: f32[2,8,64], index: 7, kind: input, shape index: {}]
  %s8 = inlined_call_operand.vmem [shape: f32[4,128], index: 8, kind: input, shape index: {}]
  %s9 = inlined_call_operand.vmem [shape: bf16[32,32], index: 9, kind: input, shape index: {}]
  %s10 = inlined_call_operand.vmem [shape: bf16[32,128], index: 10, kind: input, shape index: {}]
  %s11 = inlined_call_operand.hbm [shape: f32[2,1,128], index: 11, kind: output, shape index: {}]
  %s12 = sld [smem:[#allocation0]]
  $region77: #{bert_classifier_forward.1} parent=0
    _
  %s14 = ssub.s32 1, %s12
  %s15 = scalar_select 0, %s14, %s12
  $region1: #{bert_classifier_forward.1} parent=0
    #allocation2 [shape = 'u8[1024]{0}', space=vmem, size = 0x400, scoped, tag = 'output window, operand 0']
    #allocation3 [shape = 's32[2]{0}', space=sflag, size = 0x8, scoped, tag = 'scoped memory for bert_classifier_forward.1']
    %16 = vsyncpa [#allocation3], 0
    %s17 = scalar_lea.sflag [#allocation3], 1
    %18 = vsyncpa %s17, 0
    loop: start=0, step=1, limit=4
    $region2: #{bert_classifier_forward.1} parent=1 // loop_pre_header
      _
    $region3: #{bert_classifier_forward.1} parent=1 // loop_header
      %s20 = sphi 0, %s24
      %p21 = scmp.ge.s32.totalorder %s20, 4
      %s30 = sphi 0, %s32
      %s33 = sphi 0, %s30
      %s34 = sphi 0, %s33
      %s50 = sphi 0, %s34
      %s56 = sphi 0, %s58
      %s59 = sphi 0, %s56
      %s60 = sphi 0, %s59
      %s76 = sphi 0, %s60
      %s80 = sphi 0, %s80
      %s82 = sphi 0, %s80
      %s83 = sphi 0, %s82
      %s97 = sphi 0, %s83
      %s101 = sphi 0, %s101
      %s103 = sphi 0, %s101
      %s104 = sphi 0, %s103
      %s118 = sphi 0, %s104
      %s122 = sphi 0, %s122
      %s124 = sphi 0, %s122
      %s125 = sphi 0, %s124
      %s139 = sphi 0, %s125
      %s143 = sphi 0, %s143
      %s145 = sphi 0, %s143
      %s146 = sphi 0, %s145
      %s160 = sphi 0, %s146
      %s164 = sphi 0, %s164
      %s166 = sphi 0, %s164
      %s167 = sphi 0, %s166
      %s181 = sphi 0, %s167
      %s185 = sphi 0, %s185
      %s187 = sphi 0, %s185
      %s188 = sphi 0, %s187
      %s202 = sphi 0, %s188
      %s206 = sphi 0, %s206
      %s208 = sphi 0, %s206
      %s209 = sphi 0, %s208
      %s223 = sphi 0, %s209
      %s227 = sphi 0, %s227
      %s229 = sphi 0, %s227
      %s230 = sphi 0, %s229
      %s244 = sphi 0, %s230
      %s248 = sphi 0, %s248
      %s250 = sphi 0, %s248
      %s251 = sphi 0, %s250
      %s265 = sphi 0, %s251
      %s271 = sphi 0, %s273
      %s274 = sphi 0, %s271
      %s275 = sphi 0, %s274
      %s291 = sphi 0, %s275
    $region4: #{bert_classifier_forward.1} parent=1 // loop_header_branch
      %23 = sbr.rel (%p21) target = $region8
    $region5: #{bert_classifier_forward.1} parent=1 // loop_body
      %s25 = ssub.s32 %s20, 1
      %s26 = ssub.s32 %s20, 2
      %s27 = sadd.s32 %s20, 1
      %s28 = ssub.s32 %s20, %s27
      %p29 = scmp.eq.s32.totalorder %s28, 0
      %s31 = sadd.s32 %s30, 1
      %s32 = scalar_select %p29, %s30, %s31
      %p35 = pneg %p29
      %p36 = scmp.eq.s32.totalorder %s20, 1
      %p37 = por %p35, %p36
      %p38 = scmp.ne.s32.totalorder %s30, %s33
      %p39 = scmp.eq.s32.totalorder %s20, 0
      %p40 = por %p38, %p39
      %p41 = scmp.ne.s32.totalorder %s30, %s33
      %p42 = scmp.eq.s32.totalorder %s25, 1
      %p43 = por %p41, %p42
      %p44 = scmp.ne.s32.totalorder %s33, %s34
      %p45 = scmp.eq.s32.totalorder %s25, 0
      %p46 = por %p44, %p45
      %p47 = scmp.ne.s32.totalorder %s33, %s34
      %p48 = scmp.eq.s32.totalorder %s26, 1
      %p49 = por %p47, %p48
      %p51 = scmp.ne.s32.totalorder %s34, %s50
      %p52 = scmp.eq.s32.totalorder %s26, 0
      %p53 = por %p51, %p52
      %s54 = ssub.s32 %s20, %s27
      %p55 = scmp.eq.s32.totalorder %s54, 0
      %s57 = sadd.s32 %s56, 1
      %s58 = scalar_select %p55, %s56, %s57
      %p61 = pneg %p55
      %p62 = scmp.eq.s32.totalorder %s20, 1
      %p63 = por %p61, %p62
      %p64 = scmp.ne.s32.totalorder %s56, %s59
      %p65 = scmp.eq.s32.totalorder %s20, 0
      %p66 = por %p64, %p65
      %p67 = scmp.ne.s32.totalorder %s56, %s59
      %p68 = scmp.eq.s32.totalorder %s25, 1
      %p69 = por %p67, %p68
      %p70 = scmp.ne.s32.totalorder %s59, %s60
      %p71 = scmp.eq.s32.totalorder %s25, 0
      %p72 = por %p70, %p71
      %p73 = scmp.ne.s32.totalorder %s59, %s60
      %p74 = scmp.eq.s32.totalorder %s26, 1
      %p75 = por %p73, %p74
      %p77 = scmp.ne.s32.totalorder %s60, %s76
      %p78 = scmp.eq.s32.totalorder %s26, 0
      %p79 = por %p77, %p78
      %s81 = sadd.s32 %s80, 1
      %p84 = scmp.eq.s32.totalorder %s20, 1
      %p85 = scmp.ne.s32.totalorder %s80, %s82
      %p86 = scmp.eq.s32.totalorder %s20, 0
      %p87 = por %p85, %p86
      %p88 = scmp.ne.s32.totalorder %s80, %s82
      %p89 = scmp.eq.s32.totalorder %s25, 1
      %p90 = por %p88, %p89
      %p91 = scmp.ne.s32.totalorder %s82, %s83
      %p92 = scmp.eq.s32.totalorder %s25, 0
      %p93 = por %p91, %p92
      %p94 = scmp.ne.s32.totalorder %s82, %s83
      %p95 = scmp.eq.s32.totalorder %s26, 1
      %p96 = por %p94, %p95
      %p98 = scmp.ne.s32.totalorder %s83, %s97
      %p99 = scmp.eq.s32.totalorder %s26, 0
      %p100 = por %p98, %p99
      %s102 = sadd.s32 %s101, 1
      %p105 = scmp.eq.s32.totalorder %s20, 1
      %p106 = scmp.ne.s32.totalorder %s101, %s103
      %p107 = scmp.eq.s32.totalorder %s20, 0
      %p108 = por %p106, %p107
      %p109 = scmp.ne.s32.totalorder %s101, %s103
      %p110 = scmp.eq.s32.totalorder %s25, 1
      %p111 = por %p109, %p110
      %p112 = scmp.ne.s32.totalorder %s103, %s104
      %p113 = scmp.eq.s32.totalorder %s25, 0
      %p114 = por %p112, %p113
      %p115 = scmp.ne.s32.totalorder %s103, %s104
      %p116 = scmp.eq.s32.totalorder %s26, 1
      %p117 = por %p115, %p116
      %p119 = scmp.ne.s32.totalorder %s104, %s118
      %p120 = scmp.eq.s32.totalorder %s26, 0
      %p121 = por %p119, %p120
      %s123 = sadd.s32 %s122, 1
      %p126 = scmp.eq.s32.totalorder %s20, 1
      %p127 = scmp.ne.s32.totalorder %s122, %s124
      %p128 = scmp.eq.s32.totalorder %s20, 0
      %p129 = por %p127, %p128
      %p130 = scmp.ne.s32.totalorder %s122, %s124
      %p131 = scmp.eq.s32.totalorder %s25, 1
      %p132 = por %p130, %p131
      %p133 = scmp.ne.s32.totalorder %s124, %s125
      %p134 = scmp.eq.s32.totalorder %s25, 0
      %p135 = por %p133, %p134
      %p136 = scmp.ne.s32.totalorder %s124, %s125
      %p137 = scmp.eq.s32.totalorder %s26, 1
      %p138 = por %p136, %p137
      %p140 = scmp.ne.s32.totalorder %s125, %s139
      %p141 = scmp.eq.s32.totalorder %s26, 0
      %p142 = por %p140, %p141
      %s144 = sadd.s32 %s143, 1
      %p147 = scmp.eq.s32.totalorder %s20, 1
      %p148 = scmp.ne.s32.totalorder %s143, %s145
      %p149 = scmp.eq.s32.totalorder %s20, 0
      %p150 = por %p148, %p149
      %p151 = scmp.ne.s32.totalorder %s143, %s145
      %p152 = scmp.eq.s32.totalorder %s25, 1
      %p153 = por %p151, %p152
      %p154 = scmp.ne.s32.totalorder %s145, %s146
      %p155 = scmp.eq.s32.totalorder %s25, 0
      %p156 = por %p154, %p155
      %p157 = scmp.ne.s32.totalorder %s145, %s146
      %p158 = scmp.eq.s32.totalorder %s26, 1
      %p159 = por %p157, %p158
      %p161 = scmp.ne.s32.totalorder %s146, %s160
      %p162 = scmp.eq.s32.totalorder %s26, 0
      %p163 = por %p161, %p162
      %s165 = sadd.s32 %s164, 1
      %p168 = scmp.eq.s32.totalorder %s20, 1
      %p169 = scmp.ne.s32.totalorder %s164, %s166
      %p170 = scmp.eq.s32.totalorder %s20, 0
      %p171 = por %p169, %p170
      %p172 = scmp.ne.s32.totalorder %s164, %s166
      %p173 = scmp.eq.s32.totalorder %s25, 1
      %p174 = por %p172, %p173
      %p175 = scmp.ne.s32.totalorder %s166, %s167
      %p176 = scmp.eq.s32.totalorder %s25, 0
      %p177 = por %p175, %p176
      %p178 = scmp.ne.s32.totalorder %s166, %s167
      %p179 = scmp.eq.s32.totalorder %s26, 1
      %p180 = por %p178, %p179
      %p182 = scmp.ne.s32.totalorder %s167, %s181
      %p183 = scmp.eq.s32.totalorder %s26, 0
      %p184 = por %p182, %p183
      %s186 = sadd.s32 %s185, 1
      %p189 = scmp.eq.s32.totalorder %s20, 1
      %p190 = scmp.ne.s32.totalorder %s185, %s187
      %p191 = scmp.eq.s32.totalorder %s20, 0
      %p192 = por %p190, %p191
      %p193 = scmp.ne.s32.totalorder %s185, %s187
      %p194 = scmp.eq.s32.totalorder %s25, 1
      %p195 = por %p193, %p194
      %p196 = scmp.ne.s32.totalorder %s187, %s188
      %p197 = scmp.eq.s32.totalorder %s25, 0
      %p198 = por %p196, %p197
      %p199 = scmp.ne.s32.totalorder %s187, %s188
      %p200 = scmp.eq.s32.totalorder %s26, 1
      %p201 = por %p199, %p200
      %p203 = scmp.ne.s32.totalorder %s188, %s202
      %p204 = scmp.eq.s32.totalorder %s26, 0
      %p205 = por %p203, %p204
      %s207 = sadd.s32 %s206, 1
      %p210 = scmp.eq.s32.totalorder %s20, 1
      %p211 = scmp.ne.s32.totalorder %s206, %s208
      %p212 = scmp.eq.s32.totalorder %s20, 0
      %p213 = por %p211, %p212
      %p214 = scmp.ne.s32.totalorder %s206, %s208
      %p215 = scmp.eq.s32.totalorder %s25, 1
      %p216 = por %p214, %p215
      %p217 = scmp.ne.s32.totalorder %s208, %s209
      %p218 = scmp.eq.s32.totalorder %s25, 0
      %p219 = por %p217, %p218
      %p220 = scmp.ne.s32.totalorder %s208, %s209
      %p221 = scmp.eq.s32.totalorder %s26, 1
      %p222 = por %p220, %p221
      %p224 = scmp.ne.s32.totalorder %s209, %s223
      %p225 = scmp.eq.s32.totalorder %s26, 0
      %p226 = por %p224, %p225
      %s228 = sadd.s32 %s227, 1
      %p231 = scmp.eq.s32.totalorder %s20, 1
      %p232 = scmp.ne.s32.totalorder %s227, %s229
      %p233 = scmp.eq.s32.totalorder %s20, 0
      %p234 = por %p232, %p233
      %p235 = scmp.ne.s32.totalorder %s227, %s229
      %p236 = scmp.eq.s32.totalorder %s25, 1
      %p237 = por %p235, %p236
      %p238 = scmp.ne.s32.totalorder %s229, %s230
      %p239 = scmp.eq.s32.totalorder %s25, 0
      %p240 = por %p238, %p239
      %p241 = scmp.ne.s32.totalorder %s229, %s230
      %p242 = scmp.eq.s32.totalorder %s26, 1
      %p243 = por %p241, %p242
      %p245 = scmp.ne.s32.totalorder %s230, %s244
      %p246 = scmp.eq.s32.totalorder %s26, 0
      %p247 = por %p245, %p246
      %s249 = sadd.s32 %s248, 1
      %p252 = scmp.eq.s32.totalorder %s20, 1
      %p253 = scmp.ne.s32.totalorder %s248, %s250
      %p254 = scmp.eq.s32.totalorder %s20, 0
      %p255 = por %p253, %p254
      %p256 = scmp.ne.s32.totalorder %s248, %s250
      %p257 = scmp.eq.s32.totalorder %s25, 1
      %p258 = por %p256, %p257
      %p259 = scmp.ne.s32.totalorder %s250, %s251
      %p260 = scmp.eq.s32.totalorder %s25, 0
      %p261 = por %p259, %p260
      %p262 = scmp.ne.s32.totalorder %s250, %s251
      %p263 = scmp.eq.s32.totalorder %s26, 1
      %p264 = por %p262, %p263
      %p266 = scmp.ne.s32.totalorder %s251, %s265
      %p267 = scmp.eq.s32.totalorder %s26, 0
      %p268 = por %p266, %p267
      %s269 = ssub.s32 %s20, %s27
      %p270 = scmp.eq.s32.totalorder %s269, 0
      %s272 = sadd.s32 %s271, 1
      %s273 = scalar_select %p270, %s271, %s272
      %p276 = pneg %p270
      %p277 = scmp.eq.s32.totalorder %s20, 1
      %p278 = por %p276, %p277
      %p279 = scmp.ne.s32.totalorder %s271, %s274
      %p280 = scmp.eq.s32.totalorder %s20, 0
      %p281 = por %p279, %p280
      %p282 = scmp.ne.s32.totalorder %s271, %s274
      %p283 = scmp.eq.s32.totalorder %s25, 1
      %p284 = por %p282, %p283
      %p285 = scmp.ne.s32.totalorder %s274, %s275
      %p286 = scmp.eq.s32.totalorder %s25, 0
      %p287 = por %p285, %p286
      %p288 = scmp.ne.s32.totalorder %s274, %s275
      %p289 = scmp.eq.s32.totalorder %s26, 1
      %p290 = por %p288, %p289
      %p292 = scmp.ne.s32.totalorder %s275, %s291
      %p293 = scmp.eq.s32.totalorder %s26, 0
      %p294 = por %p292, %p293
      %p295 = scmp.le.s32.totalorder 1, %s20
      %p296 = scmp.lt.s32.totalorder %s20, 3
      %p297 = pnand %p295, %p296
      %p298 = pneg %p297
      // Predicated region
      $region9: #{bert_classifier_forward.1} parent=5 // pred_check
        _
      $region10: #{bert_classifier_forward.1} parent=5 // pred_check_branch
        %300 = sbr.rel (%p297) target = $region12
      $region11: #{bert_classifier_forward.1} parent=5 // pred_region
        %s301 = ssub.s32 %s20, 1
        // Predicated region
        $region13: #{bert_classifier_forward.1} parent=11 // pred_check
          %p302 = pneg %p93
        $region14: #{bert_classifier_forward.1} parent=11 // pred_check_branch
          %304 = sbr.rel (%p302) target = $region16
        $region15: #{bert_classifier_forward.1} parent=11 // pred_region
          _
        $region16: #{bert_classifier_forward.1} parent=11 // pred_fallthru
          _
        // Predicated region
        $region17: #{bert_classifier_forward.1} parent=11 // pred_check
          %p305 = pneg %p114
        $region18: #{bert_classifier_forward.1} parent=11 // pred_check_branch
          %307 = sbr.rel (%p305) target = $region20
        $region19: #{bert_classifier_forward.1} parent=11 // pred_region
          _
        $region20: #{bert_classifier_forward.1} parent=11 // pred_fallthru
          _
        // Predicated region
        $region21: #{bert_classifier_forward.1} parent=11 // pred_check
          %p308 = pneg %p135
        $region22: #{bert_classifier_forward.1} parent=11 // pred_check_branch
          %310 = sbr.rel (%p308) target = $region24
        $region23: #{bert_classifier_forward.1} parent=11 // pred_region
          _
        $region24: #{bert_classifier_forward.1} parent=11 // pred_fallthru
          _
        // Predicated region
        $region25: #{bert_classifier_forward.1} parent=11 // pred_check
          %p311 = pneg %p156
        $region26: #{bert_classifier_forward.1} parent=11 // pred_check_branch
          %313 = sbr.rel (%p311) target = $region28
        $region27: #{bert_classifier_forward.1} parent=11 // pred_region
          _
        $region28: #{bert_classifier_forward.1} parent=11 // pred_fallthru
          _
        // Predicated region
        $region29: #{bert_classifier_forward.1} parent=11 // pred_check
          %p314 = pneg %p177
        $region30: #{bert_classifier_forward.1} parent=11 // pred_check_branch
          %316 = sbr.rel (%p314) target = $region32
        $region31: #{bert_classifier_forward.1} parent=11 // pred_region
          _
        $region32: #{bert_classifier_forward.1} parent=11 // pred_fallthru
          _
        // Predicated region
        $region33: #{bert_classifier_forward.1} parent=11 // pred_check
          %p317 = pneg %p198
        $region34: #{bert_classifier_forward.1} parent=11 // pred_check_branch
          %319 = sbr.rel (%p317) target = $region36
        $region35: #{bert_classifier_forward.1} parent=11 // pred_region
          _
        $region36: #{bert_classifier_forward.1} parent=11 // pred_fallthru
          _
        // Predicated region
        $region37: #{bert_classifier_forward.1} parent=11 // pred_check
          %p320 = pneg %p219
        $region38: #{bert_classifier_forward.1} parent=11 // pred_check_branch
          %322 = sbr.rel (%p320) target = $region40
        $region39: #{bert_classifier_forward.1} parent=11 // pred_region
          _
        $region40: #{bert_classifier_forward.1} parent=11 // pred_fallthru
          _
        // Predicated region
        $region41: #{bert_classifier_forward.1} parent=11 // pred_check
          %p323 = pneg %p240
        $region42: #{bert_classifier_forward.1} parent=11 // pred_check_branch
          %325 = sbr.rel (%p323) target = $region44
        $region43: #{bert_classifier_forward.1} parent=11 // pred_region
          _
        $region44: #{bert_classifier_forward.1} parent=11 // pred_fallthru
          _
        // Predicated region
        $region45: #{bert_classifier_forward.1} parent=11 // pred_check
          %p326 = pneg %p261
        $region46: #{bert_classifier_forward.1} parent=11 // pred_check_branch
          %328 = sbr.rel (%p326) target = $region48
        $region47: #{bert_classifier_forward.1} parent=11 // pred_region
          _
        $region48: #{bert_classifier_forward.1} parent=11 // pred_fallthru
          _
      $region12: #{bert_classifier_forward.1} parent=5 // pred_fallthru
        _
      %p329 = scmp.lt.s32.totalorder %s20, 2
      // Predicated region
      $region49: #{bert_classifier_forward.1} parent=5 // pred_check
        %p330 = pneg %p329
      $region50: #{bert_classifier_forward.1} parent=5 // pred_check_branch
        %332 = sbr.rel (%p330) target = $region52
      $region51: #{bert_classifier_forward.1} parent=5 // pred_region
        // Predicated region
        $region53: #{bert_classifier_forward.1} parent=51 // pred_check
          %p333 = pneg %p40
        $region54: #{bert_classifier_forward.1} parent=51 // pred_check_branch
          %335 = sbr.rel (%p333) target = $region56
        $region55: #{bert_classifier_forward.1} parent=51 // pred_region
          %p336 = scmp.lt.s32.totalorder %s20, 1
          %s337 = scalar_select %p336, %s20, 1
          %s338 = smul.addr %s337, 4
          %s339 = scalar_lea.vmem %s0, %s338
        $region56: #{bert_classifier_forward.1} parent=51 // pred_fallthru
          _
        // Predicated region
        $region57: #{bert_classifier_forward.1} parent=51 // pred_check
          %p340 = pneg %p66
        $region58: #{bert_classifier_forward.1} parent=51 // pred_check_branch
          %342 = sbr.rel (%p340) target = $region60
        $region59: #{bert_classifier_forward.1} parent=51 // pred_region
          %p343 = scmp.lt.s32.totalorder %s20, 1
          %s344 = scalar_select %p343, %s20, 1
          %s345 = scalar_lea.vmem %s1, %s344
        $region60: #{bert_classifier_forward.1} parent=51 // pred_fallthru
          _
      $region52: #{bert_classifier_forward.1} parent=5 // pred_fallthru
        _
      %p346 = scmp.le.s32.totalorder 1, %s20
      %p347 = scmp.lt.s32.totalorder %s20, 3
      %p348 = pnand %p346, %p347
      %p349 = pneg %p348
      // Predicated region
      $region61: #{bert_classifier_forward.1} parent=5 // pred_check
        _
      $region62: #{bert_classifier_forward.1} parent=5 // pred_check_branch
        %351 = sbr.rel (%p348) target = $region64
      $region63: #{bert_classifier_forward.1} parent=5 // pred_region
        %s352 = ssub.s32 %s20, 1
        %p353 = scmp.lt.s32.totalorder %s25, 1
        %s354 = scalar_select %p353, %s25, 1
        %s355 = smul.addr %s354, 4
        %s356 = scalar_lea.vmem %s0, %s355
        %p357 = pneg %p46
        %p358 = pneg %p43
        %p359 = scmp.lt.s32.totalorder %s25, 1
        %s360 = scalar_select %p359, %s25, 1
        %s361 = scalar_lea.vmem %s1, %s360
        %p362 = pneg %p72
        %p363 = pneg %p69
        %p364 = pneg %p93
        %p365 = pneg %p90
        %p366 = pneg %p114
        %p367 = pneg %p111
        %p368 = pneg %p135
        %p369 = pneg %p132
        %p370 = pneg %p156
        %p371 = pneg %p153
        %p372 = pneg %p177
        %p373 = pneg %p174
        %p374 = pneg %p198
        %p375 = pneg %p195
        %p376 = pneg %p219
        %p377 = pneg %p216
        %p378 = pneg %p240
        %p379 = pneg %p237
        %p380 = pneg %p261
        %p381 = pneg %p258
        %p382 = pneg %p287
        %p383 = pneg %p284
        %s384 = sand.u32 %s274, 1
        %s385 = scalar_lea.sflag [#allocation3], %s384
        %s386 = sand.u32 %s274, 1
        %s387 = scalar_lea.vmem [#allocation2], %s386
        %p388 = scmp.lt.s32.totalorder %s25, 1
        %s389 = scalar_select %p388, %s25, 1
        %s390 = smul.addr %s389, 4
        %s391 = scalar_lea.vmem %s0, %s390
        %p392 = scmp.lt.s32.totalorder %s25, 1
        %s393 = scalar_select %p392, %s25, 1
        %s394 = scalar_lea.vmem %s1, %s393
        %v396 = vld [vmem:[%s8] sm:$0xf]
        %v397 = vld [vmem:[%s391] sm:$0xf]
        %v398 = vunpack.c.l.bf16 %v397
        %vm399 = vcmask 261120
        %v400 = vsel %vm399, %v398, 0.0
        %401 = vadd.xlane.f32.xlu0 %v400
        %v402 = vpop.xlane.xlu0 %401
        %v403 = vmul.f32 %v402, 0.03125
        %v404 = vmul.f32 %v398, %v398
        %v405 = vsel %vm399, %v404, 0.0
        %406 = vadd.xlane.f32.xlu0 %v405
        %v407 = vpop.xlane.xlu0 %406
        %v408 = vmul.f32 %v407, 0.03125
        %v409 = vmul.f32 %v403, %v403
        %v410 = vsub.f32 %v408, %v409
        %v411 = vsub.f32 %v398, %v403
        %v412 = vadd.f32 %v410, 1e-12
        %v413 = vrsqrt.pop %v412
        %v414 = vmul.f32 %v411, %v413
        %v415 = vlaneseq
        %v416 = vshrl.u32 %v415, 7
        %v417 = vsub.s32 0, %v416
        %v418 = vrot.slane %v396, %v417
        %v419 = vmul.f32 %v414, %v418
        %v420 = vlaneseq
        %v421 = vshrl.u32 %v420, 7
        %v422 = vsub.s32 1, %v421
        %v423 = vrot.slane %v396, %v422
        %v424 = vadd.f32 %v419, %v423
        %v425 = vld [vmem:[%s394] sm:$0x1]
        %v426 = vld [vmem:[%s7] sm:$0xff]
        %v427 = vpack.c.bf16 %v424, %v424
        %v428 = vld [vmem:[%s2] sm:$0xf]
        %v429 = vld [vmem:[%s2 + $0x4] sm:$0xf]
        %v430 = vld [vmem:[%s2 + $0x8] sm:$0xf]
        %v431 = vld [vmem:[%s2 + $0xc] sm:$0xf]
        %v432 = vld [vmem:[%s2 + $0x10] sm:$0xf]
        %v433 = vld [vmem:[%s2 + $0x14] sm:$0xf]
        %v434 = vld [vmem:[%s2 + $0x18] sm:$0xf]
        %v435 = vld [vmem:[%s2 + $0x1c] sm:$0xf]
        %v436 = vld [vmem:[%s2 + $0x20] sm:$0xf]
        %v437 = vld [vmem:[%s2 + $0x24] sm:$0xf]
        %v438 = vld [vmem:[%s2 + $0x28] sm:$0xf]
        %v439 = vld [vmem:[%s2 + $0x2c] sm:$0xf]
        %v440 = vld [vmem:[%s2 + $0x30] sm:$0xf]
        %v441 = vld [vmem:[%s2 + $0x34] sm:$0xf]
        %v442 = vld [vmem:[%s2 + $0x38] sm:$0xf]
        %v443 = vld [vmem:[%s2 + $0x3c] sm:$0xf]
        %v444 = vld [vmem:[%s2 + $0x40] sm:$0xf]
        %v445 = vld [vmem:[%s2 + $0x44] sm:$0xf]
        %v446 = vld [vmem:[%s2 + $0x48] sm:$0xf]
        %v447 = vld [vmem:[%s2 + $0x4c] sm:$0xf]
        %v448 = vld [vmem:[%s2 + $0x50] sm:$0xf]
        %v449 = vld [vmem:[%s2 + $0x54] sm:$0xf]
        %v450 = vld [vmem:[%s2 + $0x58] sm:$0xf]
        %v451 = vld [vmem:[%s2 + $0x5c] sm:$0xf]
        %v452 = vld [vmem:[%s2 + $0x60] sm:$0xf]
        %v453 = vld [vmem:[%s2 + $0x64] sm:$0xf]
        %v454 = vld [vmem:[%s2 + $0x68] sm:$0xf]
        %v455 = vld [vmem:[%s2 + $0x6c] sm:$0xf]
        %v456 = vld [vmem:[%s2 + $0x70] sm:$0xf]
        %v457 = vld [vmem:[%s2 + $0x74] sm:$0xf]
        %v458 = vld [vmem:[%s2 + $0x78] sm:$0xf]
        %v459 = vld [vmem:[%s2 + $0x7c] sm:$0xf]
        %v460 = vld [vmem:[%s2 + $0x80] sm:$0xf]
        %v461 = vld [vmem:[%s2 + $0x84] sm:$0xf]
        %v462 = vld [vmem:[%s2 + $0x88] sm:$0xf]
        %v463 = vld [vmem:[%s2 + $0x8c] sm:$0xf]
        %v464 = vld [vmem:[%s2 + $0x90] sm:$0xf]
        %v465 = vld [vmem:[%s2 + $0x94] sm:$0xf]
        %v466 = vld [vmem:[%s2 + $0x98] sm:$0xf]
        %v467 = vld [vmem:[%s2 + $0x9c] sm:$0xf]
        %v468 = vld [vmem:[%s2 + $0xa0] sm:$0xf]
        %v469 = vld [vmem:[%s2 + $0xa4] sm:$0xf]
        %v470 = vld [vmem:[%s2 + $0xa8] sm:$0xf]
        %v471 = vld [vmem:[%s2 + $0xac] sm:$0xf]
        %v472 = vld [vmem:[%s2 + $0xb0] sm:$0xf]
        %v473 = vld [vmem:[%s2 + $0xb4] sm:$0xf]
        %v474 = vld [vmem:[%s2 + $0xb8] sm:$0xf]
        %v475 = vld [vmem:[%s2 + $0xbc] sm:$0xf]
        %v476 = vld [vmem:[%s3] sm:$0x1]
        %v477 = vld [vmem:[%s3 + $0x1] sm:$0x1]
        %v478 = vld [vmem:[%s3 + $0x2] sm:$0x1]
        %v479 = vld [vmem:[%s3 + $0x3] sm:$0x1]
        %v480 = vld [vmem:[%s3 + $0x4] sm:$0x1]
        %v481 = vld [vmem:[%s3 + $0x5] sm:$0x1]
        %v482 = vld [vmem:[%s3 + $0x6] sm:$0x1]
        %v483 = vld [vmem:[%s3 + $0x7] sm:$0x1]
        %v484 = vld [vmem:[%s3 + $0x8] sm:$0x1]
        %v485 = vld [vmem:[%s3 + $0x9] sm:$0x1]
        %v486 = vld [vmem:[%s3 + $0xa] sm:$0x1]
        %v487 = vld [vmem:[%s3 + $0xb] sm:$0x1]
        %v492 = vlaneseq
        %v493 = vshrl.u32 %v492, 7
        %v494 = vsub.s32 0, %v493
        %v495 = vrot.slane %v476, %v494
        %v496 = vlaneseq
        %v497 = vshrl.u32 %v496, 7
        %v498 = vsub.s32 0, %v497
        %v499 = vrot.slane %v477, %v498
        %v500 = vlaneseq
        %v501 = vshrl.u32 %v500, 7
        %v502 = vsub.s32 0, %v501
        %v503 = vrot.slane %v478, %v502
        %v504 = vlaneseq
        %v505 = vshrl.u32 %v504, 7
        %v506 = vsub.s32 0, %v505
        %v507 = vrot.slane %v479, %v506
        %v516 = vunpack.c.l.b16 %v428
        %v517 = vunpack.c.l.b16 %v429
        %v518 = vunpack.c.l.b16 %v430
        %v519 = vunpack.c.l.b16 %v431
        %v520 = vpack.c.b16 %v517, %v516
        %v521 = vpack.c.b16 %v519, %v518
        %v525 = vsel %vm399, %v427, 0
        %527 = vmatprep.subr.bf16.mxu0 0
        %528 = vmatpush1.bf16.msra.mxu0 %v520
        %529 = vmatprep.subr.bf16.mxu0 0
        %530 = vmatpush1.bf16.msra.mxu0 %v521
        %531 = vmatprep.subr.bf16.mxu0 0
        %532 = vmatpush1.bf16.msra.mxu0 0
        %533 = vmatprep.subr.bf16.mxu0 0
        %534 = vmatpush1.bf16.msra.mxu0 0
        %535 = vmatprep.subr.bf16.mxu0 0
        %536 = vmatpush1.bf16.msra.mxu0 0
        %537 = vmatprep.subr.bf16.mxu0 0
        %538 = vmatpush1.bf16.msra.mxu0 0
        %539 = vmatprep.subr.bf16.mxu0 0
        %540 = vmatpush1.bf16.msra.mxu0 0
        %541 = vmatprep.subr.bf16.mxu0 0
        %542 = vmatpush1.bf16.msra.mxu0 0
        %543 = vmatprep.subr.bf16.mxu0 0
        %544 = vmatpush1.bf16.msra.mxu0 0
        %545 = vmatprep.subr.bf16.mxu0 0
        %546 = vmatpush1.bf16.msra.mxu0 0
        %547 = vmatprep.subr.bf16.mxu0 0
        %548 = vmatpush1.bf16.msra.mxu0 0
        %549 = vmatprep.subr.bf16.mxu0 0
        %550 = vmatpush1.bf16.msra.mxu0 0
        %551 = vmatprep.subr.bf16.mxu0 0
        %552 = vmatpush1.bf16.msra.mxu0 0
        %553 = vmatprep.subr.bf16.mxu0 0
        %554 = vmatpush1.bf16.msra.mxu0 0
        %555 = vmatprep.subr.bf16.mxu0 0
        %556 = vmatpush1.bf16.msra.mxu0 0
        %557 = vmatprep.subr.bf16.mxu0 0
        %558 = vmatpush1.bf16.msra.mxu0 0
        %559 = vmatprep.mubr.bf16.mxu0 0
        %560 = vmatmul.mubr.bf16.gmra.mrb[0].mxu0 %v525
        %v561 = vpop.f32.mrb[0].mxu0
        %v562 = vadd.f32 %v495, %v561
        %v563 = vpop.f32.mrb[0].mxu0
        %v564 = vpop.f32.mrb[0].mxu0
        %v565 = vpop.f32.mrb[0].mxu0
        %566 = vdwg.mxu0
        %v571 = vunpack.c.l.b16 %v432
        %v572 = vunpack.c.l.b16 %v433
        %v573 = vunpack.c.l.b16 %v434
        %v574 = vunpack.c.l.b16 %v435
        %v575 = vpack.c.b16 %v572, %v571
        %v576 = vpack.c.b16 %v574, %v573
        %579 = vmatprep.subr.bf16.mxu0 0
        %580 = vmatpush1.bf16.msra.mxu0 %v575
        %581 = vmatprep.subr.bf16.mxu0 0
        %582 = vmatpush1.bf16.msra.mxu0 %v576
        %583 = vmatprep.subr.bf16.mxu0 0
        %584 = vmatpush1.bf16.msra.mxu0 0
        %585 = vmatprep.subr.bf16.mxu0 0
        %586 = vmatpush1.bf16.msra.mxu0 0
        %587 = vmatprep.subr.bf16.mxu0 0
        %588 = vmatpush1.bf16.msra.mxu0 0
        %589 = vmatprep.subr.bf16.mxu0 0
        %590 = vmatpush1.bf16.msra.mxu0 0
        %591 = vmatprep.subr.bf16.mxu0 0
        %592 = vmatpush1.bf16.msra.mxu0 0
        %593 = vmatprep.subr.bf16.mxu0 0
        %594 = vmatpush1.bf16.msra.mxu0 0
        %595 = vmatprep.subr.bf16.mxu0 0
        %596 = vmatpush1.bf16.msra.mxu0 0
        %597 = vmatprep.subr.bf16.mxu0 0
        %598 = vmatpush1.bf16.msra.mxu0 0
        %599 = vmatprep.subr.bf16.mxu0 0
        %600 = vmatpush1.bf16.msra.mxu0 0
        %601 = vmatprep.subr.bf16.mxu0 0
        %602 = vmatpush1.bf16.msra.mxu0 0
        %603 = vmatprep.subr.bf16.mxu0 0
        %604 = vmatpush1.bf16.msra.mxu0 0
        %605 = vmatprep.subr.bf16.mxu0 0
        %606 = vmatpush1.bf16.msra.mxu0 0
        %607 = vmatprep.subr.bf16.mxu0 0
        %608 = vmatpush1.bf16.msra.mxu0 0
        %609 = vmatprep.subr.bf16.mxu0 0
        %610 = vmatpush1.bf16.msra.mxu0 0
        %611 = vmatprep.mubr.bf16.mxu0 0
        %612 = vmatmul.mubr.bf16.gmra.mrb[0].mxu0 %v525
        %v613 = vpop.f32.mrb[0].mxu0
        %v614 = vadd.f32 %v499, %v613
        %v615 = vpop.f32.mrb[0].mxu0
        %v616 = vpop.f32.mrb[0].mxu0
        %v617 = vpop.f32.mrb[0].mxu0
        %618 = vdwg.mxu0
        %v623 = vunpack.c.l.b16 %v436
        %v624 = vunpack.c.l.b16 %v437
        %v625 = vunpack.c.l.b16 %v438
        %v626 = vunpack.c.l.b16 %v439
        %v627 = vpack.c.b16 %v624, %v623
        %v628 = vpack.c.b16 %v626, %v625
        %631 = vmatprep.subr.bf16.mxu0 0
        %632 = vmatpush1.bf16.msra.mxu0 %v627
        %633 = vmatprep.subr.bf16.mxu0 0
        %634 = vmatpush1.bf16.msra.mxu0 %v628
        %635 = vmatprep.subr.bf16.mxu0 0
        %636 = vmatpush1.bf16.msra.mxu0 0
        %637 = vmatprep.subr.bf16.mxu0 0
        %638 = vmatpush1.bf16.msra.mxu0 0
        %639 = vmatprep.subr.bf16.mxu0 0
        %640 = vmatpush1.bf16.msra.mxu0 0
        %641 = vmatprep.subr.bf16.mxu0 0
        %642 = vmatpush1.bf16.msra.mxu0 0
        %643 = vmatprep.subr.bf16.mxu0 0
        %644 = vmatpush1.bf16.msra.mxu0 0
        %645 = vmatprep.subr.bf16.mxu0 0
        %646 = vmatpush1.bf16.msra.mxu0 0
        %647 = vmatprep.subr.bf16.mxu0 0
        %648 = vmatpush1.bf16.msra.mxu0 0
        %649 = vmatprep.subr.bf16.mxu0 0
        %650 = vmatpush1.bf16.msra.mxu0 0
        %651 = vmatprep.subr.bf16.mxu0 0
        %652 = vmatpush1.bf16.msra.mxu0 0
        %653 = vmatprep.subr.bf16.mxu0 0
        %654 = vmatpush1.bf16.msra.mxu0 0
        %655 = vmatprep.subr.bf16.mxu0 0
        %656 = vmatpush1.bf16.msra.mxu0 0
        %657 = vmatprep.subr.bf16.mxu0 0
        %658 = vmatpush1.bf16.msra.mxu0 0
        %659 = vmatprep.subr.bf16.mxu0 0
        %660 = vmatpush1.bf16.msra.mxu0 0
        %661 = vmatprep.subr.bf16.mxu0 0
        %662 = vmatpush1.bf16.msra.mxu0 0
        %663 = vmatprep.mubr.bf16.mxu0 0
        %664 = vmatmul.mubr.bf16.gmra.mrb[0].mxu0 %v525
        %v665 = vpop.f32.mrb[0].mxu0
        %v666 = vadd.f32 %v503, %v665
        %v667 = vpop.f32.mrb[0].mxu0
        %v668 = vpop.f32.mrb[0].mxu0
        %v669 = vpop.f32.mrb[0].mxu0
        %670 = vdwg.mxu0
        %v675 = vunpack.c.l.b16 %v440
        %v676 = vunpack.c.l.b16 %v441
        %v677 = vunpack.c.l.b16 %v442
        %v678 = vunpack.c.l.b16 %v443
        %v679 = vpack.c.b16 %v676, %v675
        %v680 = vpack.c.b16 %v678, %v677
        %683 = vmatprep.subr.bf16.mxu0 0
        %684 = vmatpush1.bf16.msra.mxu0 %v679
        %685 = vmatprep.subr.bf16.mxu0 0
        %686 = vmatpush1.bf16.msra.mxu0 %v680
        %687 = vmatprep.subr.bf16.mxu0 0
        %688 = vmatpush1.bf16.msra.mxu0 0
        %689 = vmatprep.subr.bf16.mxu0 0
        %690 = vmatpush1.bf16.msra.mxu0 0
        %691 = vmatprep.subr.bf16.mxu0 0
        %692 = vmatpush1.bf16.msra.mxu0 0
        %693 = vmatprep.subr.bf16.mxu0 0
        %694 = vmatpush1.bf16.msra.mxu0 0
        %695 = vmatprep.subr.bf16.mxu0 0
        %696 = vmatpush1.bf16.msra.mxu0 0
        %697 = vmatprep.subr.bf16.mxu0 0
        %698 = vmatpush1.bf16.msra.mxu0 0
        %699 = vmatprep.subr.bf16.mxu0 0
        %700 = vmatpush1.bf16.msra.mxu0 0
        %701 = vmatprep.subr.bf16.mxu0 0
        %702 = vmatpush1.bf16.msra.mxu0 0
        %703 = vmatprep.subr.bf16.mxu0 0
        %704 = vmatpush1.bf16.msra.mxu0 0
        %705 = vmatprep.subr.bf16.mxu0 0
        %706 = vmatpush1.bf16.msra.mxu0 0
        %707 = vmatprep.subr.bf16.mxu0 0
        %708 = vmatpush1.bf16.msra.mxu0 0
        %709 = vmatprep.subr.bf16.mxu0 0
        %710 = vmatpush1.bf16.msra.mxu0 0
        %711 = vmatprep.subr.bf16.mxu0 0
        %712 = vmatpush1.bf16.msra.mxu0 0
        %713 = vmatprep.subr.bf16.mxu0 0
        %714 = vmatpush1.bf16.msra.mxu0 0
        %715 = vmatprep.mubr.bf16.mxu0 0
        %716 = vmatmul.mubr.bf16.gmra.mrb[0].mxu0 %v525
        %v717 = vpop.f32.mrb[0].mxu0
        %v718 = vadd.f32 %v507, %v717
        %v719 = vpop.f32.mrb[0].mxu0
        %v720 = vpop.f32.mrb[0].mxu0
        %v721 = vpop.f32.mrb[0].mxu0
        %722 = vdwg.mxu0
        %v727 = vlaneseq
        %v728 = vshrl.u32 %v727, 7
        %v729 = vsub.s32 0, %v728
        %v730 = vrot.slane %v480, %v729
        %v731 = vlaneseq
        %v732 = vshrl.u32 %v731, 7
        %v733 = vsub.s32 0, %v732
        %v734 = vrot.slane %v481, %v733
        %v735 = vlaneseq
        %v736 = vshrl.u32 %v735, 7
        %v737 = vsub.s32 0, %v736
        %v738 = vrot.slane %v482, %v737
        %v739 = vlaneseq
        %v740 = vshrl.u32 %v739, 7
        %v741 = vsub.s32 0, %v740
        %v742 = vrot.slane %v483, %v741
        %v751 = vunpack.c.l.b16 %v444
        %v752 = vunpack.c.l.b16 %v445
        %v753 = vunpack.c.l.b16 %v446
        %v754 = vunpack.c.l.b16 %v447
        %v755 = vpack.c.b16 %v752, %v751
        %v756 = vpack.c.b16 %v754, %v753
        %759 = vmatprep.subr.bf16.mxu0 0
        %760 = vmatpush1.bf16.msra.mxu0 %v755
        %761 = vmatprep.subr.bf16.mxu0 0
        %762 = vmatpush1.bf16.msra.mxu0 %v756
        %763 = vmatprep.subr.bf16.mxu0 0
        %764 = vmatpush1.bf16.msra.mxu0 0
        %765 = vmatprep.subr.bf16.mxu0 0
        %766 = vmatpush1.bf16.msra.mxu0 0
        %767 = vmatprep.subr.bf16.mxu0 0
        %768 = vmatpush1.bf16.msra.mxu0 0
        %769 = vmatprep.subr.bf16.mxu0 0
        %770 = vmatpush1.bf16.msra.mxu0 0
        %771 = vmatprep.subr.bf16.mxu0 0
        %772 = vmatpush1.bf16.msra.mxu0 0
        %773 = vmatprep.subr.bf16.mxu0 0
        %774 = vmatpush1.bf16.msra.mxu0 0
        %775 = vmatprep.subr.bf16.mxu0 0
        %776 = vmatpush1.bf16.msra.mxu0 0
        %777 = vmatprep.subr.bf16.mxu0 0
        %778 = vmatpush1.bf16.msra.mxu0 0
        %779 = vmatprep.subr.bf16.mxu0 0
        %780 = vmatpush1.bf16.msra.mxu0 0
        %781 = vmatprep.subr.bf16.mxu0 0
        %782 = vmatpush1.bf16.msra.mxu0 0
        %783 = vmatprep.subr.bf16.mxu0 0
        %784 = vmatpush1.bf16.msra.mxu0 0
        %785 = vmatprep.subr.bf16.mxu0 0
        %786 = vmatpush1.bf16.msra.mxu0 0
        %787 = vmatprep.subr.bf16.mxu0 0
        %788 = vmatpush1.bf16.msra.mxu0 0
        %789 = vmatprep.subr.bf16.mxu0 0
        %790 = vmatpush1.bf16.msra.mxu0 0
        %791 = vmatprep.mubr.bf16.mxu0 0
        %792 = vmatmul.mubr.bf16.gmra.mrb[0].mxu0 %v525
        %v793 = vpop.f32.mrb[0].mxu0
        %v794 = vadd.f32 %v730, %v793
        %v795 = vpop.f32.mrb[0].mxu0
        %v796 = vpop.f32.mrb[0].mxu0
        %v797 = vpop.f32.mrb[0].mxu0
        %798 = vdwg.mxu0
        %v803 = vunpack.c.l.b16 %v448
        %v804 = vunpack.c.l.b16 %v449
        %v805 = vunpack.c.l.b16 %v450
        %v806 = vunpack.c.l.b16 %v451
        %v807 = vpack.c.b16 %v804, %v803
        %v808 = vpack.c.b16 %v806, %v805
        %811 = vmatprep.subr.bf16.mxu0 0
        %812 = vmatpush1.bf16.msra.mxu0 %v807
        %813 = vmatprep.subr.bf16.mxu0 0
        %814 = vmatpush1.bf16.msra.mxu0 %v808
        %815 = vmatprep.subr.bf16.mxu0 0
        %816 = vmatpush1.bf16.msra.mxu0 0
        %817 = vmatprep.subr.bf16.mxu0 0
        %818 = vmatpush1.bf16.msra.mxu0 0
        %819 = vmatprep.subr.bf16.mxu0 0
        %820 = vmatpush1.bf16.msra.mxu0 0
        %821 = vmatprep.subr.bf16.mxu0 0
        %822 = vmatpush1.bf16.msra.mxu0 0
        %823 = vmatprep.subr.bf16.mxu0 0
        %824 = vmatpush1.bf16.msra.mxu0 0
        %825 = vmatprep.subr.bf16.mxu0 0
        %826 = vmatpush1.bf16.msra.mxu0 0
        %827 = vmatprep.subr.bf16.mxu0 0
        %828 = vmatpush1.bf16.msra.mxu0 0
        %829 = vmatprep.subr.bf16.mxu0 0
        %830 = vmatpush1.bf16.msra.mxu0 0
        %831 = vmatprep.subr.bf16.mxu0 0
        %832 = vmatpush1.bf16.msra.mxu0 0
        %833 = vmatprep.subr.bf16.mxu0 0
        %834 = vmatpush1.bf16.msra.mxu0 0
        %835 = vmatprep.subr.bf16.mxu0 0
        %836 = vmatpush1.bf16.msra.mxu0 0
        %837 = vmatprep.subr.bf16.mxu0 0
        %838 = vmatpush1.bf16.msra.mxu0 0
        %839 = vmatprep.subr.bf16.mxu0 0
        %840 = vmatpush1.bf16.msra.mxu0 0
        %841 = vmatprep.subr.bf16.mxu0 0
        %842 = vmatpush1.bf16.msra.mxu0 0
        %843 = vmatprep.mubr.bf16.mxu0 0
        %844 = vmatmul.mubr.bf16.gmra.mrb[0].mxu0 %v525
        %v845 = vpop.f32.mrb[0].mxu0
        %v846 = vadd.f32 %v734, %v845
        %v847 = vpop.f32.mrb[0].mxu0
        %v848 = vpop.f32.mrb[0].mxu0
        %v849 = vpop.f32.mrb[0].mxu0
        %850 = vdwg.mxu0
        %v855 = vunpack.c.l.b16 %v452
        %v856 = vunpack.c.l.b16 %v453
        %v857 = vunpack.c.l.b16 %v454
        %v858 = vunpack.c.l.b16 %v455
        %v859 = vpack.c.b16 %v856, %v855
        %v860 = vpack.c.b16 %v858, %v857
        %863 = vmatprep.subr.bf16.mxu0 0
        %864 = vmatpush1.bf16.msra.mxu0 %v859
        %865 = vmatprep.subr.bf16.mxu0 0
        %866 = vmatpush1.bf16.msra.mxu0 %v860
        %867 = vmatprep.subr.bf16.mxu0 0
        %868 = vmatpush1.bf16.msra.mxu0 0
        %869 = vmatprep.subr.bf16.mxu0 0
        %870 = vmatpush1.bf16.msra.mxu0 0
        %871 = vmatprep.subr.bf16.mxu0 0
        %872 = vmatpush1.bf16.msra.mxu0 0
        %873 = vmatprep.subr.bf16.mxu0 0
        %874 = vmatpush1.bf16.msra.mxu0 0
        %875 = vmatprep.subr.bf16.mxu0 0
        %876 = vmatpush1.bf16.msra.mxu0 0
        %877 = vmatprep.subr.bf16.mxu0 0
        %878 = vmatpush1.bf16.msra.mxu0 0
        %879 = vmatprep.subr.bf16.mxu0 0
        %880 = vmatpush1.bf16.msra.mxu0 0
        %881 = vmatprep.subr.bf16.mxu0 0
        %882 = vmatpush1.bf16.msra.mxu0 0
        %883 = vmatprep.subr.bf16.mxu0 0
        %884 = vmatpush1.bf16.msra.mxu0 0
        %885 = vmatprep.subr.bf16.mxu0 0
        %886 = vmatpush1.bf16.msra.mxu0 0
        %887 = vmatprep.subr.bf16.mxu0 0
        %888 = vmatpush1.bf16.msra.mxu0 0
        %889 = vmatprep.subr.bf16.mxu0 0
        %890 = vmatpush1.bf16.msra.mxu0 0
        %891 = vmatprep.subr.bf16.mxu0 0
        %892 = vmatpush1.bf16.msra.mxu0 0
        %893 = vmatprep.subr.bf16.mxu0 0
        %894 = vmatpush1.bf16.msra.mxu0 0
        %895 = vmatprep.mubr.bf16.mxu0 0
        %896 = vmatmul.mubr.bf16.gmra.mrb[0].mxu0 %v525
        %v897 = vpop.f32.mrb[0].mxu0
        %v898 = vadd.f32 %v738, %v897
        %v899 = vpop.f32.mrb[0].mxu0
        %v900 = vpop.f32.mrb[0].mxu0
        %v901 = vpop.f32.mrb[0].mxu0
        %902 = vdwg.mxu0
        %v907 = vunpack.c.l.b16 %v456
        %v908 = vunpack.c.l.b16 %v457
        %v909 = vunpack.c.l.b16 %v458
        %v910 = vunpack.c.l.b16 %v459
        %v911 = vpack.c.b16 %v908, %v907
        %v912 = vpack.c.b16 %v910, %v909
        %915 = vmatprep.subr.bf16.mxu0 0
        %916 = vmatpush1.bf16.msra.mxu0 %v911
        %917 = vmatprep.subr.bf16.mxu0 0
        %918 = vmatpush1.bf16.msra.mxu0 %v912
        %919 = vmatprep.subr.bf16.mxu0 0
        %920 = vmatpush1.bf16.msra.mxu0 0
        %921 = vmatprep.subr.bf16.mxu0 0
        %922 = vmatpush1.bf16.msra.mxu0 0
        %923 = vmatprep.subr.bf16.mxu0 0
        %924 = vmatpush1.bf16.msra.mxu0 0
        %925 = vmatprep.subr.bf16.mxu0 0
        %926 = vmatpush1.bf16.msra.mxu0 0
        %927 = vmatprep.subr.bf16.mxu0 0
        %928 = vmatpush1.bf16.msra.mxu0 0
        %929 = vmatprep.subr.bf16.mxu0 0
        %930 = vmatpush1.bf16.msra.mxu0 0
        %931 = vmatprep.subr.bf16.mxu0 0
        %932 = vmatpush1.bf16.msra.mxu0 0
        %933 = vmatprep.subr.bf16.mxu0 0
        %934 = vmatpush1.bf16.msra.mxu0 0
        %935 = vmatprep.subr.bf16.mxu0 0
        %936 = vmatpush1.bf16.msra.mxu0 0
        %937 = vmatprep.subr.bf16.mxu0 0
        %938 = vmatpush1.bf16.msra.mxu0 0
        %939 = vmatprep.subr.bf16.mxu0 0
        %940 = vmatpush1.bf16.msra.mxu0 0
        %941 = vmatprep.subr.bf16.mxu0 0
        %942 = vmatpush1.bf16.msra.mxu0 0
        %943 = vmatprep.subr.bf16.mxu0 0
        %944 = vmatpush1.bf16.msra.mxu0 0
        %945 = vmatprep.subr.bf16.mxu0 0
        %946 = vmatpush1.bf16.msra.mxu0 0
        %947 = vmatprep.mubr.bf16.mxu0 0
        %948 = vmatmul.mubr.bf16.gmra.mrb[0].mxu0 %v525
        %v949 = vpop.f32.mrb[0].mxu0
        %v950 = vadd.f32 %v742, %v949
        %v951 = vpop.f32.mrb[0].mxu0
        %v952 = vpop.f32.mrb[0].mxu0
        %v953 = vpop.f32.mrb[0].mxu0
        %954 = vdwg.mxu0
        %v959 = vlaneseq
        %v960 = vshrl.u32 %v959, 7
        %v961 = vsub.s32 0, %v960
        %v962 = vrot.slane %v484, %v961
        %v963 = vlaneseq
        %v964 = vshrl.u32 %v963, 7
        %v965 = vsub.s32 0, %v964
        %v966 = vrot.slane %v485, %v965
        %v967 = vlaneseq
        %v968 = vshrl.u32 %v967, 7
        %v969 = vsub.s32 0, %v968
        %v970 = vrot.slane %v486, %v969
        %v971 = vlaneseq
        %v972 = vshrl.u32 %v971, 7
        %v973 = vsub.s32 0, %v972
        %v974 = vrot.slane %v487, %v973
        %v983 = vunpack.c.l.b16 %v460
        %v984 = vunpack.c.l.b16 %v461
        %v985 = vunpack.c.l.b16 %v462
        %v986 = vunpack.c.l.b16 %v463
        %v987 = vpack.c.b16 %v984, %v983
        %v988 = vpack.c.b16 %v986, %v985
        %991 = vmatprep.subr.bf16.mxu0 0
        %992 = vmatpush1.bf16.msra.mxu0 %v987
        %993 = vmatprep.subr.bf16.mxu0 0
        %994 = vmatpush1.bf16.msra.mxu0 %v988
        %995 = vmatprep.subr.bf16.mxu0 0
        %996 = vmatpush1.bf16.msra.mxu0 0
        %997 = vmatprep.subr.bf16.mxu0 0
        %998 = vmatpush1.bf16.msra.mxu0 0
        %999 = vmatprep.subr.bf16.mxu0 0
        %1000 = vmatpush1.bf16.msra.mxu0 0
        %1001 = vmatprep.subr.bf16.mxu0 0
        %1002 = vmatpush1.bf16.msra.mxu0 0
        %1003 = vmatprep.subr.bf16.mxu0 0
        %1004 = vmatpush1.bf16.msra.mxu0 0
        %1005 = vmatprep.subr.bf16.mxu0 0
        %1006 = vmatpush1.bf16.msra.mxu0 0
        %1007 = vmatprep.subr.bf16.mxu0 0
        %1008 = vmatpush1.bf16.msra.mxu0 0
        %1009 = vmatprep.subr.bf16.mxu0 0
        %1010 = vmatpush1.bf16.msra.mxu0 0
        %1011 = vmatprep.subr.bf16.mxu0 0
        %1012 = vmatpush1.bf16.msra.mxu0 0
        %1013 = vmatprep.subr.bf16.mxu0 0
        %1014 = vmatpush1.bf16.msra.mxu0 0
        %1015 = vmatprep.subr.bf16.mxu0 0
        %1016 = vmatpush1.bf16.msra.mxu0 0
        %1017 = vmatprep.subr.bf16.mxu0 0
        %1018 = vmatpush1.bf16.msra.mxu0 0
        %1019 = vmatprep.subr.bf16.mxu0 0
        %1020 = vmatpush1.bf16.msra.mxu0 0
        %1021 = vmatprep.subr.bf16.mxu0 0
        %1022 = vmatpush1.bf16.msra.mxu0 0
        %1023 = vmatprep.mubr.bf16.mxu0 0
        %1024 = vmatmul.mubr.bf16.gmra.mrb[0].mxu0 %v525
        %v1025 = vpop.f32.mrb[0].mxu0
        %v1026 = vadd.f32 %v962, %v1025
        %v1027 = vpop.f32.mrb[0].mxu0
        %v1028 = vpop.f32.mrb[0].mxu0
        %v1029 = vpop.f32.mrb[0].mxu0
        %1030 = vdwg.mxu0
        %v1035 = vunpack.c.l.b16 %v464
        %v1036 = vunpack.c.l.b16 %v465
        %v1037 = vunpack.c.l.b16 %v466
        %v1038 = vunpack.c.l.b16 %v467
        %v1039 = vpack.c.b16 %v1036, %v1035
        %v1040 = vpack.c.b16 %v1038, %v1037
        %1043 = vmatprep.subr.bf16.mxu0 0
        %1044 = vmatpush1.bf16.msra.mxu0 %v1039
        %1045 = vmatprep.subr.bf16.mxu0 0
        %1046 = vmatpush1.bf16.msra.mxu0 %v1040
        %1047 = vmatprep.subr.bf16.mxu0 0
        %1048 = vmatpush1.bf16.msra.mxu0 0
        %1049 = vmatprep.subr.bf16.mxu0 0
        %1050 = vmatpush1.bf16.msra.mxu0 0
        %1051 = vmatprep.subr.bf16.mxu0 0
        %1052 = vmatpush1.bf16.msra.mxu0 0
        %1053 = vmatprep.subr.bf16.mxu0 0
        %1054 = vmatpush1.bf16.msra.mxu0 0
        %1055 = vmatprep.subr.bf16.mxu0 0
        %1056 = vmatpush1.bf16.msra.mxu0 0
        %1057 = vmatprep.subr.bf16.mxu0 0
        %1058 = vmatpush1.bf16.msra.mxu0 0
        %1059 = vmatprep.subr.bf16.mxu0 0
        %1060 = vmatpush1.bf16.msra.mxu0 0
        %1061 = vmatprep.subr.bf16.mxu0 0
        %1062 = vmatpush1.bf16.msra.mxu0 0
        %1063 = vmatprep.subr.bf16.mxu0 0
        %1064 = vmatpush1.bf16.msra.mxu0 0
        %1065 = vmatprep.subr.bf16.mxu0 0
        %1066 = vmatpush1.bf16.msra.mxu0 0
        %1067 = vmatprep.subr.bf16.mxu0 0
        %1068 = vmatpush1.bf16.msra.mxu0 0
        %1069 = vmatprep.subr.bf16.mxu0 0
        %1070 = vmatpush1.bf16.msra.mxu0 0
        %1071 = vmatprep.subr.bf16.mxu0 0
        %1072 = vmatpush1.bf16.msra.mxu0 0
        %1073 = vmatprep.subr.bf16.mxu0 0
        %1074 = vmatpush1.bf16.msra.mxu0 0
        %1075 = vmatprep.mubr.bf16.mxu0 0
        %1076 = vmatmul.mubr.bf16.gmra.mrb[0].mxu0 %v525
        %v1077 = vpop.f32.mrb[0].mxu0
        %v1078 = vadd.f32 %v966, %v1077
        %v1079 = vpop.f32.mrb[0].mxu0
        %v1080 = vpop.f32.mrb[0].mxu0
        %v1081 = vpop.f32.mrb[0].mxu0
        %1082 = vdwg.mxu0
        %v1087 = vunpack.c.l.b16 %v468
        %v1088 = vunpack.c.l.b16 %v469
        %v1089 = vunpack.c.l.b16 %v470
        %v1090 = vunpack.c.l.b16 %v471
        %v1091 = vpack.c.b16 %v1088, %v1087
        %v1092 = vpack.c.b16 %v1090, %v1089
        %1095 = vmatprep.subr.bf16.mxu0 0
        %1096 = vmatpush1.bf16.msra.mxu0 %v1091
        %1097 = vmatprep.subr.bf16.mxu0 0
        %1098 = vmatpush1.bf16.msra.mxu0 %v1092
        %1099 = vmatprep.subr.bf16.mxu0 0
        %1100 = vmatpush1.bf16.msra.mxu0 0
        %1101 = vmatprep.subr.bf16.mxu0 0
        %1102 = vmatpush1.bf16.msra.mxu0 0
        %1103 = vmatprep.subr.bf16.mxu0 0
        %1104 = vmatpush1.bf16.msra.mxu0 0
        %1105 = vmatprep.subr.bf16.mxu0 0
        %1106 = vmatpush1.bf16.msra.mxu0 0
        %1107 = vmatprep.subr.bf16.mxu0 0
        %1108 = vmatpush1.bf16.msra.mxu0 0
        %1109 = vmatprep.subr.bf16.mxu0 0
        %1110 = vmatpush1.bf16.msra.mxu0 0
        %1111 = vmatprep.subr.bf16.mxu0 0
        %1112 = vmatpush1.bf16.msra.mxu0 0
        %1113 = vmatprep.subr.bf16.mxu0 0
        %1114 = vmatpush1.bf16.msra.mxu0 0
        %1115 = vmatprep.subr.bf16.mxu0 0
        %1116 = vmatpush1.bf16.msra.mxu0 0
        %1117 = vmatprep.subr.bf16.mxu0 0
        %1118 = vmatpush1.bf16.msra.mxu0 0
        %1119 = vmatprep.subr.bf16.mxu0 0
        %1120 = vmatpush1.bf16.msra.mxu0 0
        %1121 = vmatprep.subr.bf16.mxu0 0
        %1122 = vmatpush1.bf16.msra.mxu0 0
        %1123 = vmatprep.subr.bf16.mxu0 0
        %1124 = vmatpush1.bf16.msra.mxu0 0
        %1125 = vmatprep.subr.bf16.mxu0 0
        %1126 = vmatpush1.bf16.msra.mxu0 0
        %1127 = vmatprep.mubr.bf16.mxu0 0
        %1128 = vmatmul.mubr.bf16.gmra.mrb[0].mxu0 %v525
        %v1129 = vpop.f32.mrb[0].mxu0
        %v1130 = vadd.f32 %v970, %v1129
        %v1131 = vpop.f32.mrb[0].mxu0
        %v1132 = vpop.f32.mrb[0].mxu0
        %v1133 = vpop.f32.mrb[0].mxu0
        %1134 = vdwg.mxu0
        %v1139 = vunpack.c.l.b16 %v472
        %v1140 = vunpack.c.l.b16 %v473
        %v1141 = vunpack.c.l.b16 %v474
        %v1142 = vunpack.c.l.b16 %v475
        %v1143 = vpack.c.b16 %v1140, %v1139
        %v1144 = vpack.c.b16 %v1142, %v1141
        %1147 = vmatprep.subr.bf16.mxu0 0
        %1148 = vmatpush1.bf16.msra.mxu0 %v1143
        %1149 = vmatprep.subr.bf16.mxu0 0
        %1150 = vmatpush1.bf16.msra.mxu0 %v1144
        %1151 = vmatprep.subr.bf16.mxu0 0
        %1152 = vmatpush1.bf16.msra.mxu0 0
        %1153 = vmatprep.subr.bf16.mxu0 0
        %1154 = vmatpush1.bf16.msra.mxu0 0
        %1155 = vmatprep.subr.bf16.mxu0 0
        %1156 = vmatpush1.bf16.msra.mxu0 0
        %1157 = vmatprep.subr.bf16.mxu0 0
        %1158 = vmatpush1.bf16.msra.mxu0 0
        %1159 = vmatprep.subr.bf16.mxu0 0
        %1160 = vmatpush1.bf16.msra.mxu0 0
        %1161 = vmatprep.subr.bf16.mxu0 0
        %1162 = vmatpush1.bf16.msra.mxu0 0
        %1163 = vmatprep.subr.bf16.mxu0 0
        %1164 = vmatpush1.bf16.msra.mxu0 0
        %1165 = vmatprep.subr.bf16.mxu0 0
        %1166 = vmatpush1.bf16.msra.mxu0 0
        %1167 = vmatprep.subr.bf16.mxu0 0
        %1168 = vmatpush1.bf16.msra.mxu0 0
        %1169 = vmatprep.subr.bf16.mxu0 0
        %1170 = vmatpush1.bf16.msra.mxu0 0
        %1171 = vmatprep.subr.bf16.mxu0 0
        %1172 = vmatpush1.bf16.msra.mxu0 0
        %1173 = vmatprep.subr.bf16.mxu0 0
        %1174 = vmatpush1.bf16.msra.mxu0 0
        %1175 = vmatprep.subr.bf16.mxu0 0
        %1176 = vmatpush1.bf16.msra.mxu0 0
        %1177 = vmatprep.subr.bf16.mxu0 0
        %1178 = vmatpush1.bf16.msra.mxu0 0
        %1179 = vmatprep.mubr.bf16.mxu0 0
        %1180 = vmatmul.mubr.bf16.gmra.mrb[0].mxu0 %v525
        %v1181 = vpop.f32.mrb[0].mxu0
        %v1182 = vadd.f32 %v974, %v1181
        %v1183 = vpop.f32.mrb[0].mxu0
        %v1184 = vpop.f32.mrb[0].mxu0
        %v1185 = vpop.f32.mrb[0].mxu0
        %1186 = vdwg.mxu0
        %v1187 = vpack.c.bf16 %v562, %v562
        %v1188 = vpack.c.bf16 %v614, %v614
        %v1189 = vpack.c.bf16 %v666, %v666
        %v1190 = vpack.c.bf16 %v718, %v718
        %v1191 = vpack.c.bf16 %v794, %v794
        %v1192 = vpack.c.bf16 %v846, %v846
        %v1193 = vpack.c.bf16 %v898, %v898
        %v1194 = vpack.c.bf16 %v950, %v950
        %v1196 = vlaneseq
        %v1197 = vshrl.u32 %v1196, 7
        %v1198 = vsub.s32 0, %v1197
        %v1199 = vrot.slane %v425, %v1198
        %vm1201 = vcmask 64512
        %v1203 = vsel %vm1201, %v1187, 0
        %v1206 = vsel %vm1201, %v1191, 0
        %1208 = vmatprep.subr.bf16.mxu0 0
        %1209 = vmatpush1.bf16.xpose.msra.mxu0 %v1206
        %1210 = vmatprep.subr.bf16.mxu0 0
        %1211 = vmatpush1.bf16.xpose.msra.mxu0 0
        %1212 = vmatprep.subr.bf16.mxu0 0
        %1213 = vmatpush1.bf16.xpose.msra.mxu0 0
        %1214 = vmatprep.subr.bf16.mxu0 0
        %1215 = vmatpush1.bf16.xpose.msra.mxu0 0
        %1216 = vmatprep.subr.bf16.mxu0 0
        %1217 = vmatpush1.bf16.xpose.msra.mxu0 0
        %1218 = vmatprep.subr.bf16.mxu0 0
        %1219 = vmatpush1.bf16.xpose.msra.mxu0 0
        %1220 = vmatprep.subr.bf16.mxu0 0
        %1221 = vmatpush1.bf16.xpose.msra.mxu0 0
        %1222 = vmatprep.subr.bf16.mxu0 0
        %1223 = vmatpush1.bf16.xpose.msra.mxu0 0
        %1224 = vmatprep.subr.bf16.mxu0 0
        %1225 = vmatpush1.bf16.xpose.msra.mxu0 0
        %1226 = vmatprep.subr.bf16.mxu0 0
        %1227 = vmatpush1.bf16.xpose.msra.mxu0 0
        %1228 = vmatprep.subr.bf16.mxu0 0
        %1229 = vmatpush1.bf16.xpose.msra.mxu0 0
        %1230 = vmatprep.subr.bf16.mxu0 0
        %1231 = vmatpush1.bf16.xpose.msra.mxu0 0
        %1232 = vmatprep.subr.bf16.mxu0 0
        %1233 = vmatpush1.bf16.xpose.msra.mxu0 0
        %1234 = vmatprep.subr.bf16.mxu0 0
        %1235 = vmatpush1.bf16.xpose.msra.mxu0 0
        %1236 = vmatprep.subr.bf16.mxu0 0
        %1237 = vmatpush1.bf16.xpose.msra.mxu0 0
        %1238 = vmatprep.subr.bf16.mxu0 0
        %1239 = vmatpush1.bf16.xpose.msra.mxu0 0
        %1240 = vmatprep.mubr.bf16.mxu0 0
        %1241 = vmatmul.mubr.bf16.gmra.mrb[0].mxu0 %v1203
        %v1242 = vpop.f32.mrb[0].mxu0
        %v1243 = vadd.f32 %v1199, %v1242
        %v1244 = vpop.f32.mrb[0].mxu0
        %v1245 = vpop.f32.mrb[0].mxu0
        %v1246 = vpop.f32.mrb[0].mxu0
        %1247 = vdwg.mxu0
        %v1249 = vsel %vm1201, %v1188, 0
        %v1252 = vsel %vm1201, %v1192, 0
        %1254 = vmatprep.subr.bf16.mxu0 0
        %1255 = vmatpush1.bf16.xpose.msra.mxu0 %v1252
        %1256 = vmatprep.subr.bf16.mxu0 0
        %1257 = vmatpush1.bf16.xpose.msra.mxu0 0
        %1258 = vmatprep.subr.bf16.mxu0 0
        %1259 = vmatpush1.bf16.xpose.msra.mxu0 0
        %1260 = vmatprep.subr.bf16.mxu0 0
        %1261 = vmatpush1.bf16.xpose.msra.mxu0 0
        %1262 = vmatprep.subr.bf16.mxu0 0
        %1263 = vmatpush1.bf16.xpose.msra.mxu0 0
        %1264 = vmatprep.subr.bf16.mxu0 0
        %1265 = vmatpush1.bf16.xpose.msra.mxu0 0
        %1266 = vmatprep.subr.bf16.mxu0 0
        %1267 = vmatpush1.bf16.xpose.msra.mxu0 0
        %1268 = vmatprep.subr.bf16.mxu0 0
        %1269 = vmatpush1.bf16.xpose.msra.mxu0 0
        %1270 = vmatprep.subr.bf16.mxu0 0
        %1271 = vmatpush1.bf16.xpose.msra.mxu0 0
        %1272 = vmatprep.subr.bf16.mxu0 0
        %1273 = vmatpush1.bf16.xpose.msra.mxu0 0
        %1274 = vmatprep.subr.bf16.mxu0 0
        %1275 = vmatpush1.bf16.xpose.msra.mxu0 0
        %1276 = vmatprep.subr.bf16.mxu0 0
        %1277 = vmatpush1.bf16.xpose.msra.mxu0 0
        %1278 = vmatprep.subr.bf16.mxu0 0
        %1279 = vmatpush1.bf16.xpose.msra.mxu0 0
        %1280 = vmatprep.subr.bf16.mxu0 0
        %1281 = vmatpush1.bf16.xpose.msra.mxu0 0
        %1282 = vmatprep.subr.bf16.mxu0 0
        %1283 = vmatpush1.bf16.xpose.msra.mxu0 0
        %1284 = vmatprep.subr.bf16.mxu0 0
        %1285 = vmatpush1.bf16.xpose.msra.mxu0 0
        %1286 = vmatprep.mubr.bf16.mxu0 0
        %1287 = vmatmul.mubr.bf16.gmra.mrb[0].mxu0 %v1249
        %v1288 = vpop.f32.mrb[0].mxu0
        %v1289 = vadd.f32 %v1199, %v1288
        %v1290 = vpop.f32.mrb[0].mxu0
        %v1291 = vpop.f32.mrb[0].mxu0
        %v1292 = vpop.f32.mrb[0].mxu0
        %1293 = vdwg.mxu0
        %v1295 = vsel %vm1201, %v1189, 0
        %v1298 = vsel %vm1201, %v1193, 0
        %1300 = vmatprep.subr.bf16.mxu0 0
        %1301 = vmatpush1.bf16.xpose.msra.mxu0 %v1298
        %1302 = vmatprep.subr.bf16.mxu0 0
        %1303 = vmatpush1.bf16.xpose.msra.mxu0 0
        %1304 = vmatprep.subr.bf16.mxu0 0
        %1305 = vmatpush1.bf16.xpose.msra.mxu0 0
        %1306 = vmatprep.subr.bf16.mxu0 0
        %1307 = vmatpush1.bf16.xpose.msra.mxu0 0
        %1308 = vmatprep.subr.bf16.mxu0 0
        %1309 = vmatpush1.bf16.xpose.msra.mxu0 0
        %1310 = vmatprep.subr.bf16.mxu0 0
        %1311 = vmatpush1.bf16.xpose.msra.mxu0 0
        %1312 = vmatprep.subr.bf16.mxu0 0
        %1313 = vmatpush1.bf16.xpose.msra.mxu0 0
        %1314 = vmatprep.subr.bf16.mxu0 0
        %1315 = vmatpush1.bf16.xpose.msra.mxu0 0
        %1316 = vmatprep.subr.bf16.mxu0 0
        %1317 = vmatpush1.bf16.xpose.msra.mxu0 0
        %1318 = vmatprep.subr.bf16.mxu0 0
        %1319 = vmatpush1.bf16.xpose.msra.mxu0 0
        %1320 = vmatprep.subr.bf16.mxu0 0
        %1321 = vmatpush1.bf16.xpose.msra.mxu0 0
        %1322 = vmatprep.subr.bf16.mxu0 0
        %1323 = vmatpush1.bf16.xpose.msra.mxu0 0
        %1324 = vmatprep.subr.bf16.mxu0 0
        %1325 = vmatpush1.bf16.xpose.msra.mxu0 0
        %1326 = vmatprep.subr.bf16.mxu0 0
        %1327 = vmatpush1.bf16.xpose.msra.mxu0 0
        %1328 = vmatprep.subr.bf16.mxu0 0
        %1329 = vmatpush1.bf16.xpose.msra.mxu0 0
        %1330 = vmatprep.subr.bf16.mxu0 0
        %1331 = vmatpush1.bf16.xpose.msra.mxu0 0
        %1332 = vmatprep.mubr.bf16.mxu0 0
        %1333 = vmatmul.mubr.bf16.gmra.mrb[0].mxu0 %v1295
        %v1334 = vpop.f32.mrb[0].mxu0
        %v1335 = vadd.f32 %v1199, %v1334
        %v1336 = vpop.f32.mrb[0].mxu0
        %v1337 = vpop.f32.mrb[0].mxu0
        %v1338 = vpop.f32.mrb[0].mxu0
        %1339 = vdwg.mxu0
        %v1341 = vsel %vm1201, %v1190, 0
        %v1344 = vsel %vm1201, %v1194, 0
        %1346 = vmatprep.subr.bf16.mxu0 0
        %1347 = vmatpush1.bf16.xpose.msra.mxu0 %v1344
        %1348 = vmatprep.subr.bf16.mxu0 0
        %1349 = vmatpush1.bf16.xpose.msra.mxu0 0
        %1350 = vmatprep.subr.bf16.mxu0 0
        %1351 = vmatpush1.bf16.xpose.msra.mxu0 0
        %1352 = vmatprep.subr.bf16.mxu0 0
        %1353 = vmatpush1.bf16.xpose.msra.mxu0 0
        %1354 = vmatprep.subr.bf16.mxu0 0
        %1355 = vmatpush1.bf16.xpose.msra.mxu0 0
        %1356 = vmatprep.subr.bf16.mxu0 0
        %1357 = vmatpush1.bf16.xpose.msra.mxu0 0
        %1358 = vmatprep.subr.bf16.mxu0 0
        %1359 = vmatpush1.bf16.xpose.msra.mxu0 0
        %1360 = vmatprep.subr.bf16.mxu0 0
        %1361 = vmatpush1.bf16.xpose.msra.mxu0 0
        %1362 = vmatprep.subr.bf16.mxu0 0
        %1363 = vmatpush1.bf16.xpose.msra.mxu0 0
        %1364 = vmatprep.subr.bf16.mxu0 0
        %1365 = vmatpush1.bf16.xpose.msra.mxu0 0
        %1366 = vmatprep.subr.bf16.mxu0 0
        %1367 = vmatpush1.bf16.xpose.msra.mxu0 0
        %1368 = vmatprep.subr.bf16.mxu0 0
        %1369 = vmatpush1.bf16.xpose.msra.mxu0 0
        %1370 = vmatprep.subr.bf16.mxu0 0
        %1371 = vmatpush1.bf16.xpose.msra.mxu0 0
        %1372 = vmatprep.subr.bf16.mxu0 0
        %1373 = vmatpush1.bf16.xpose.msra.mxu0 0
        %1374 = vmatprep.subr.bf16.mxu0 0
        %1375 = vmatpush1.bf16.xpose.msra.mxu0 0
        %1376 = vmatprep.subr.bf16.mxu0 0
        %1377 = vmatpush1.bf16.xpose.msra.mxu0 0
        %1378 = vmatprep.mubr.bf16.mxu0 0
        %1379 = vmatmul.mubr.bf16.gmra.mrb[0].mxu0 %v1341
        %v1380 = vpop.f32.mrb[0].mxu0
        %v1381 = vadd.f32 %v1199, %v1380
        %v1382 = vpop.f32.mrb[0].mxu0
        %v1383 = vpop.f32.mrb[0].mxu0
        %v1384 = vpop.f32.mrb[0].mxu0
        %1385 = vdwg.mxu0
        %v1386 = vsel %vm1201, %v1243, -inf
        %1387 = vmax.xlane.f32.xlu0 %v1386
        %v1388 = vpop.xlane.xlu0 %1387
        %v1389 = vsel %vm1201, %v1289, -inf
        %1390 = vmax.xlane.f32.xlu0 %v1389
        %v1391 = vpop.xlane.xlu0 %1390
        %v1392 = vsel %vm1201, %v1335, -inf
        %1393 = vmax.xlane.f32.xlu0 %v1392
        %v1394 = vpop.xlane.xlu0 %1393
        %v1395 = vsel %vm1201, %v1381, -inf
        %1396 = vmax.xlane.f32.xlu0 %v1395
        %v1397 = vpop.xlane.xlu0 %1396
        %v1398 = vsub.f32 %v1243, %v1388
        %v1399 = vsub.f32 %v1289, %v1391
        %v1400 = vsub.f32 %v1335, %v1394
        %v1401 = vsub.f32 %v1381, %v1397
        %v1402 = vmul.f32 %v1398, 1.442695
        %v1403 = vpow.pop %v1402
        %v1404 = vmul.f32 %v1399, 1.442695
        %v1405 = vpow.pop %v1404
        %v1406 = vmul.f32 %v1400, 1.442695
        %v1407 = vpow.pop %v1406
        %v1408 = vmul.f32 %v1401, 1.442695
        %v1409 = vpow.pop %v1408
        %v1410 = vsel %vm1201, %v1403, 0.0
        %1411 = vadd.xlane.f32.xlu0 %v1410
        %v1412 = vpop.xlane.xlu0 %1411
        %v1413 = vsel %vm1201, %v1405, 0.0
        %1414 = vadd.xlane.f32.xlu0 %v1413
        %v1415 = vpop.xlane.xlu0 %1414
        %v1416 = vsel %vm1201, %v1407, 0.0
        %1417 = vadd.xlane.f32.xlu0 %v1416
        %v1418 = vpop.xlane.xlu0 %1417
        %v1419 = vsel %vm1201, %v1409, 0.0
        %1420 = vadd.xlane.f32.xlu0 %v1419
        %v1421 = vpop.xlane.xlu0 %1420
        %v1422 = vrcp.pop %v1412
        %v1423 = vrcp.pop %v1415
        %v1424 = vrcp.pop %v1418
        %v1425 = vrcp.pop %v1421
        %v1426 = vmul.f32 %v1403, %v1422
        %v1427 = vmul.f32 %v1405, %v1423
        %v1428 = vmul.f32 %v1407, %v1424
        %v1429 = vmul.f32 %v1409, %v1425
        %v1430 = vpack.c.bf16 %v1426, %v1426
        %v1431 = vpack.c.bf16 %v1427, %v1427
        %v1432 = vpack.c.bf16 %v1428, %v1428
        %v1433 = vpack.c.bf16 %v1429, %v1429
        %v1434 = vpack.c.bf16 %v1026, %v1026
        %v1435 = vpack.c.bf16 %v1078, %v1078
        %v1436 = vpack.c.bf16 %v1130, %v1130
        %v1437 = vpack.c.bf16 %v1182, %v1182
        %v1439 = vsel %vm1201, %v1430, 0
        %vm1441 = vcmask 1043456
        %v1443 = vsel %vm1441, %v1434, 0
        %1445 = vmatprep.subr.bf16.mxu0 0
        %1446 = vmatpush1.bf16.msra.mxu0 %v1443
        %1447 = vmatprep.subr.bf16.mxu0 0
        %1448 = vmatpush1.bf16.msra.mxu0 0
        %1449 = vmatprep.subr.bf16.mxu0 0
        %1450 = vmatpush1.bf16.msra.mxu0 0
        %1451 = vmatprep.subr.bf16.mxu0 0
        %1452 = vmatpush1.bf16.msra.mxu0 0
        %1453 = vmatprep.subr.bf16.mxu0 0
        %1454 = vmatpush1.bf16.msra.mxu0 0
        %1455 = vmatprep.subr.bf16.mxu0 0
        %1456 = vmatpush1.bf16.msra.mxu0 0
        %1457 = vmatprep.subr.bf16.mxu0 0
        %1458 = vmatpush1.bf16.msra.mxu0 0
        %1459 = vmatprep.subr.bf16.mxu0 0
        %1460 = vmatpush1.bf16.msra.mxu0 0
        %1461 = vmatprep.subr.bf16.mxu0 0
        %1462 = vmatpush1.bf16.msra.mxu0 0
        %1463 = vmatprep.subr.bf16.mxu0 0
        %1464 = vmatpush1.bf16.msra.mxu0 0
        %1465 = vmatprep.subr.bf16.mxu0 0
        %1466 = vmatpush1.bf16.msra.mxu0 0
        %1467 = vmatprep.subr.bf16.mxu0 0
        %1468 = vmatpush1.bf16.msra.mxu0 0
        %1469 = vmatprep.subr.bf16.mxu0 0
        %1470 = vmatpush1.bf16.msra.mxu0 0
        %1471 = vmatprep.subr.bf16.mxu0 0
        %1472 = vmatpush1.bf16.msra.mxu0 0
        %1473 = vmatprep.subr.bf16.mxu0 0
        %1474 = vmatpush1.bf16.msra.mxu0 0
        %1475 = vmatprep.subr.bf16.mxu0 0
        %1476 = vmatpush1.bf16.msra.mxu0 0
        %1477 = vmatprep.mubr.bf16.mxu0 0
        %1478 = vmatmul.mubr.bf16.gmra.mrb[0].mxu0 %v1439
        %v1479 = vpop.f32.mrb[0].mxu0
        %v1480 = vadd.f32 0.0, %v1479
        %v1481 = vpop.f32.mrb[0].mxu0
        %v1482 = vpop.f32.mrb[0].mxu0
        %v1483 = vpop.f32.mrb[0].mxu0
        %1484 = vdwg.mxu0
        %v1486 = vsel %vm1201, %v1431, 0
        %v1489 = vsel %vm1441, %v1435, 0
        %1491 = vmatprep.subr.bf16.mxu0 0
        %1492 = vmatpush1.bf16.msra.mxu0 %v1489
        %1493 = vmatprep.subr.bf16.mxu0 0
        %1494 = vmatpush1.bf16.msra.mxu0 0
        %1495 = vmatprep.subr.bf16.mxu0 0
        %1496 = vmatpush1.bf16.msra.mxu0 0
        %1497 = vmatprep.subr.bf16.mxu0 0
        %1498 = vmatpush1.bf16.msra.mxu0 0
        %1499 = vmatprep.subr.bf16.mxu0 0
        %1500 = vmatpush1.bf16.msra.mxu0 0
        %1501 = vmatprep.subr.bf16.mxu0 0
        %1502 = vmatpush1.bf16.msra.mxu0 0
        %1503 = vmatprep.subr.bf16.mxu0 0
        %1504 = vmatpush1.bf16.msra.mxu0 0
        %1505 = vmatprep.subr.bf16.mxu0 0
        %1506 = vmatpush1.bf16.msra.mxu0 0
        %1507 = vmatprep.subr.bf16.mxu0 0
        %1508 = vmatpush1.bf16.msra.mxu0 0
        %1509 = vmatprep.subr.bf16.mxu0 0
        %1510 = vmatpush1.bf16.msra.mxu0 0
        %1511 = vmatprep.subr.bf16.mxu0 0
        %1512 = vmatpush1.bf16.msra.mxu0 0
        %1513 = vmatprep.subr.bf16.mxu0 0
        %1514 = vmatpush1.bf16.msra.mxu0 0
        %1515 = vmatprep.subr.bf16.mxu0 0
        %1516 = vmatpush1.bf16.msra.mxu0 0
        %1517 = vmatprep.subr.bf16.mxu0 0
        %1518 = vmatpush1.bf16.msra.mxu0 0
        %1519 = vmatprep.subr.bf16.mxu0 0
        %1520 = vmatpush1.bf16.msra.mxu0 0
        %1521 = vmatprep.subr.bf16.mxu0 0
        %1522 = vmatpush1.bf16.msra.mxu0 0
        %1523 = vmatprep.mubr.bf16.mxu0 0
        %1524 = vmatmul.mubr.bf16.gmra.mrb[0].mxu0 %v1486
        %v1525 = vpop.f32.mrb[0].mxu0
        %v1526 = vadd.f32 0.0, %v1525
        %v1527 = vpop.f32.mrb[0].mxu0
        %v1528 = vpop.f32.mrb[0].mxu0
        %v1529 = vpop.f32.mrb[0].mxu0
        %1530 = vdwg.mxu0
        %v1532 = vsel %vm1201, %v1432, 0
        %v1535 = vsel %vm1441, %v1436, 0
        %1537 = vmatprep.subr.bf16.mxu0 0
        %1538 = vmatpush1.bf16.msra.mxu0 %v1535
        %1539 = vmatprep.subr.bf16.mxu0 0
        %1540 = vmatpush1.bf16.msra.mxu0 0
        %1541 = vmatprep.subr.bf16.mxu0 0
        %1542 = vmatpush1.bf16.msra.mxu0 0
        %1543 = vmatprep.subr.bf16.mxu0 0
        %1544 = vmatpush1.bf16.msra.mxu0 0
        %1545 = vmatprep.subr.bf16.mxu0 0
        %1546 = vmatpush1.bf16.msra.mxu0 0
        %1547 = vmatprep.subr.bf16.mxu0 0
        %1548 = vmatpush1.bf16.msra.mxu0 0
        %1549 = vmatprep.subr.bf16.mxu0 0
        %1550 = vmatpush1.bf16.msra.mxu0 0
        %1551 = vmatprep.subr.bf16.mxu0 0
        %1552 = vmatpush1.bf16.msra.mxu0 0
        %1553 = vmatprep.subr.bf16.mxu0 0
        %1554 = vmatpush1.bf16.msra.mxu0 0
        %1555 = vmatprep.subr.bf16.mxu0 0
        %1556 = vmatpush1.bf16.msra.mxu0 0
        %1557 = vmatprep.subr.bf16.mxu0 0
        %1558 = vmatpush1.bf16.msra.mxu0 0
        %1559 = vmatprep.subr.bf16.mxu0 0
        %1560 = vmatpush1.bf16.msra.mxu0 0
        %1561 = vmatprep.subr.bf16.mxu0 0
        %1562 = vmatpush1.bf16.msra.mxu0 0
        %1563 = vmatprep.subr.bf16.mxu0 0
        %1564 = vmatpush1.bf16.msra.mxu0 0
        %1565 = vmatprep.subr.bf16.mxu0 0
        %1566 = vmatpush1.bf16.msra.mxu0 0
        %1567 = vmatprep.subr.bf16.mxu0 0
        %1568 = vmatpush1.bf16.msra.mxu0 0
        %1569 = vmatprep.mubr.bf16.mxu0 0
        %1570 = vmatmul.mubr.bf16.gmra.mrb[0].mxu0 %v1532
        %v1571 = vpop.f32.mrb[0].mxu0
        %v1572 = vadd.f32 0.0, %v1571
        %v1573 = vpop.f32.mrb[0].mxu0
        %v1574 = vpop.f32.mrb[0].mxu0
        %v1575 = vpop.f32.mrb[0].mxu0
        %1576 = vdwg.mxu0
        %v1578 = vsel %vm1201, %v1433, 0
        %v1581 = vsel %vm1441, %v1437, 0
        %1583 = vmatprep.subr.bf16.mxu0 0
        %1584 = vmatpush1.bf16.msra.mxu0 %v1581
        %1585 = vmatprep.subr.bf16.mxu0 0
        %1586 = vmatpush1.bf16.msra.mxu0 0
        %1587 = vmatprep.subr.bf16.mxu0 0
        %1588 = vmatpush1.bf16.msra.mxu0 0
        %1589 = vmatprep.subr.bf16.mxu0 0
        %1590 = vmatpush1.bf16.msra.mxu0 0
        %1591 = vmatprep.subr.bf16.mxu0 0
        %1592 = vmatpush1.bf16.msra.mxu0 0
        %1593 = vmatprep.subr.bf16.mxu0 0
        %1594 = vmatpush1.bf16.msra.mxu0 0
        %1595 = vmatprep.subr.bf16.mxu0 0
        %1596 = vmatpush1.bf16.msra.mxu0 0
        %1597 = vmatprep.subr.bf16.mxu0 0
        %1598 = vmatpush1.bf16.msra.mxu0 0
        %1599 = vmatprep.subr.bf16.mxu0 0
        %1600 = vmatpush1.bf16.msra.mxu0 0
        %1601 = vmatprep.subr.bf16.mxu0 0
        %1602 = vmatpush1.bf16.msra.mxu0 0
        %1603 = vmatprep.subr.bf16.mxu0 0
        %1604 = vmatpush1.bf16.msra.mxu0 0
        %1605 = vmatprep.subr.bf16.mxu0 0
        %1606 = vmatpush1.bf16.msra.mxu0 0
        %1607 = vmatprep.subr.bf16.mxu0 0
        %1608 = vmatpush1.bf16.msra.mxu0 0
        %1609 = vmatprep.subr.bf16.mxu0 0
        %1610 = vmatpush1.bf16.msra.mxu0 0
        %1611 = vmatprep.subr.bf16.mxu0 0
        %1612 = vmatpush1.bf16.msra.mxu0 0
        %1613 = vmatprep.subr.bf16.mxu0 0
        %1614 = vmatpush1.bf16.msra.mxu0 0
        %1615 = vmatprep.mubr.bf16.mxu0 0
        %1616 = vmatmul.mubr.bf16.gmra.mrb[0].mxu0 %v1578
        %v1617 = vpop.f32.mrb[0].mxu0
        %v1618 = vadd.f32 0.0, %v1617
        %v1619 = vpop.f32.mrb[0].mxu0
        %v1620 = vpop.f32.mrb[0].mxu0
        %v1621 = vpop.f32.mrb[0].mxu0
        %1622 = vdwg.mxu0
        %v1623 = vpack.c.bf16 %v1480, %v1480
        %v1624 = vpack.c.bf16 %v1526, %v1526
        %v1625 = vpack.c.bf16 %v1572, %v1572
        %v1626 = vpack.c.bf16 %v1618, %v1618
        %v1627 = vld [vmem:[%s4] sm:$0xf]
        %v1628 = vld [vmem:[%s4 + $0x4] sm:$0xf]
        %v1629 = vld [vmem:[%s4 + $0x8] sm:$0xf]
        %v1630 = vld [vmem:[%s4 + $0xc] sm:$0xf]
        %v1632 = vsel %vm1201, %v1623, 0
        %v1635 = vsel %vm1441, %v1627, 0
        %1637 = vmatprep.subr.bf16.mxu0 0
        %1638 = vmatpush1.bf16.msra.mxu0 %v1635
        %1639 = vmatprep.subr.bf16.mxu0 0
        %1640 = vmatpush1.bf16.msra.mxu0 0
        %1641 = vmatprep.subr.bf16.mxu0 0
        %1642 = vmatpush1.bf16.msra.mxu0 0
        %1643 = vmatprep.subr.bf16.mxu0 0
        %1644 = vmatpush1.bf16.msra.mxu0 0
        %1645 = vmatprep.subr.bf16.mxu0 0
        %1646 = vmatpush1.bf16.msra.mxu0 0
        %1647 = vmatprep.subr.bf16.mxu0 0
        %1648 = vmatpush1.bf16.msra.mxu0 0
        %1649 = vmatprep.subr.bf16.mxu0 0
        %1650 = vmatpush1.bf16.msra.mxu0 0
        %1651 = vmatprep.subr.bf16.mxu0 0
        %1652 = vmatpush1.bf16.msra.mxu0 0
        %1653 = vmatprep.subr.bf16.mxu0 0
        %1654 = vmatpush1.bf16.msra.mxu0 0
        %1655 = vmatprep.subr.bf16.mxu0 0
        %1656 = vmatpush1.bf16.msra.mxu0 0
        %1657 = vmatprep.subr.bf16.mxu0 0
        %1658 = vmatpush1.bf16.msra.mxu0 0
        %1659 = vmatprep.subr.bf16.mxu0 0
        %1660 = vmatpush1.bf16.msra.mxu0 0
        %1661 = vmatprep.subr.bf16.mxu0 0
        %1662 = vmatpush1.bf16.msra.mxu0 0
        %1663 = vmatprep.subr.bf16.mxu0 0
        %1664 = vmatpush1.bf16.msra.mxu0 0
        %1665 = vmatprep.subr.bf16.mxu0 0
        %1666 = vmatpush1.bf16.msra.mxu0 0
        %1667 = vmatprep.subr.bf16.mxu0 0
        %1668 = vmatpush1.bf16.msra.mxu0 0
        %1669 = vmatprep.mubr.bf16.mxu0 0
        %1670 = vmatmul.mubr.bf16.gmra.mrb[0].mxu0 %v1632
        %v1671 = vpop.f32.mrb[0].mxu0
        %v1672 = vadd.f32 0.0, %v1671
        %v1673 = vpop.f32.mrb[0].mxu0
        %v1674 = vpop.f32.mrb[0].mxu0
        %v1675 = vpop.f32.mrb[0].mxu0
        %1676 = vdwg.mxu0
        %v1678 = vsel %vm1201, %v1624, 0
        %v1681 = vsel %vm1441, %v1628, 0
        %1683 = vmatprep.subr.bf16.mxu0 0
        %1684 = vmatpush1.bf16.msra.mxu0 %v1681
        %1685 = vmatprep.subr.bf16.mxu0 0
        %1686 = vmatpush1.bf16.msra.mxu0 0
        %1687 = vmatprep.subr.bf16.mxu0 0
        %1688 = vmatpush1.bf16.msra.mxu0 0
        %1689 = vmatprep.subr.bf16.mxu0 0
        %1690 = vmatpush1.bf16.msra.mxu0 0
        %1691 = vmatprep.subr.bf16.mxu0 0
        %1692 = vmatpush1.bf16.msra.mxu0 0
        %1693 = vmatprep.subr.bf16.mxu0 0
        %1694 = vmatpush1.bf16.msra.mxu0 0
        %1695 = vmatprep.subr.bf16.mxu0 0
        %1696 = vmatpush1.bf16.msra.mxu0 0
        %1697 = vmatprep.subr.bf16.mxu0 0
        %1698 = vmatpush1.bf16.msra.mxu0 0
        %1699 = vmatprep.subr.bf16.mxu0 0
        %1700 = vmatpush1.bf16.msra.mxu0 0
        %1701 = vmatprep.subr.bf16.mxu0 0
        %1702 = vmatpush1.bf16.msra.mxu0 0
        %1703 = vmatprep.subr.bf16.mxu0 0
        %1704 = vmatpush1.bf16.msra.mxu0 0
        %1705 = vmatprep.subr.bf16.mxu0 0
        %1706 = vmatpush1.bf16.msra.mxu0 0
        %1707 = vmatprep.subr.bf16.mxu0 0
        %1708 = vmatpush1.bf16.msra.mxu0 0
        %1709 = vmatprep.subr.bf16.mxu0 0
        %1710 = vmatpush1.bf16.msra.mxu0 0
        %1711 = vmatprep.subr.bf16.mxu0 0
        %1712 = vmatpush1.bf16.msra.mxu0 0
        %1713 = vmatprep.subr.bf16.mxu0 0
        %1714 = vmatpush1.bf16.msra.mxu0 0
        %1715 = vmatprep.mubr.bf16.mxu0 0
        %1716 = vmatmul.mubr.bf16.gmra.mrb[0].mxu0 %v1678
        %v1717 = vpop.f32.mrb[0].mxu0
        %v1718 = vadd.f32 0.0, %v1717
        %v1719 = vpop.f32.mrb[0].mxu0
        %v1720 = vpop.f32.mrb[0].mxu0
        %v1721 = vpop.f32.mrb[0].mxu0
        %1722 = vdwg.mxu0
        %v1724 = vsel %vm1201, %v1625, 0
        %v1727 = vsel %vm1441, %v1629, 0
        %1729 = vmatprep.subr.bf16.mxu0 0
        %1730 = vmatpush1.bf16.msra.mxu0 %v1727
        %1731 = vmatprep.subr.bf16.mxu0 0
        %1732 = vmatpush1.bf16.msra.mxu0 0
        %1733 = vmatprep.subr.bf16.mxu0 0
        %1734 = vmatpush1.bf16.msra.mxu0 0
        %1735 = vmatprep.subr.bf16.mxu0 0
        %1736 = vmatpush1.bf16.msra.mxu0 0
        %1737 = vmatprep.subr.bf16.mxu0 0
        %1738 = vmatpush1.bf16.msra.mxu0 0
        %1739 = vmatprep.subr.bf16.mxu0 0
        %1740 = vmatpush1.bf16.msra.mxu0 0
        %1741 = vmatprep.subr.bf16.mxu0 0
        %1742 = vmatpush1.bf16.msra.mxu0 0
        %1743 = vmatprep.subr.bf16.mxu0 0
        %1744 = vmatpush1.bf16.msra.mxu0 0
        %1745 = vmatprep.subr.bf16.mxu0 0
        %1746 = vmatpush1.bf16.msra.mxu0 0
        %1747 = vmatprep.subr.bf16.mxu0 0
        %1748 = vmatpush1.bf16.msra.mxu0 0
        %1749 = vmatprep.subr.bf16.mxu0 0
        %1750 = vmatpush1.bf16.msra.mxu0 0
        %1751 = vmatprep.subr.bf16.mxu0 0
        %1752 = vmatpush1.bf16.msra.mxu0 0
        %1753 = vmatprep.subr.bf16.mxu0 0
        %1754 = vmatpush1.bf16.msra.mxu0 0
        %1755 = vmatprep.subr.bf16.mxu0 0
        %1756 = vmatpush1.bf16.msra.mxu0 0
        %1757 = vmatprep.subr.bf16.mxu0 0
        %1758 = vmatpush1.bf16.msra.mxu0 0
        %1759 = vmatprep.subr.bf16.mxu0 0
        %1760 = vmatpush1.bf16.msra.mxu0 0
        %1761 = vmatprep.mubr.bf16.mxu0 0
        %1762 = vmatmul.mubr.bf16.gmra.mrb[0].mxu0 %v1724
        %v1763 = vpop.f32.mrb[0].mxu0
        %v1764 = vadd.f32 0.0, %v1763
        %v1765 = vpop.f32.mrb[0].mxu0
        %v1766 = vpop.f32.mrb[0].mxu0
        %v1767 = vpop.f32.mrb[0].mxu0
        %1768 = vdwg.mxu0
        %v1770 = vsel %vm1201, %v1626, 0
        %v1773 = vsel %vm1441, %v1630, 0
        %1775 = vmatprep.subr.bf16.mxu0 0
        %1776 = vmatpush1.bf16.msra.mxu0 %v1773
        %1777 = vmatprep.subr.bf16.mxu0 0
        %1778 = vmatpush1.bf16.msra.mxu0 0
        %1779 = vmatprep.subr.bf16.mxu0 0
        %1780 = vmatpush1.bf16.msra.mxu0 0
        %1781 = vmatprep.subr.bf16.mxu0 0
        %1782 = vmatpush1.bf16.msra.mxu0 0
        %1783 = vmatprep.subr.bf16.mxu0 0
        %1784 = vmatpush1.bf16.msra.mxu0 0
        %1785 = vmatprep.subr.bf16.mxu0 0
        %1786 = vmatpush1.bf16.msra.mxu0 0
        %1787 = vmatprep.subr.bf16.mxu0 0
        %1788 = vmatpush1.bf16.msra.mxu0 0
        %1789 = vmatprep.subr.bf16.mxu0 0
        %1790 = vmatpush1.bf16.msra.mxu0 0
        %1791 = vmatprep.subr.bf16.mxu0 0
        %1792 = vmatpush1.bf16.msra.mxu0 0
        %1793 = vmatprep.subr.bf16.mxu0 0
        %1794 = vmatpush1.bf16.msra.mxu0 0
        %1795 = vmatprep.subr.bf16.mxu0 0
        %1796 = vmatpush1.bf16.msra.mxu0 0
        %1797 = vmatprep.subr.bf16.mxu0 0
        %1798 = vmatpush1.bf16.msra.mxu0 0
        %1799 = vmatprep.subr.bf16.mxu0 0
        %1800 = vmatpush1.bf16.msra.mxu0 0
        %1801 = vmatprep.subr.bf16.mxu0 0
        %1802 = vmatpush1.bf16.msra.mxu0 0
        %1803 = vmatprep.subr.bf16.mxu0 0
        %1804 = vmatpush1.bf16.msra.mxu0 0
        %1805 = vmatprep.subr.bf16.mxu0 0
        %1806 = vmatpush1.bf16.msra.mxu0 0
        %1807 = vmatprep.mubr.bf16.mxu0 0
        %1808 = vmatmul.mubr.bf16.gmra.mrb[0].mxu0 %v1770
        %v1809 = vpop.f32.mrb[0].mxu0
        %v1810 = vadd.f32 0.0, %v1809
        %v1811 = vpop.f32.mrb[0].mxu0
        %v1812 = vpop.f32.mrb[0].mxu0
        %v1813 = vpop.f32.mrb[0].mxu0
        %1814 = vdwg.mxu0
        %v1815 = vsel %vm399, %v1672, 0.0
        %v1816 = vsel %vm399, %v1718, 0.0
        %v1817 = vadd.f32 %v1815, %v1816
        %v1818 = vsel %vm399, %v1764, 0.0
        %v1819 = vadd.f32 %v1817, %v1818
        %v1820 = vsel %vm399, %v1810, 0.0
        %v1821 = vadd.f32 %v1819, %v1820
        %v1822 = vlaneseq
        %v1823 = vshrl.u32 %v1822, 7
        %v1824 = vsub.s32 0, %v1823
        %v1825 = vrot.slane %v426, %v1824
        %v1826 = vadd.f32 %v1821, %v1825
        %v1827 = vadd.f32 %v424, %v1826
        %v1828 = vsel %vm399, %v1827, 0.0
        %1829 = vadd.xlane.f32.xlu0 %v1828
        %v1830 = vpop.xlane.xlu0 %1829
        %v1831 = vmul.f32 %v1830, 0.03125
        %v1832 = vmul.f32 %v1827, %v1827
        %v1833 = vsel %vm399, %v1832, 0.0
        %1834 = vadd.xlane.f32.xlu0 %v1833
        %v1835 = vpop.xlane.xlu0 %1834
        %v1836 = vmul.f32 %v1835, 0.03125
        %v1837 = vmul.f32 %v1831, %v1831
        %v1838 = vsub.f32 %v1836, %v1837
        %v1839 = vsub.f32 %v1827, %v1831
        %v1840 = vadd.f32 %v1838, 1e-12
        %v1841 = vrsqrt.pop %v1840
        %v1842 = vmul.f32 %v1839, %v1841
        %v1843 = vlaneseq
        %v1844 = vshrl.u32 %v1843, 7
        %v1845 = vsub.s32 3, %v1844
        %v1846 = vrot.slane %v426, %v1845
        %v1847 = vmul.f32 %v1842, %v1846
        %v1848 = vlaneseq
        %v1849 = vshrl.u32 %v1848, 7
        %v1850 = vsub.s32 4, %v1849
        %v1851 = vrot.slane %v426, %v1850
        %v1852 = vadd.f32 %v1847, %v1851
        %v1853 = vpack.c.bf16 %v1852, %v1852
        %v1854 = vld [vmem:[%s5] sm:$0xf]
        %v1855 = vld [vmem:[%s5 + $0x4] sm:$0xf]
        %v1856 = vld [vmem:[%s5 + $0x8] sm:$0xf]
        %v1857 = vld [vmem:[%s5 + $0xc] sm:$0xf]
        %v1858 = vlaneseq
        %v1859 = vshrl.u32 %v1858, 7
        %v1860 = vsub.s32 1, %v1859
        %v1861 = vrot.slane %v426, %v1860
        %v1866 = vunpack.c.l.b16 %v1854
        %v1867 = vunpack.c.l.b16 %v1855
        %v1868 = vunpack.c.l.b16 %v1856
        %v1869 = vunpack.c.l.b16 %v1857
        %v1870 = vpack.c.b16 %v1867, %v1866
        %v1871 = vpack.c.b16 %v1869, %v1868
        %v1875 = vsel %vm399, %v1853, 0
        %1877 = vmatprep.subr.bf16.mxu0 0
        %1878 = vmatpush1.bf16.msra.mxu0 %v1870
        %1879 = vmatprep.subr.bf16.mxu0 0
        %1880 = vmatpush1.bf16.msra.mxu0 %v1871
        %1881 = vmatprep.subr.bf16.mxu0 0
        %1882 = vmatpush1.bf16.msra.mxu0 0
        %1883 = vmatprep.subr.bf16.mxu0 0
        %1884 = vmatpush1.bf16.msra.mxu0 0
        %1885 = vmatprep.subr.bf16.mxu0 0
        %1886 = vmatpush1.bf16.msra.mxu0 0
        %1887 = vmatprep.subr.bf16.mxu0 0
        %1888 = vmatpush1.bf16.msra.mxu0 0
        %1889 = vmatprep.subr.bf16.mxu0 0
        %1890 = vmatpush1.bf16.msra.mxu0 0
        %1891 = vmatprep.subr.bf16.mxu0 0
        %1892 = vmatpush1.bf16.msra.mxu0 0
        %1893 = vmatprep.subr.bf16.mxu0 0
        %1894 = vmatpush1.bf16.msra.mxu0 0
        %1895 = vmatprep.subr.bf16.mxu0 0
        %1896 = vmatpush1.bf16.msra.mxu0 0
        %1897 = vmatprep.subr.bf16.mxu0 0
        %1898 = vmatpush1.bf16.msra.mxu0 0
        %1899 = vmatprep.subr.bf16.mxu0 0
        %1900 = vmatpush1.bf16.msra.mxu0 0
        %1901 = vmatprep.subr.bf16.mxu0 0
        %1902 = vmatpush1.bf16.msra.mxu0 0
        %1903 = vmatprep.subr.bf16.mxu0 0
        %1904 = vmatpush1.bf16.msra.mxu0 0
        %1905 = vmatprep.subr.bf16.mxu0 0
        %1906 = vmatpush1.bf16.msra.mxu0 0
        %1907 = vmatprep.subr.bf16.mxu0 0
        %1908 = vmatpush1.bf16.msra.mxu0 0
        %1909 = vmatprep.mubr.bf16.mxu0 0
        %1910 = vmatmul.mubr.bf16.gmra.mrb[0].mxu0 %v1875
        %v1911 = vpop.f32.mrb[0].mxu0
        %v1912 = vadd.f32 %v1861, %v1911
        %v1913 = vpop.f32.mrb[0].mxu0
        %v1914 = vpop.f32.mrb[0].mxu0
        %v1915 = vpop.f32.mrb[0].mxu0
        %1916 = vdwg.mxu0
        %v1917 = vmul.f32 %v1912, 0.5
        %v1918 = vmul.f32 %v1912, 0.044715
        %v1919 = vmul.f32 %v1918, %v1912
        %v1920 = vmul.f32 %v1919, %v1912
        %v1921 = vadd.f32 %v1912, %v1920
        %v1922 = vmul.f32 %v1921, 0.7978846
        %v1923 = vtanh.pop %v1922
        %v1924 = vadd.f32 %v1923, 1.0
        %v1925 = vmul.f32 %v1917, %v1924
        %v1926 = vpack.c.bf16 %v1925, %v1925
        %v1927 = vld [vmem:[%s6] sm:$0xf]
        %v1928 = vld [vmem:[%s6 + $0x4] sm:$0xf]
        %v1929 = vld [vmem:[%s6 + $0x8] sm:$0xf]
        %v1930 = vld [vmem:[%s6 + $0xc] sm:$0xf]
        %v1931 = vld [vmem:[%s6 + $0x10] sm:$0xf]
        %v1932 = vld [vmem:[%s6 + $0x14] sm:$0xf]
        %v1933 = vld [vmem:[%s6 + $0x18] sm:$0xf]
        %v1934 = vld [vmem:[%s6 + $0x1c] sm:$0xf]
        %v1935 = vlaneseq
        %v1936 = vshrl.u32 %v1935, 7
        %v1937 = vsub.s32 2, %v1936
        %v1938 = vrot.slane %v426, %v1937
        %v1947 = vunpack.c.l.b16 %v1927
        %v1948 = vunpack.c.l.b16 %v1928
        %v1949 = vunpack.c.l.b16 %v1929
        %v1950 = vunpack.c.l.b16 %v1930
        %v1951 = vunpack.c.l.b16 %v1931
        %v1952 = vunpack.c.l.b16 %v1932
        %v1953 = vunpack.c.l.b16 %v1933
        %v1954 = vunpack.c.l.b16 %v1934
        %v1955 = vpack.c.b16 %v1948, %v1947
        %v1956 = vpack.c.b16 %v1950, %v1949
        %v1957 = vpack.c.b16 %v1952, %v1951
        %v1958 = vpack.c.b16 %v1954, %v1953
        %vm1963 = vcmask 523264
        %v1965 = vsel %vm1963, %v1926, 0
        %1967 = vmatprep.subr.bf16.mxu0 0
        %1968 = vmatpush1.bf16.msra.mxu0 %v1955
        %1969 = vmatprep.subr.bf16.mxu0 0
        %1970 = vmatpush1.bf16.msra.mxu0 %v1956
        %1971 = vmatprep.subr.bf16.mxu0 0
        %1972 = vmatpush1.bf16.msra.mxu0 %v1957
        %1973 = vmatprep.subr.bf16.mxu0 0
        %1974 = vmatpush1.bf16.msra.mxu0 %v1958
        %1975 = vmatprep.subr.bf16.mxu0 0
        %1976 = vmatpush1.bf16.msra.mxu0 0
        %1977 = vmatprep.subr.bf16.mxu0 0
        %1978 = vmatpush1.bf16.msra.mxu0 0
        %1979 = vmatprep.subr.bf16.mxu0 0
        %1980 = vmatpush1.bf16.msra.mxu0 0
        %1981 = vmatprep.subr.bf16.mxu0 0
        %1982 = vmatpush1.bf16.msra.mxu0 0
        %1983 = vmatprep.subr.bf16.mxu0 0
        %1984 = vmatpush1.bf16.msra.mxu0 0
        %1985 = vmatprep.subr.bf16.mxu0 0
        %1986 = vmatpush1.bf16.msra.mxu0 0
        %1987 = vmatprep.subr.bf16.mxu0 0
        %1988 = vmatpush1.bf16.msra.mxu0 0
        %1989 = vmatprep.subr.bf16.mxu0 0
        %1990 = vmatpush1.bf16.msra.mxu0 0
        %1991 = vmatprep.subr.bf16.mxu0 0
        %1992 = vmatpush1.bf16.msra.mxu0 0
        %1993 = vmatprep.subr.bf16.mxu0 0
        %1994 = vmatpush1.bf16.msra.mxu0 0
        %1995 = vmatprep.subr.bf16.mxu0 0
        %1996 = vmatpush1.bf16.msra.mxu0 0
        %1997 = vmatprep.subr.bf16.mxu0 0
        %1998 = vmatpush1.bf16.msra.mxu0 0
        %1999 = vmatprep.mubr.bf16.mxu0 0
        %2000 = vmatmul.mubr.bf16.gmra.mrb[0].mxu0 %v1965
        %v2001 = vpop.f32.mrb[0].mxu0
        %v2002 = vadd.f32 %v1938, %v2001
        %v2003 = vpop.f32.mrb[0].mxu0
        %v2004 = vpop.f32.mrb[0].mxu0
        %v2005 = vpop.f32.mrb[0].mxu0
        %2006 = vdwg.mxu0
        %v2007 = vadd.f32 %v1852, %v2002
        %v2008 = vsel %vm399, %v2007, 0.0
        %2009 = vadd.xlane.f32.xlu0 %v2008
        %v2010 = vpop.xlane.xlu0 %2009
        %v2011 = vmul.f32 %v2010, 0.03125
        %v2012 = vmul.f32 %v2007, %v2007
        %v2013 = vsel %vm399, %v2012, 0.0
        %2014 = vadd.xlane.f32.xlu0 %v2013
        %v2015 = vpop.xlane.xlu0 %2014
        %v2016 = vmul.f32 %v2015, 0.03125
        %v2017 = vmul.f32 %v2011, %v2011
        %v2018 = vsub.f32 %v2016, %v2017
        %v2019 = vsub.f32 %v2007, %v2011
        %v2020 = vadd.f32 %v2018, 1e-12
        %v2021 = vrsqrt.pop %v2020
        %v2022 = vmul.f32 %v2019, %v2021
        %v2023 = vlaneseq
        %v2024 = vshrl.u32 %v2023, 7
        %v2025 = vsub.s32 5, %v2024
        %v2026 = vrot.slane %v426, %v2025
        %v2027 = vmul.f32 %v2022, %v2026
        %v2028 = vlaneseq
        %v2029 = vshrl.u32 %v2028, 7
        %v2030 = vsub.s32 6, %v2029
        %v2031 = vrot.slane %v426, %v2030
        %v2032 = vadd.f32 %v2027, %v2031
        %s2033 = scalar_lea.vmem %s7, 8
        %v2034 = vld [vmem:[%s2033] sm:$0xff]
        %v2035 = vpack.c.bf16 %v2032, %v2032
        %s2036 = scalar_lea.vmem %s2, 192
        %v2037 = vld [vmem:[%s2036] sm:$0xf]
        %v2038 = vld [vmem:[%s2036 + $0x4] sm:$0xf]
        %v2039 = vld [vmem:[%s2036 + $0x8] sm:$0xf]
        %v2040 = vld [vmem:[%s2036 + $0xc] sm:$0xf]
        %v2041 = vld [vmem:[%s2036 + $0x10] sm:$0xf]
        %v2042 = vld [vmem:[%s2036 + $0x14] sm:$0xf]
        %v2043 = vld [vmem:[%s2036 + $0x18] sm:$0xf]
        %v2044 = vld [vmem:[%s2036 + $0x1c] sm:$0xf]
        %v2045 = vld [vmem:[%s2036 + $0x20] sm:$0xf]
        %v2046 = vld [vmem:[%s2036 + $0x24] sm:$0xf]
        %v2047 = vld [vmem:[%s2036 + $0x28] sm:$0xf]
        %v2048 = vld [vmem:[%s2036 + $0x2c] sm:$0xf]
        %v2049 = vld [vmem:[%s2036 + $0x30] sm:$0xf]
        %v2050 = vld [vmem:[%s2036 + $0x34] sm:$0xf]
        %v2051 = vld [vmem:[%s2036 + $0x38] sm:$0xf]
        %v2052 = vld [vmem:[%s2036 + $0x3c] sm:$0xf]
        %v2053 = vld [vmem:[%s2036 + $0x40] sm:$0xf]
        %v2054 = vld [vmem:[%s2036 + $0x44] sm:$0xf]
        %v2055 = vld [vmem:[%s2036 + $0x48] sm:$0xf]
        %v2056 = vld [vmem:[%s2036 + $0x4c] sm:$0xf]
        %v2057 = vld [vmem:[%s2036 + $0x50] sm:$0xf]
        %v2058 = vld [vmem:[%s2036 + $0x54] sm:$0xf]
        %v2059 = vld [vmem:[%s2036 + $0x58] sm:$0xf]
        %v2060 = vld [vmem:[%s2036 + $0x5c] sm:$0xf]
        %v2061 = vld [vmem:[%s2036 + $0x60] sm:$0xf]
        %v2062 = vld [vmem:[%s2036 + $0x64] sm:$0xf]
        %v2063 = vld [vmem:[%s2036 + $0x68] sm:$0xf]
        %v2064 = vld [vmem:[%s2036 + $0x6c] sm:$0xf]
        %v2065 = vld [vmem:[%s2036 + $0x70] sm:$0xf]
        %v2066 = vld [vmem:[%s2036 + $0x74] sm:$0xf]
        %v2067 = vld [vmem:[%s2036 + $0x78] sm:$0xf]
        %v2068 = vld [vmem:[%s2036 + $0x7c] sm:$0xf]
        %v2069 = vld [vmem:[%s2036 + $0x80] sm:$0xf]
        %v2070 = vld [vmem:[%s2036 + $0x84] sm:$0xf]
        %v2071 = vld [vmem:[%s2036 + $0x88] sm:$0xf]
        %v2072 = vld [vmem:[%s2036 + $0x8c] sm:$0xf]
        %v2073 = vld [vmem:[%s2036 + $0x90] sm:$0xf]
        %v2074 = vld [vmem:[%s2036 + $0x94] sm:$0xf]
        %v2075 = vld [vmem:[%s2036 + $0x98] sm:$0xf]
        %v2076 = vld [vmem:[%s2036 + $0x9c] sm:$0xf]
        %v2077 = vld [vmem:[%s2036 + $0xa0] sm:$0xf]
        %v2078 = vld [vmem:[%s2036 + $0xa4] sm:$0xf]
        %v2079 = vld [vmem:[%s2036 + $0xa8] sm:$0xf]
        %v2080 = vld [vmem:[%s2036 + $0xac] sm:$0xf]
        %v2081 = vld [vmem:[%s2036 + $0xb0] sm:$0xf]
        %v2082 = vld [vmem:[%s2036 + $0xb4] sm:$0xf]
        %v2083 = vld [vmem:[%s2036 + $0xb8] sm:$0xf]
        %v2084 = vld [vmem:[%s2036 + $0xbc] sm:$0xf]
        %s2085 = scalar_lea.vmem %s3, 12
        %v2086 = vld [vmem:[%s2085] sm:$0x1]
        %v2087 = vld [vmem:[%s2085 + $0x1] sm:$0x1]
        %v2088 = vld [vmem:[%s2085 + $0x2] sm:$0x1]
        %v2089 = vld [vmem:[%s2085 + $0x3] sm:$0x1]
        %v2090 = vld [vmem:[%s2085 + $0x4] sm:$0x1]
        %v2091 = vld [vmem:[%s2085 + $0x5] sm:$0x1]
        %v2092 = vld [vmem:[%s2085 + $0x6] sm:$0x1]
        %v2093 = vld [vmem:[%s2085 + $0x7] sm:$0x1]
        %v2094 = vld [vmem:[%s2085 + $0x8] sm:$0x1]
        %v2095 = vld [vmem:[%s2085 + $0x9] sm:$0x1]
        %v2096 = vld [vmem:[%s2085 + $0xa] sm:$0x1]
        %v2097 = vld [vmem:[%s2085 + $0xb] sm:$0x1]
        %v2102 = vlaneseq
        %v2103 = vshrl.u32 %v2102, 7
        %v2104 = vsub.s32 0, %v2103
        %v2105 = vrot.slane %v2086, %v2104
        %v2106 = vlaneseq
        %v2107 = vshrl.u32 %v2106, 7
        %v2108 = vsub.s32 0, %v2107
        %v2109 = vrot.slane %v2087, %v2108
        %v2110 = vlaneseq
        %v2111 = vshrl.u32 %v2110, 7
        %v2112 = vsub.s32 0, %v2111
        %v2113 = vrot.slane %v2088, %v2112
        %v2114 = vlaneseq
        %v2115 = vshrl.u32 %v2114, 7
        %v2116 = vsub.s32 0, %v2115
        %v2117 = vrot.slane %v2089, %v2116
        %v2126 = vunpack.c.l.b16 %v2037
        %v2127 = vunpack.c.l.b16 %v2038
        %v2128 = vunpack.c.l.b16 %v2039
        %v2129 = vunpack.c.l.b16 %v2040
        %v2130 = vpack.c.b16 %v2127, %v2126
        %v2131 = vpack.c.b16 %v2129, %v2128
        %v2135 = vsel %vm399, %v2035, 0
        %2137 = vmatprep.subr.bf16.mxu0 0
        %2138 = vmatpush1.bf16.msra.mxu0 %v2130
        %2139 = vmatprep.subr.bf16.mxu0 0
        %2140 = vmatpush1.bf16.msra.mxu0 %v2131
        %2141 = vmatprep.subr.bf16.mxu0 0
        %2142 = vmatpush1.bf16.msra.mxu0 0
        %2143 = vmatprep.subr.bf16.mxu0 0
        %2144 = vmatpush1.bf16.msra.mxu0 0
        %2145 = vmatprep.subr.bf16.mxu0 0
        %2146 = vmatpush1.bf16.msra.mxu0 0
        %2147 = vmatprep.subr.bf16.mxu0 0
        %2148 = vmatpush1.bf16.msra.mxu0 0
        %2149 = vmatprep.subr.bf16.mxu0 0
        %2150 = vmatpush1.bf16.msra.mxu0 0
        %2151 = vmatprep.subr.bf16.mxu0 0
        %2152 = vmatpush1.bf16.msra.mxu0 0
        %2153 = vmatprep.subr.bf16.mxu0 0
        %2154 = vmatpush1.bf16.msra.mxu0 0
        %2155 = vmatprep.subr.bf16.mxu0 0
        %2156 = vmatpush1.bf16.msra.mxu0 0
        %2157 = vmatprep.subr.bf16.mxu0 0
        %2158 = vmatpush1.bf16.msra.mxu0 0
        %2159 = vmatprep.subr.bf16.mxu0 0
        %2160 = vmatpush1.bf16.msra.mxu0 0
        %2161 = vmatprep.subr.bf16.mxu0 0
        %2162 = vmatpush1.bf16.msra.mxu0 0
        %2163 = vmatprep.subr.bf16.mxu0 0
        %2164 = vmatpush1.bf16.msra.mxu0 0
        %2165 = vmatprep.subr.bf16.mxu0 0
        %2166 = vmatpush1.bf16.msra.mxu0 0
        %2167 = vmatprep.subr.bf16.mxu0 0
        %2168 = vmatpush1.bf16.msra.mxu0 0
        %2169 = vmatprep.mubr.bf16.mxu0 0
        %2170 = vmatmul.mubr.bf16.gmra.mrb[0].mxu0 %v2135
        %v2171 = vpop.f32.mrb[0].mxu0
        %v2172 = vadd.f32 %v2105, %v2171
        %v2173 = vpop.f32.mrb[0].mxu0
        %v2174 = vpop.f32.mrb[0].mxu0
        %v2175 = vpop.f32.mrb[0].mxu0
        %2176 = vdwg.mxu0
        %v2181 = vunpack.c.l.b16 %v2041
        %v2182 = vunpack.c.l.b16 %v2042
        %v2183 = vunpack.c.l.b16 %v2043
        %v2184 = vunpack.c.l.b16 %v2044
        %v2185 = vpack.c.b16 %v2182, %v2181
        %v2186 = vpack.c.b16 %v2184, %v2183
        %2189 = vmatprep.subr.bf16.mxu0 0
        %2190 = vmatpush1.bf16.msra.mxu0 %v2185
        %2191 = vmatprep.subr.bf16.mxu0 0
        %2192 = vmatpush1.bf16.msra.mxu0 %v2186
        %2193 = vmatprep.subr.bf16.mxu0 0
        %2194 = vmatpush1.bf16.msra.mxu0 0
        %2195 = vmatprep.subr.bf16.mxu0 0
        %2196 = vmatpush1.bf16.msra.mxu0 0
        %2197 = vmatprep.subr.bf16.mxu0 0
        %2198 = vmatpush1.bf16.msra.mxu0 0
        %2199 = vmatprep.subr.bf16.mxu0 0
        %2200 = vmatpush1.bf16.msra.mxu0 0
        %2201 = vmatprep.subr.bf16.mxu0 0
        %2202 = vmatpush1.bf16.msra.mxu0 0
        %2203 = vmatprep.subr.bf16.mxu0 0
        %2204 = vmatpush1.bf16.msra.mxu0 0
        %2205 = vmatprep.subr.bf16.mxu0 0
        %2206 = vmatpush1.bf16.msra.mxu0 0
        %2207 = vmatprep.subr.bf16.mxu0 0
        %2208 = vmatpush1.bf16.msra.mxu0 0
        %2209 = vmatprep.subr.bf16.mxu0 0
        %2210 = vmatpush1.bf16.msra.mxu0 0
        %2211 = vmatprep.subr.bf16.mxu0 0
        %2212 = vmatpush1.bf16.msra.mxu0 0
        %2213 = vmatprep.subr.bf16.mxu0 0
        %2214 = vmatpush1.bf16.msra.mxu0 0
        %2215 = vmatprep.subr.bf16.mxu0 0
        %2216 = vmatpush1.bf16.msra.mxu0 0
        %2217 = vmatprep.subr.bf16.mxu0 0
        %2218 = vmatpush1.bf16.msra.mxu0 0
        %2219 = vmatprep.subr.bf16.mxu0 0
        %2220 = vmatpush1.bf16.msra.mxu0 0
        %2221 = vmatprep.mubr.bf16.mxu0 0
        %2222 = vmatmul.mubr.bf16.gmra.mrb[0].mxu0 %v2135
        %v2223 = vpop.f32.mrb[0].mxu0
        %v2224 = vadd.f32 %v2109, %v2223
        %v2225 = vpop.f32.mrb[0].mxu0
        %v2226 = vpop.f32.mrb[0].mxu0
        %v2227 = vpop.f32.mrb[0].mxu0
        %2228 = vdwg.mxu0
        %v2233 = vunpack.c.l.b16 %v2045
        %v2234 = vunpack.c.l.b16 %v2046
        %v2235 = vunpack.c.l.b16 %v2047
        %v2236 = vunpack.c.l.b16 %v2048
        %v2237 = vpack.c.b16 %v2234, %v2233
        %v2238 = vpack.c.b16 %v2236, %v2235
        %2241 = vmatprep.subr.bf16.mxu0 0
        %2242 = vmatpush1.bf16.msra.mxu0 %v2237
        %2243 = vmatprep.subr.bf16.mxu0 0
        %2244 = vmatpush1.bf16.msra.mxu0 %v2238
        %2245 = vmatprep.subr.bf16.mxu0 0
        %2246 = vmatpush1.bf16.msra.mxu0 0
        %2247 = vmatprep.subr.bf16.mxu0 0
        %2248 = vmatpush1.bf16.msra.mxu0 0
        %2249 = vmatprep.subr.bf16.mxu0 0
        %2250 = vmatpush1.bf16.msra.mxu0 0
        %2251 = vmatprep.subr.bf16.mxu0 0
        %2252 = vmatpush1.bf16.msra.mxu0 0
        %2253 = vmatprep.subr.bf16.mxu0 0
        %2254 = vmatpush1.bf16.msra.mxu0 0
        %2255 = vmatprep.subr.bf16.mxu0 0
        %2256 = vmatpush1.bf16.msra.mxu0 0
        %2257 = vmatprep.subr.bf16.mxu0 0
        %2258 = vmatpush1.bf16.msra.mxu0 0
        %2259 = vmatprep.subr.bf16.mxu0 0
        %2260 = vmatpush1.bf16.msra.mxu0 0
        %2261 = vmatprep.subr.bf16.mxu0 0
        %2262 = vmatpush1.bf16.msra.mxu0 0
        %2263 = vmatprep.subr.bf16.mxu0 0
        %2264 = vmatpush1.bf16.msra.mxu0 0
        %2265 = vmatprep.subr.bf16.mxu0 0
        %2266 = vmatpush1.bf16.msra.mxu0 0
        %2267 = vmatprep.subr.bf16.mxu0 0
        %2268 = vmatpush1.bf16.msra.mxu0 0
        %2269 = vmatprep.subr.bf16.mxu0 0
        %2270 = vmatpush1.bf16.msra.mxu0 0
        %2271 = vmatprep.subr.bf16.mxu0 0
        %2272 = vmatpush1.bf16.msra.mxu0 0
        %2273 = vmatprep.mubr.bf16.mxu0 0
        %2274 = vmatmul.mubr.bf16.gmra.mrb[0].mxu0 %v2135
        %v2275 = vpop.f32.mrb[0].mxu0
        %v2276 = vadd.f32 %v2113, %v2275
        %v2277 = vpop.f32.mrb[0].mxu0
        %v2278 = vpop.f32.mrb[0].mxu0
        %v2279 = vpop.f32.mrb[0].mxu0
        %2280 = vdwg.mxu0
        %v2285 = vunpack.c.l.b16 %v2049
        %v2286 = vunpack.c.l.b16 %v2050
        %v2287 = vunpack.c.l.b16 %v2051
        %v2288 = vunpack.c.l.b16 %v2052
        %v2289 = vpack.c.b16 %v2286, %v2285
        %v2290 = vpack.c.b16 %v2288, %v2287
        %2293 = vmatprep.subr.bf16.mxu0 0
        %2294 = vmatpush1.bf16.msra.mxu0 %v2289
        %2295 = vmatprep.subr.bf16.mxu0 0
        %2296 = vmatpush1.bf16.msra.mxu0 %v2290
        %2297 = vmatprep.subr.bf16.mxu0 0
        %2298 = vmatpush1.bf16.msra.mxu0 0
        %2299 = vmatprep.subr.bf16.mxu0 0
        %2300 = vmatpush1.bf16.msra.mxu0 0
        %2301 = vmatprep.subr.bf16.mxu0 0
        %2302 = vmatpush1.bf16.msra.mxu0 0
        %2303 = vmatprep.subr.bf16.mxu0 0
        %2304 = vmatpush1.bf16.msra.mxu0 0
        %2305 = vmatprep.subr.bf16.mxu0 0
        %2306 = vmatpush1.bf16.msra.mxu0 0
        %2307 = vmatprep.subr.bf16.mxu0 0
        %2308 = vmatpush1.bf16.msra.mxu0 0
        %2309 = vmatprep.subr.bf16.mxu0 0
        %2310 = vmatpush1.bf16.msra.mxu0 0
        %2311 = vmatprep.subr.bf16.mxu0 0
        %2312 = vmatpush1.bf16.msra.mxu0 0
        %2313 = vmatprep.subr.bf16.mxu0 0
        %2314 = vmatpush1.bf16.msra.mxu0 0
        %2315 = vmatprep.subr.bf16.mxu0 0
        %2316 = vmatpush1.bf16.msra.mxu0 0
        %2317 = vmatprep.subr.bf16.mxu0 0
        %2318 = vmatpush1.bf16.msra.mxu0 0
        %2319 = vmatprep.subr.bf16.mxu0 0
        %2320 = vmatpush1.bf16.msra.mxu0 0
        %2321 = vmatprep.subr.bf16.mxu0 0
        %2322 = vmatpush1.bf16.msra.mxu0 0
        %2323 = vmatprep.subr.bf16.mxu0 0
        %2324 = vmatpush1.bf16.msra.mxu0 0
        %2325 = vmatprep.mubr.bf16.mxu0 0
        %2326 = vmatmul.mubr.bf16.gmra.mrb[0].mxu0 %v2135
        %v2327 = vpop.f32.mrb[0].mxu0
        %v2328 = vadd.f32 %v2117, %v2327
        %v2329 = vpop.f32.mrb[0].mxu0
        %v2330 = vpop.f32.mrb[0].mxu0
        %v2331 = vpop.f32.mrb[0].mxu0
        %2332 = vdwg.mxu0
        %v2337 = vlaneseq
        %v2338 = vshrl.u32 %v2337, 7
        %v2339 = vsub.s32 0, %v2338
        %v2340 = vrot.slane %v2090, %v2339
        %v2341 = vlaneseq
        %v2342 = vshrl.u32 %v2341, 7
        %v2343 = vsub.s32 0, %v2342
        %v2344 = vrot.slane %v2091, %v2343
        %v2345 = vlaneseq
        %v2346 = vshrl.u32 %v2345, 7
        %v2347 = vsub.s32 0, %v2346
        %v2348 = vrot.slane %v2092, %v2347
        %v2349 = vlaneseq
        %v2350 = vshrl.u32 %v2349, 7
        %v2351 = vsub.s32 0, %v2350
        %v2352 = vrot.slane %v2093, %v2351
        %v2361 = vunpack.c.l.b16 %v2053
        %v2362 = vunpack.c.l.b16 %v2054
        %v2363 = vunpack.c.l.b16 %v2055
        %v2364 = vunpack.c.l.b16 %v2056
        %v2365 = vpack.c.b16 %v2362, %v2361
        %v2366 = vpack.c.b16 %v2364, %v2363
        %2369 = vmatprep.subr.bf16.mxu0 0
        %2370 = vmatpush1.bf16.msra.mxu0 %v2365
        %2371 = vmatprep.subr.bf16.mxu0 0
        %2372 = vmatpush1.bf16.msra.mxu0 %v2366
        %2373 = vmatprep.subr.bf16.mxu0 0
        %2374 = vmatpush1.bf16.msra.mxu0 0
        %2375 = vmatprep.subr.bf16.mxu0 0
        %2376 = vmatpush1.bf16.msra.mxu0 0
        %2377 = vmatprep.subr.bf16.mxu0 0
        %2378 = vmatpush1.bf16.msra.mxu0 0
        %2379 = vmatprep.subr.bf16.mxu0 0
        %2380 = vmatpush1.bf16.msra.mxu0 0
        %2381 = vmatprep.subr.bf16.mxu0 0
        %2382 = vmatpush1.bf16.msra.mxu0 0
        %2383 = vmatprep.subr.bf16.mxu0 0
        %2384 = vmatpush1.bf16.msra.mxu0 0
        %2385 = vmatprep.subr.bf16.mxu0 0
        %2386 = vmatpush1.bf16.msra.mxu0 0
        %2387 = vmatprep.subr.bf16.mxu0 0
        %2388 = vmatpush1.bf16.msra.mxu0 0
        %2389 = vmatprep.subr.bf16.mxu0 0
        %2390 = vmatpush1.bf16.msra.mxu0 0
        %2391 = vmatprep.subr.bf16.mxu0 0
        %2392 = vmatpush1.bf16.msra.mxu0 0
        %2393 = vmatprep.subr.bf16.mxu0 0
        %2394 = vmatpush1.bf16.msra.mxu0 0
        %2395 = vmatprep.subr.bf16.mxu0 0
        %2396 = vmatpush1.bf16.msra.mxu0 0
        %2397 = vmatprep.subr.bf16.mxu0 0
        %2398 = vmatpush1.bf16.msra.mxu0 0
        %2399 = vmatprep.subr.bf16.mxu0 0
        %2400 = vmatpush1.bf16.msra.mxu0 0
        %2401 = vmatprep.mubr.bf16.mxu0 0
        %2402 = vmatmul.mubr.bf16.gmra.mrb[0].mxu0 %v2135
        %v2403 = vpop.f32.mrb[0].mxu0
        %v2404 = vadd.f32 %v2340, %v2403
        %v2405 = vpop.f32.mrb[0].mxu0
        %v2406 = vpop.f32.mrb[0].mxu0
        %v2407 = vpop.f32.mrb[0].mxu0
        %2408 = vdwg.mxu0
        %v2413 = vunpack.c.l.b16 %v2057
        %v2414 = vunpack.c.l.b16 %v2058
        %v2415 = vunpack.c.l.b16 %v2059
        %v2416 = vunpack.c.l.b16 %v2060
        %v2417 = vpack.c.b16 %v2414, %v2413
        %v2418 = vpack.c.b16 %v2416, %v2415
        %2421 = vmatprep.subr.bf16.mxu0 0
        %2422 = vmatpush1.bf16.msra.mxu0 %v2417
        %2423 = vmatprep.subr.bf16.mxu0 0
        %2424 = vmatpush1.bf16.msra.mxu0 %v2418
        %2425 = vmatprep.subr.bf16.mxu0 0
        %2426 = vmatpush1.bf16.msra.mxu0 0
        %2427 = vmatprep.subr.bf16.mxu0 0
        %2428 = vmatpush1.bf16.msra.mxu0 0
        %2429 = vmatprep.subr.bf16.mxu0 0
        %2430 = vmatpush1.bf16.msra.mxu0 0
        %2431 = vmatprep.subr.bf16.mxu0 0
        %2432 = vmatpush1.bf16.msra.mxu0 0
        %2433 = vmatprep.subr.bf16.mxu0 0
        %2434 = vmatpush1.bf16.msra.mxu0 0
        %2435 = vmatprep.subr.bf16.mxu0 0
        %2436 = vmatpush1.bf16.msra.mxu0 0
        %2437 = vmatprep.subr.bf16.mxu0 0
        %2438 = vmatpush1.bf16.msra.mxu0 0
        %2439 = vmatprep.subr.bf16.mxu0 0
        %2440 = vmatpush1.bf16.msra.mxu0 0
        %2441 = vmatprep.subr.bf16.mxu0 0
        %2442 = vmatpush1.bf16.msra.mxu0 0
        %2443 = vmatprep.subr.bf16.mxu0 0
        %2444 = vmatpush1.bf16.msra.mxu0 0
        %2445 = vmatprep.subr.bf16.mxu0 0
        %2446 = vmatpush1.bf16.msra.mxu0 0
        %2447 = vmatprep.subr.bf16.mxu0 0
        %2448 = vmatpush1.bf16.msra.mxu0 0
        %2449 = vmatprep.subr.bf16.mxu0 0
        %2450 = vmatpush1.bf16.msra.mxu0 0
        %2451 = vmatprep.subr.bf16.mxu0 0
        %2452 = vmatpush1.bf16.msra.mxu0 0
        %2453 = vmatprep.mubr.bf16.mxu0 0
        %2454 = vmatmul.mubr.bf16.gmra.mrb[0].mxu0 %v2135
        %v2455 = vpop.f32.mrb[0].mxu0
        %v2456 = vadd.f32 %v2344, %v2455
        %v2457 = vpop.f32.mrb[0].mxu0
        %v2458 = vpop.f32.mrb[0].mxu0
        %v2459 = vpop.f32.mrb[0].mxu0
        %2460 = vdwg.mxu0
        %v2465 = vunpack.c.l.b16 %v2061
        %v2466 = vunpack.c.l.b16 %v2062
        %v2467 = vunpack.c.l.b16 %v2063
        %v2468 = vunpack.c.l.b16 %v2064
        %v2469 = vpack.c.b16 %v2466, %v2465
        %v2470 = vpack.c.b16 %v2468, %v2467
        %2473 = vmatprep.subr.bf16.mxu0 0
        %2474 = vmatpush1.bf16.msra.mxu0 %v2469
        %2475 = vmatprep.subr.bf16.mxu0 0
        %2476 = vmatpush1.bf16.msra.mxu0 %v2470
        %2477 = vmatprep.subr.bf16.mxu0 0
        %2478 = vmatpush1.bf16.msra.mxu0 0
        %2479 = vmatprep.subr.bf16.mxu0 0
        %2480 = vmatpush1.bf16.msra.mxu0 0
        %2481 = vmatprep.subr.bf16.mxu0 0
        %2482 = vmatpush1.bf16.msra.mxu0 0
        %2483 = vmatprep.subr.bf16.mxu0 0
        %2484 = vmatpush1.bf16.msra.mxu0 0
        %2485 = vmatprep.subr.bf16.mxu0 0
        %2486 = vmatpush1.bf16.msra.mxu0 0
        %2487 = vmatprep.subr.bf16.mxu0 0
        %2488 = vmatpush1.bf16.msra.mxu0 0
        %2489 = vmatprep.subr.bf16.mxu0 0
        %2490 = vmatpush1.bf16.msra.mxu0 0
        %2491 = vmatprep.subr.bf16.mxu0 0
        %2492 = vmatpush1.bf16.msra.mxu0 0
        %2493 = vmatprep.subr.bf16.mxu0 0
        %2494 = vmatpush1.bf16.msra.mxu0 0
        %2495 = vmatprep.subr.bf16.mxu0 0
        %2496 = vmatpush1.bf16.msra.mxu0 0
        %2497 = vmatprep.subr.bf16.mxu0 0
        %2498 = vmatpush1.bf16.msra.mxu0 0
        %2499 = vmatprep.subr.bf16.mxu0 0
        %2500 = vmatpush1.bf16.msra.mxu0 0
        %2501 = vmatprep.subr.bf16.mxu0 0
        %2502 = vmatpush1.bf16.msra.mxu0 0
        %2503 = vmatprep.subr.bf16.mxu0 0
        %2504 = vmatpush1.bf16.msra.mxu0 0
        %2505 = vmatprep.mubr.bf16.mxu0 0
        %2506 = vmatmul.mubr.bf16.gmra.mrb[0].mxu0 %v2135
        %v2507 = vpop.f32.mrb[0].mxu0
        %v2508 = vadd.f32 %v2348, %v2507
        %v2509 = vpop.f32.mrb[0].mxu0
        %v2510 = vpop.f32.mrb[0].mxu0
        %v2511 = vpop.f32.mrb[0].mxu0
        %2512 = vdwg.mxu0
        %v2517 = vunpack.c.l.b16 %v2065
        %v2518 = vunpack.c.l.b16 %v2066
        %v2519 = vunpack.c.l.b16 %v2067
        %v2520 = vunpack.c.l.b16 %v2068
        %v2521 = vpack.c.b16 %v2518, %v2517
        %v2522 = vpack.c.b16 %v2520, %v2519
        %2525 = vmatprep.subr.bf16.mxu0 0
        %2526 = vmatpush1.bf16.msra.mxu0 %v2521
        %2527 = vmatprep.subr.bf16.mxu0 0
        %2528 = vmatpush1.bf16.msra.mxu0 %v2522
        %2529 = vmatprep.subr.bf16.mxu0 0
        %2530 = vmatpush1.bf16.msra.mxu0 0
        %2531 = vmatprep.subr.bf16.mxu0 0
        %2532 = vmatpush1.bf16.msra.mxu0 0
        %2533 = vmatprep.subr.bf16.mxu0 0
        %2534 = vmatpush1.bf16.msra.mxu0 0
        %2535 = vmatprep.subr.bf16.mxu0 0
        %2536 = vmatpush1.bf16.msra.mxu0 0
        %2537 = vmatprep.subr.bf16.mxu0 0
        %2538 = vmatpush1.bf16.msra.mxu0 0
        %2539 = vmatprep.subr.bf16.mxu0 0
        %2540 = vmatpush1.bf16.msra.mxu0 0
        %2541 = vmatprep.subr.bf16.mxu0 0
        %2542 = vmatpush1.bf16.msra.mxu0 0
        %2543 = vmatprep.subr.bf16.mxu0 0
        %2544 = vmatpush1.bf16.msra.mxu0 0
        %2545 = vmatprep.subr.bf16.mxu0 0
        %2546 = vmatpush1.bf16.msra.mxu0 0
        %2547 = vmatprep.subr.bf16.mxu0 0
        %2548 = vmatpush1.bf16.msra.mxu0 0
        %2549 = vmatprep.subr.bf16.mxu0 0
        %2550 = vmatpush1.bf16.msra.mxu0 0
        %2551 = vmatprep.subr.bf16.mxu0 0
        %2552 = vmatpush1.bf16.msra.mxu0 0
        %2553 = vmatprep.subr.bf16.mxu0 0
        %2554 = vmatpush1.bf16.msra.mxu0 0
        %2555 = vmatprep.subr.bf16.mxu0 0
        %2556 = vmatpush1.bf16.msra.mxu0 0
        %2557 = vmatprep.mubr.bf16.mxu0 0
        %2558 = vmatmul.mubr.bf16.gmra.mrb[0].mxu0 %v2135
        %v2559 = vpop.f32.mrb[0].mxu0
        %v2560 = vadd.f32 %v2352, %v2559
        %v2561 = vpop.f32.mrb[0].mxu0
        %v2562 = vpop.f32.mrb[0].mxu0
        %v2563 = vpop.f32.mrb[0].mxu0
        %2564 = vdwg.mxu0
        %v2569 = vlaneseq
        %v2570 = vshrl.u32 %v2569, 7
        %v2571 = vsub.s32 0, %v2570
        %v2572 = vrot.slane %v2094, %v2571
        %v2573 = vlaneseq
        %v2574 = vshrl.u32 %v2573, 7
        %v2575 = vsub.s32 0, %v2574
        %v2576 = vrot.slane %v2095, %v2575
        %v2577 = vlaneseq
        %v2578 = vshrl.u32 %v2577, 7
        %v2579 = vsub.s32 0, %v2578
        %v2580 = vrot.slane %v2096, %v2579
        %v2581 = vlaneseq
        %v2582 = vshrl.u32 %v2581, 7
        %v2583 = vsub.s32 0, %v2582
        %v2584 = vrot.slane %v2097, %v2583
        %v2593 = vunpack.c.l.b16 %v2069
        %v2594 = vunpack.c.l.b16 %v2070
        %v2595 = vunpack.c.l.b16 %v2071
        %v2596 = vunpack.c.l.b16 %v2072
        %v2597 = vpack.c.b16 %v2594, %v2593
        %v2598 = vpack.c.b16 %v2596, %v2595
        %2601 = vmatprep.subr.bf16.mxu0 0
        %2602 = vmatpush1.bf16.msra.mxu0 %v2597
        %2603 = vmatprep.subr.bf16.mxu0 0
        %2604 = vmatpush1.bf16.msra.mxu0 %v2598
        %2605 = vmatprep.subr.bf16.mxu0 0
        %2606 = vmatpush1.bf16.msra.mxu0 0
        %2607 = vmatprep.subr.bf16.mxu0 0
        %2608 = vmatpush1.bf16.msra.mxu0 0
        %2609 = vmatprep.subr.bf16.mxu0 0
        %2610 = vmatpush1.bf16.msra.mxu0 0
        %2611 = vmatprep.subr.bf16.mxu0 0
        %2612 = vmatpush1.bf16.msra.mxu0 0
        %2613 = vmatprep.subr.bf16.mxu0 0
        %2614 = vmatpush1.bf16.msra.mxu0 0
        %2615 = vmatprep.subr.bf16.mxu0 0
        %2616 = vmatpush1.bf16.msra.mxu0 0
        %2617 = vmatprep.subr.bf16.mxu0 0
        %2618 = vmatpush1.bf16.msra.mxu0 0
        %2619 = vmatprep.subr.bf16.mxu0 0
        %2620 = vmatpush1.bf16.msra.mxu0 0
        %2621 = vmatprep.subr.bf16.mxu0 0
        %2622 = vmatpush1.bf16.msra.mxu0 0
        %2623 = vmatprep.subr.bf16.mxu0 0
        %2624 = vmatpush1.bf16.msra.mxu0 0
        %2625 = vmatprep.subr.bf16.mxu0 0
        %2626 = vmatpush1.bf16.msra.mxu0 0
        %2627 = vmatprep.subr.bf16.mxu0 0
        %2628 = vmatpush1.bf16.msra.mxu0 0
        %2629 = vmatprep.subr.bf16.mxu0 0
        %2630 = vmatpush1.bf16.msra.mxu0 0
        %2631 = vmatprep.subr.bf16.mxu0 0
        %2632 = vmatpush1.bf16.msra.mxu0 0
        %2633 = vmatprep.mubr.bf16.mxu0 0
        %2634 = vmatmul.mubr.bf16.gmra.mrb[0].mxu0 %v2135
        %v2635 = vpop.f32.mrb[0].mxu0
        %v2636 = vadd.f32 %v2572, %v2635
        %v2637 = vpop.f32.mrb[0].mxu0
        %v2638 = vpop.f32.mrb[0].mxu0
        %v2639 = vpop.f32.mrb[0].mxu0
        %2640 = vdwg.mxu0
        %v2645 = vunpack.c.l.b16 %v2073
        %v2646 = vunpack.c.l.b16 %v2074
        %v2647 = vunpack.c.l.b16 %v2075
        %v2648 = vunpack.c.l.b16 %v2076
        %v2649 = vpack.c.b16 %v2646, %v2645
        %v2650 = vpack.c.b16 %v2648, %v2647
        %2653 = vmatprep.subr.bf16.mxu0 0
        %2654 = vmatpush1.bf16.msra.mxu0 %v2649
        %2655 = vmatprep.subr.bf16.mxu0 0
        %2656 = vmatpush1.bf16.msra.mxu0 %v2650
        %2657 = vmatprep.subr.bf16.mxu0 0
        %2658 = vmatpush1.bf16.msra.mxu0 0
        %2659 = vmatprep.subr.bf16.mxu0 0
        %2660 = vmatpush1.bf16.msra.mxu0 0
        %2661 = vmatprep.subr.bf16.mxu0 0
        %2662 = vmatpush1.bf16.msra.mxu0 0
        %2663 = vmatprep.subr.bf16.mxu0 0
        %2664 = vmatpush1.bf16.msra.mxu0 0
        %2665 = vmatprep.subr.bf16.mxu0 0
        %2666 = vmatpush1.bf16.msra.mxu0 0
        %2667 = vmatprep.subr.bf16.mxu0 0
        %2668 = vmatpush1.bf16.msra.mxu0 0
        %2669 = vmatprep.subr.bf16.mxu0 0
        %2670 = vmatpush1.bf16.msra.mxu0 0
        %2671 = vmatprep.subr.bf16.mxu0 0
        %2672 = vmatpush1.bf16.msra.mxu0 0
        %2673 = vmatprep.subr.bf16.mxu0 0
        %2674 = vmatpush1.bf16.msra.mxu0 0
        %2675 = vmatprep.subr.bf16.mxu0 0
        %2676 = vmatpush1.bf16.msra.mxu0 0
        %2677 = vmatprep.subr.bf16.mxu0 0
        %2678 = vmatpush1.bf16.msra.mxu0 0
        %2679 = vmatprep.subr.bf16.mxu0 0
        %2680 = vmatpush1.bf16.msra.mxu0 0
        %2681 = vmatprep.subr.bf16.mxu0 0
        %2682 = vmatpush1.bf16.msra.mxu0 0
        %2683 = vmatprep.subr.bf16.mxu0 0
        %2684 = vmatpush1.bf16.msra.mxu0 0
        %2685 = vmatprep.mubr.bf16.mxu0 0
        %2686 = vmatmul.mubr.bf16.gmra.mrb[0].mxu0 %v2135
        %v2687 = vpop.f32.mrb[0].mxu0
        %v2688 = vadd.f32 %v2576, %v2687
        %v2689 = vpop.f32.mrb[0].mxu0
        %v2690 = vpop.f32.mrb[0].mxu0
        %v2691 = vpop.f32.mrb[0].mxu0
        %2692 = vdwg.mxu0
        %v2697 = vunpack.c.l.b16 %v2077
        %v2698 = vunpack.c.l.b16 %v2078
        %v2699 = vunpack.c.l.b16 %v2079
        %v2700 = vunpack.c.l.b16 %v2080
        %v2701 = vpack.c.b16 %v2698, %v2697
        %v2702 = vpack.c.b16 %v2700, %v2699
        %2705 = vmatprep.subr.bf16.mxu0 0
        %2706 = vmatpush1.bf16.msra.mxu0 %v2701
        %2707 = vmatprep.subr.bf16.mxu0 0
        %2708 = vmatpush1.bf16.msra.mxu0 %v2702
        %2709 = vmatprep.subr.bf16.mxu0 0
        %2710 = vmatpush1.bf16.msra.mxu0 0
        %2711 = vmatprep.subr.bf16.mxu0 0
        %2712 = vmatpush1.bf16.msra.mxu0 0
        %2713 = vmatprep.subr.bf16.mxu0 0
        %2714 = vmatpush1.bf16.msra.mxu0 0
        %2715 = vmatprep.subr.bf16.mxu0 0
        %2716 = vmatpush1.bf16.msra.mxu0 0
        %2717 = vmatprep.subr.bf16.mxu0 0
        %2718 = vmatpush1.bf16.msra.mxu0 0
        %2719 = vmatprep.subr.bf16.mxu0 0
        %2720 = vmatpush1.bf16.msra.mxu0 0
        %2721 = vmatprep.subr.bf16.mxu0 0
        %2722 = vmatpush1.bf16.msra.mxu0 0
        %2723 = vmatprep.subr.bf16.mxu0 0
        %2724 = vmatpush1.bf16.msra.mxu0 0
        %2725 = vmatprep.subr.bf16.mxu0 0
        %2726 = vmatpush1.bf16.msra.mxu0 0
        %2727 = vmatprep.subr.bf16.mxu0 0
        %2728 = vmatpush1.bf16.msra.mxu0 0
        %2729 = vmatprep.subr.bf16.mxu0 0
        %2730 = vmatpush1.bf16.msra.mxu0 0
        %2731 = vmatprep.subr.bf16.mxu0 0
        %2732 = vmatpush1.bf16.msra.mxu0 0
        %2733 = vmatprep.subr.bf16.mxu0 0
        %2734 = vmatpush1.bf16.msra.mxu0 0
        %2735 = vmatprep.subr.bf16.mxu0 0
        %2736 = vmatpush1.bf16.msra.mxu0 0
        %2737 = vmatprep.mubr.bf16.mxu0 0
        %2738 = vmatmul.mubr.bf16.gmra.mrb[0].mxu0 %v2135
        %v2739 = vpop.f32.mrb[0].mxu0
        %v2740 = vadd.f32 %v2580, %v2739
        %v2741 = vpop.f32.mrb[0].mxu0
        %v2742 = vpop.f32.mrb[0].mxu0
        %v2743 = vpop.f32.mrb[0].mxu0
        %2744 = vdwg.mxu0
        %v2749 = vunpack.c.l.b16 %v2081
        %v2750 = vunpack.c.l.b16 %v2082
        %v2751 = vunpack.c.l.b16 %v2083
        %v2752 = vunpack.c.l.b16 %v2084
        %v2753 = vpack.c.b16 %v2750, %v2749
        %v2754 = vpack.c.b16 %v2752, %v2751
        %2757 = vmatprep.subr.bf16.mxu0 0
        %2758 = vmatpush1.bf16.msra.mxu0 %v2753
        %2759 = vmatprep.subr.bf16.mxu0 0
        %2760 = vmatpush1.bf16.msra.mxu0 %v2754
        %2761 = vmatprep.subr.bf16.mxu0 0
        %2762 = vmatpush1.bf16.msra.mxu0 0
        %2763 = vmatprep.subr.bf16.mxu0 0
        %2764 = vmatpush1.bf16.msra.mxu0 0
        %2765 = vmatprep.subr.bf16.mxu0 0
        %2766 = vmatpush1.bf16.msra.mxu0 0
        %2767 = vmatprep.subr.bf16.mxu0 0
        %2768 = vmatpush1.bf16.msra.mxu0 0
        %2769 = vmatprep.subr.bf16.mxu0 0
        %2770 = vmatpush1.bf16.msra.mxu0 0
        %2771 = vmatprep.subr.bf16.mxu0 0
        %2772 = vmatpush1.bf16.msra.mxu0 0
        %2773 = vmatprep.subr.bf16.mxu0 0
        %2774 = vmatpush1.bf16.msra.mxu0 0
        %2775 = vmatprep.subr.bf16.mxu0 0
        %2776 = vmatpush1.bf16.msra.mxu0 0
        %2777 = vmatprep.subr.bf16.mxu0 0
        %2778 = vmatpush1.bf16.msra.mxu0 0
        %2779 = vmatprep.subr.bf16.mxu0 0
        %2780 = vmatpush1.bf16.msra.mxu0 0
        %2781 = vmatprep.subr.bf16.mxu0 0
        %2782 = vmatpush1.bf16.msra.mxu0 0
        %2783 = vmatprep.subr.bf16.mxu0 0
        %2784 = vmatpush1.bf16.msra.mxu0 0
        %2785 = vmatprep.subr.bf16.mxu0 0
        %2786 = vmatpush1.bf16.msra.mxu0 0
        %2787 = vmatprep.subr.bf16.mxu0 0
        %2788 = vmatpush1.bf16.msra.mxu0 0
        %2789 = vmatprep.mubr.bf16.mxu0 0
        %2790 = vmatmul.mubr.bf16.gmra.mrb[0].mxu0 %v2135
        %v2791 = vpop.f32.mrb[0].mxu0
        %v2792 = vadd.f32 %v2584, %v2791
        %v2793 = vpop.f32.mrb[0].mxu0
        %v2794 = vpop.f32.mrb[0].mxu0
        %v2795 = vpop.f32.mrb[0].mxu0
        %2796 = vdwg.mxu0
        %v2797 = vpack.c.bf16 %v2172, %v2172
        %v2798 = vpack.c.bf16 %v2224, %v2224
        %v2799 = vpack.c.bf16 %v2276, %v2276
        %v2800 = vpack.c.bf16 %v2328, %v2328
        %v2801 = vpack.c.bf16 %v2404, %v2404
        %v2802 = vpack.c.bf16 %v2456, %v2456
        %v2803 = vpack.c.bf16 %v2508, %v2508
        %v2804 = vpack.c.bf16 %v2560, %v2560
        %v2806 = vsel %vm1201, %v2797, 0
        %v2809 = vsel %vm1201, %v2801, 0
        %2811 = vmatprep.subr.bf16.mxu0 0
        %2812 = vmatpush1.bf16.xpose.msra.mxu0 %v2809
        %2813 = vmatprep.subr.bf16.mxu0 0
        %2814 = vmatpush1.bf16.xpose.msra.mxu0 0
        %2815 = vmatprep.subr.bf16.mxu0 0
        %2816 = vmatpush1.bf16.xpose.msra.mxu0 0
        %2817 = vmatprep.subr.bf16.mxu0 0
        %2818 = vmatpush1.bf16.xpose.msra.mxu0 0
        %2819 = vmatprep.subr.bf16.mxu0 0
        %2820 = vmatpush1.bf16.xpose.msra.mxu0 0
        %2821 = vmatprep.subr.bf16.mxu0 0
        %2822 = vmatpush1.bf16.xpose.msra.mxu0 0
        %2823 = vmatprep.subr.bf16.mxu0 0
        %2824 = vmatpush1.bf16.xpose.msra.mxu0 0
        %2825 = vmatprep.subr.bf16.mxu0 0
        %2826 = vmatpush1.bf16.xpose.msra.mxu0 0
        %2827 = vmatprep.subr.bf16.mxu0 0
        %2828 = vmatpush1.bf16.xpose.msra.mxu0 0
        %2829 = vmatprep.subr.bf16.mxu0 0
        %2830 = vmatpush1.bf16.xpose.msra.mxu0 0
        %2831 = vmatprep.subr.bf16.mxu0 0
        %2832 = vmatpush1.bf16.xpose.msra.mxu0 0
        %2833 = vmatprep.subr.bf16.mxu0 0
        %2834 = vmatpush1.bf16.xpose.msra.mxu0 0
        %2835 = vmatprep.subr.bf16.mxu0 0
        %2836 = vmatpush1.bf16.xpose.msra.mxu0 0
        %2837 = vmatprep.subr.bf16.mxu0 0
        %2838 = vmatpush1.bf16.xpose.msra.mxu0 0
        %2839 = vmatprep.subr.bf16.mxu0 0
        %2840 = vmatpush1.bf16.xpose.msra.mxu0 0
        %2841 = vmatprep.subr.bf16.mxu0 0
        %2842 = vmatpush1.bf16.xpose.msra.mxu0 0
        %2843 = vmatprep.mubr.bf16.mxu0 0
        %2844 = vmatmul.mubr.bf16.gmra.mrb[0].mxu0 %v2806
        %v2845 = vpop.f32.mrb[0].mxu0
        %v2846 = vadd.f32 %v1199, %v2845
        %v2847 = vpop.f32.mrb[0].mxu0
        %v2848 = vpop.f32.mrb[0].mxu0
        %v2849 = vpop.f32.mrb[0].mxu0
        %2850 = vdwg.mxu0
        %v2852 = vsel %vm1201, %v2798, 0
        %v2855 = vsel %vm1201, %v2802, 0
        %2857 = vmatprep.subr.bf16.mxu0 0
        %2858 = vmatpush1.bf16.xpose.msra.mxu0 %v2855
        %2859 = vmatprep.subr.bf16.mxu0 0
        %2860 = vmatpush1.bf16.xpose.msra.mxu0 0
        %2861 = vmatprep.subr.bf16.mxu0 0
        %2862 = vmatpush1.bf16.xpose.msra.mxu0 0
        %2863 = vmatprep.subr.bf16.mxu0 0
        %2864 = vmatpush1.bf16.xpose.msra.mxu0 0
        %2865 = vmatprep.subr.bf16.mxu0 0
        %2866 = vmatpush1.bf16.xpose.msra.mxu0 0
        %2867 = vmatprep.subr.bf16.mxu0 0
        %2868 = vmatpush1.bf16.xpose.msra.mxu0 0
        %2869 = vmatprep.subr.bf16.mxu0 0
        %2870 = vmatpush1.bf16.xpose.msra.mxu0 0
        %2871 = vmatprep.subr.bf16.mxu0 0
        %2872 = vmatpush1.bf16.xpose.msra.mxu0 0
        %2873 = vmatprep.subr.bf16.mxu0 0
        %2874 = vmatpush1.bf16.xpose.msra.mxu0 0
        %2875 = vmatprep.subr.bf16.mxu0 0
        %2876 = vmatpush1.bf16.xpose.msra.mxu0 0
        %2877 = vmatprep.subr.bf16.mxu0 0
        %2878 = vmatpush1.bf16.xpose.msra.mxu0 0
        %2879 = vmatprep.subr.bf16.mxu0 0
        %2880 = vmatpush1.bf16.xpose.msra.mxu0 0
        %2881 = vmatprep.subr.bf16.mxu0 0
        %2882 = vmatpush1.bf16.xpose.msra.mxu0 0
        %2883 = vmatprep.subr.bf16.mxu0 0
        %2884 = vmatpush1.bf16.xpose.msra.mxu0 0
        %2885 = vmatprep.subr.bf16.mxu0 0
        %2886 = vmatpush1.bf16.xpose.msra.mxu0 0
        %2887 = vmatprep.subr.bf16.mxu0 0
        %2888 = vmatpush1.bf16.xpose.msra.mxu0 0
        %2889 = vmatprep.mubr.bf16.mxu0 0
        %2890 = vmatmul.mubr.bf16.gmra.mrb[0].mxu0 %v2852
        %v2891 = vpop.f32.mrb[0].mxu0
        %v2892 = vadd.f32 %v1199, %v2891
        %v2893 = vpop.f32.mrb[0].mxu0
        %v2894 = vpop.f32.mrb[0].mxu0
        %v2895 = vpop.f32.mrb[0].mxu0
        %2896 = vdwg.mxu0
        %v2898 = vsel %vm1201, %v2799, 0
        %v2901 = vsel %vm1201, %v2803, 0
        %2903 = vmatprep.subr.bf16.mxu0 0
        %2904 = vmatpush1.bf16.xpose.msra.mxu0 %v2901
        %2905 = vmatprep.subr.bf16.mxu0 0
        %2906 = vmatpush1.bf16.xpose.msra.mxu0 0
        %2907 = vmatprep.subr.bf16.mxu0 0
        %2908 = vmatpush1.bf16.xpose.msra.mxu0 0
        %2909 = vmatprep.subr.bf16.mxu0 0
        %2910 = vmatpush1.bf16.xpose.msra.mxu0 0
        %2911 = vmatprep.subr.bf16.mxu0 0
        %2912 = vmatpush1.bf16.xpose.msra.mxu0 0
        %2913 = vmatprep.subr.bf16.mxu0 0
        %2914 = vmatpush1.bf16.xpose.msra.mxu0 0
        %2915 = vmatprep.subr.bf16.mxu0 0
        %2916 = vmatpush1.bf16.xpose.msra.mxu0 0
        %2917 = vmatprep.subr.bf16.mxu0 0
        %2918 = vmatpush1.bf16.xpose.msra.mxu0 0
        %2919 = vmatprep.subr.bf16.mxu0 0
        %2920 = vmatpush1.bf16.xpose.msra.mxu0 0
        %2921 = vmatprep.subr.bf16.mxu0 0
        %2922 = vmatpush1.bf16.xpose.msra.mxu0 0
        %2923 = vmatprep.subr.bf16.mxu0 0
        %2924 = vmatpush1.bf16.xpose.msra.mxu0 0
        %2925 = vmatprep.subr.bf16.mxu0 0
        %2926 = vmatpush1.bf16.xpose.msra.mxu0 0
        %2927 = vmatprep.subr.bf16.mxu0 0
        %2928 = vmatpush1.bf16.xpose.msra.mxu0 0
        %2929 = vmatprep.subr.bf16.mxu0 0
        %2930 = vmatpush1.bf16.xpose.msra.mxu0 0
        %2931 = vmatprep.subr.bf16.mxu0 0
        %2932 = vmatpush1.bf16.xpose.msra.mxu0 0
        %2933 = vmatprep.subr.bf16.mxu0 0
        %2934 = vmatpush1.bf16.xpose.msra.mxu0 0
        %2935 = vmatprep.mubr.bf16.mxu0 0
        %2936 = vmatmul.mubr.bf16.gmra.mrb[0].mxu0 %v2898
        %v2937 = vpop.f32.mrb[0].mxu0
        %v2938 = vadd.f32 %v1199, %v2937
        %v2939 = vpop.f32.mrb[0].mxu0
        %v2940 = vpop.f32.mrb[0].mxu0
        %v2941 = vpop.f32.mrb[0].mxu0
        %2942 = vdwg.mxu0
        %v2944 = vsel %vm1201, %v2800, 0
        %v2947 = vsel %vm1201, %v2804, 0
        %2949 = vmatprep.subr.bf16.mxu0 0
        %2950 = vmatpush1.bf16.xpose.msra.mxu0 %v2947
        %2951 = vmatprep.subr.bf16.mxu0 0
        %2952 = vmatpush1.bf16.xpose.msra.mxu0 0
        %2953 = vmatprep.subr.bf16.mxu0 0
        %2954 = vmatpush1.bf16.xpose.msra.mxu0 0
        %2955 = vmatprep.subr.bf16.mxu0 0
        %2956 = vmatpush1.bf16.xpose.msra.mxu0 0
        %2957 = vmatprep.subr.bf16.mxu0 0
        %2958 = vmatpush1.bf16.xpose.msra.mxu0 0
        %2959 = vmatprep.subr.bf16.mxu0 0
        %2960 = vmatpush1.bf16.xpose.msra.mxu0 0
        %2961 = vmatprep.subr.bf16.mxu0 0
        %2962 = vmatpush1.bf16.xpose.msra.mxu0 0
        %2963 = vmatprep.subr.bf16.mxu0 0
        %2964 = vmatpush1.bf16.xpose.msra.mxu0 0
        %2965 = vmatprep.subr.bf16.mxu0 0
        %2966 = vmatpush1.bf16.xpose.msra.mxu0 0
        %2967 = vmatprep.subr.bf16.mxu0 0
        %2968 = vmatpush1.bf16.xpose.msra.mxu0 0
        %2969 = vmatprep.subr.bf16.mxu0 0
        %2970 = vmatpush1.bf16.xpose.msra.mxu0 0
        %2971 = vmatprep.subr.bf16.mxu0 0
        %2972 = vmatpush1.bf16.xpose.msra.mxu0 0
        %2973 = vmatprep.subr.bf16.mxu0 0
        %2974 = vmatpush1.bf16.xpose.msra.mxu0 0
        %2975 = vmatprep.subr.bf16.mxu0 0
        %2976 = vmatpush1.bf16.xpose.msra.mxu0 0
        %2977 = vmatprep.subr.bf16.mxu0 0
        %2978 = vmatpush1.bf16.xpose.msra.mxu0 0
        %2979 = vmatprep.subr.bf16.mxu0 0
        %2980 = vmatpush1.bf16.xpose.msra.mxu0 0
        %2981 = vmatprep.mubr.bf16.mxu0 0
        %2982 = vmatmul.mubr.bf16.gmra.mrb[0].mxu0 %v2944
        %v2983 = vpop.f32.mrb[0].mxu0
        %v2984 = vadd.f32 %v1199, %v2983
        %v2985 = vpop.f32.mrb[0].mxu0
        %v2986 = vpop.f32.mrb[0].mxu0
        %v2987 = vpop.f32.mrb[0].mxu0
        %2988 = vdwg.mxu0
        %v2989 = vsel %vm1201, %v2846, -inf
        %2990 = vmax.xlane.f32.xlu0 %v2989
        %v2991 = vpop.xlane.xlu0 %2990
        %v2992 = vsel %vm1201, %v2892, -inf
        %2993 = vmax.xlane.f32.xlu0 %v2992
        %v2994 = vpop.xlane.xlu0 %2993
        %v2995 = vsel %vm1201, %v2938, -inf
        %2996 = vmax.xlane.f32.xlu0 %v2995
        %v2997 = vpop.xlane.xlu0 %2996
        %v2998 = vsel %vm1201, %v2984, -inf
        %2999 = vmax.xlane.f32.xlu0 %v2998
        %v3000 = vpop.xlane.xlu0 %2999
        %v3001 = vsub.f32 %v2846, %v2991
        %v3002 = vsub.f32 %v2892, %v2994
        %v3003 = vsub.f32 %v2938, %v2997
        %v3004 = vsub.f32 %v2984, %v3000
        %v3005 = vmul.f32 %v3001, 1.442695
        %v3006 = vpow.pop %v3005
        %v3007 = vmul.f32 %v3002, 1.442695
        %v3008 = vpow.pop %v3007
        %v3009 = vmul.f32 %v3003, 1.442695
        %v3010 = vpow.pop %v3009
        %v3011 = vmul.f32 %v3004, 1.442695
        %v3012 = vpow.pop %v3011
        %v3013 = vsel %vm1201, %v3006, 0.0
        %3014 = vadd.xlane.f32.xlu0 %v3013
        %v3015 = vpop.xlane.xlu0 %3014
        %v3016 = vsel %vm1201, %v3008, 0.0
        %3017 = vadd.xlane.f32.xlu0 %v3016
        %v3018 = vpop.xlane.xlu0 %3017
        %v3019 = vsel %vm1201, %v3010, 0.0
        %3020 = vadd.xlane.f32.xlu0 %v3019
        %v3021 = vpop.xlane.xlu0 %3020
        %v3022 = vsel %vm1201, %v3012, 0.0
        %3023 = vadd.xlane.f32.xlu0 %v3022
        %v3024 = vpop.xlane.xlu0 %3023
        %v3025 = vrcp.pop %v3015
        %v3026 = vrcp.pop %v3018
        %v3027 = vrcp.pop %v3021
        %v3028 = vrcp.pop %v3024
        %v3029 = vmul.f32 %v3006, %v3025
        %v3030 = vmul.f32 %v3008, %v3026
        %v3031 = vmul.f32 %v3010, %v3027
        %v3032 = vmul.f32 %v3012, %v3028
        %v3033 = vpack.c.bf16 %v3029, %v3029
        %v3034 = vpack.c.bf16 %v3030, %v3030
        %v3035 = vpack.c.bf16 %v3031, %v3031
        %v3036 = vpack.c.bf16 %v3032, %v3032
        %v3037 = vpack.c.bf16 %v2636, %v2636
        %v3038 = vpack.c.bf16 %v2688, %v2688
        %v3039 = vpack.c.bf16 %v2740, %v2740
        %v3040 = vpack.c.bf16 %v2792, %v2792
        %v3042 = vsel %vm1201, %v3033, 0
        %v3045 = vsel %vm1441, %v3037, 0
        %3047 = vmatprep.subr.bf16.mxu0 0
        %3048 = vmatpush1.bf16.msra.mxu0 %v3045
        %3049 = vmatprep.subr.bf16.mxu0 0
        %3050 = vmatpush1.bf16.msra.mxu0 0
        %3051 = vmatprep.subr.bf16.mxu0 0
        %3052 = vmatpush1.bf16.msra.mxu0 0
        %3053 = vmatprep.subr.bf16.mxu0 0
        %3054 = vmatpush1.bf16.msra.mxu0 0
        %3055 = vmatprep.subr.bf16.mxu0 0
        %3056 = vmatpush1.bf16.msra.mxu0 0
        %3057 = vmatprep.subr.bf16.mxu0 0
        %3058 = vmatpush1.bf16.msra.mxu0 0
        %3059 = vmatprep.subr.bf16.mxu0 0
        %3060 = vmatpush1.bf16.msra.mxu0 0
        %3061 = vmatprep.subr.bf16.mxu0 0
        %3062 = vmatpush1.bf16.msra.mxu0 0
        %3063 = vmatprep.subr.bf16.mxu0 0
        %3064 = vmatpush1.bf16.msra.mxu0 0
        %3065 = vmatprep.subr.bf16.mxu0 0
        %3066 = vmatpush1.bf16.msra.mxu0 0
        %3067 = vmatprep.subr.bf16.mxu0 0
        %3068 = vmatpush1.bf16.msra.mxu0 0
        %3069 = vmatprep.subr.bf16.mxu0 0
        %3070 = vmatpush1.bf16.msra.mxu0 0
        %3071 = vmatprep.subr.bf16.mxu0 0
        %3072 = vmatpush1.bf16.msra.mxu0 0
        %3073 = vmatprep.subr.bf16.mxu0 0
        %3074 = vmatpush1.bf16.msra.mxu0 0
        %3075 = vmatprep.subr.bf16.mxu0 0
        %3076 = vmatpush1.bf16.msra.mxu0 0
        %3077 = vmatprep.subr.bf16.mxu0 0
        %3078 = vmatpush1.bf16.msra.mxu0 0
        %3079 = vmatprep.mubr.bf16.mxu0 0
        %3080 = vmatmul.mubr.bf16.gmra.mrb[0].mxu0 %v3042
        %v3081 = vpop.f32.mrb[0].mxu0
        %v3082 = vadd.f32 0.0, %v3081
        %v3083 = vpop.f32.mrb[0].mxu0
        %v3084 = vpop.f32.mrb[0].mxu0
        %v3085 = vpop.f32.mrb[0].mxu0
        %3086 = vdwg.mxu0
        %v3088 = vsel %vm1201, %v3034, 0
        %v3091 = vsel %vm1441, %v3038, 0
        %3093 = vmatprep.subr.bf16.mxu0 0
        %3094 = vmatpush1.bf16.msra.mxu0 %v3091
        %3095 = vmatprep.subr.bf16.mxu0 0
        %3096 = vmatpush1.bf16.msra.mxu0 0
        %3097 = vmatprep.subr.bf16.mxu0 0
        %3098 = vmatpush1.bf16.msra.mxu0 0
        %3099 = vmatprep.subr.bf16.mxu0 0
        %3100 = vmatpush1.bf16.msra.mxu0 0
        %3101 = vmatprep.subr.bf16.mxu0 0
        %3102 = vmatpush1.bf16.msra.mxu0 0
        %3103 = vmatprep.subr.bf16.mxu0 0
        %3104 = vmatpush1.bf16.msra.mxu0 0
        %3105 = vmatprep.subr.bf16.mxu0 0
        %3106 = vmatpush1.bf16.msra.mxu0 0
        %3107 = vmatprep.subr.bf16.mxu0 0
        %3108 = vmatpush1.bf16.msra.mxu0 0
        %3109 = vmatprep.subr.bf16.mxu0 0
        %3110 = vmatpush1.bf16.msra.mxu0 0
        %3111 = vmatprep.subr.bf16.mxu0 0
        %3112 = vmatpush1.bf16.msra.mxu0 0
        %3113 = vmatprep.subr.bf16.mxu0 0
        %3114 = vmatpush1.bf16.msra.mxu0 0
        %3115 = vmatprep.subr.bf16.mxu0 0
        %3116 = vmatpush1.bf16.msra.mxu0 0
        %3117 = vmatprep.subr.bf16.mxu0 0
        %3118 = vmatpush1.bf16.msra.mxu0 0
        %3119 = vmatprep.subr.bf16.mxu0 0
        %3120 = vmatpush1.bf16.msra.mxu0 0
        %3121 = vmatprep.subr.bf16.mxu0 0
        %3122 = vmatpush1.bf16.msra.mxu0 0
        %3123 = vmatprep.subr.bf16.mxu0 0
        %3124 = vmatpush1.bf16.msra.mxu0 0
        %3125 = vmatprep.mubr.bf16.mxu0 0
        %3126 = vmatmul.mubr.bf16.gmra.mrb[0].mxu0 %v3088
        %v3127 = vpop.f32.mrb[0].mxu0
        %v3128 = vadd.f32 0.0, %v3127
        %v3129 = vpop.f32.mrb[0].mxu0
        %v3130 = vpop.f32.mrb[0].mxu0
        %v3131 = vpop.f32.mrb[0].mxu0
        %3132 = vdwg.mxu0
        %v3134 = vsel %vm1201, %v3035, 0
        %v3137 = vsel %vm1441, %v3039, 0
        %3139 = vmatprep.subr.bf16.mxu0 0
        %3140 = vmatpush1.bf16.msra.mxu0 %v3137
        %3141 = vmatprep.subr.bf16.mxu0 0
        %3142 = vmatpush1.bf16.msra.mxu0 0
        %3143 = vmatprep.subr.bf16.mxu0 0
        %3144 = vmatpush1.bf16.msra.mxu0 0
        %3145 = vmatprep.subr.bf16.mxu0 0
        %3146 = vmatpush1.bf16.msra.mxu0 0
        %3147 = vmatprep.subr.bf16.mxu0 0
        %3148 = vmatpush1.bf16.msra.mxu0 0
        %3149 = vmatprep.subr.bf16.mxu0 0
        %3150 = vmatpush1.bf16.msra.mxu0 0
        %3151 = vmatprep.subr.bf16.mxu0 0
        %3152 = vmatpush1.bf16.msra.mxu0 0
        %3153 = vmatprep.subr.bf16.mxu0 0
        %3154 = vmatpush1.bf16.msra.mxu0 0
        %3155 = vmatprep.subr.bf16.mxu0 0
        %3156 = vmatpush1.bf16.msra.mxu0 0
        %3157 = vmatprep.subr.bf16.mxu0 0
        %3158 = vmatpush1.bf16.msra.mxu0 0
        %3159 = vmatprep.subr.bf16.mxu0 0
        %3160 = vmatpush1.bf16.msra.mxu0 0
        %3161 = vmatprep.subr.bf16.mxu0 0
        %3162 = vmatpush1.bf16.msra.mxu0 0
        %3163 = vmatprep.subr.bf16.mxu0 0
        %3164 = vmatpush1.bf16.msra.mxu0 0
        %3165 = vmatprep.subr.bf16.mxu0 0
        %3166 = vmatpush1.bf16.msra.mxu0 0
        %3167 = vmatprep.subr.bf16.mxu0 0
        %3168 = vmatpush1.bf16.msra.mxu0 0
        %3169 = vmatprep.subr.bf16.mxu0 0
        %3170 = vmatpush1.bf16.msra.mxu0 0
        %3171 = vmatprep.mubr.bf16.mxu0 0
        %3172 = vmatmul.mubr.bf16.gmra.mrb[0].mxu0 %v3134
        %v3173 = vpop.f32.mrb[0].mxu0
        %v3174 = vadd.f32 0.0, %v3173
        %v3175 = vpop.f32.mrb[0].mxu0
        %v3176 = vpop.f32.mrb[0].mxu0
        %v3177 = vpop.f32.mrb[0].mxu0
        %3178 = vdwg.mxu0
        %v3180 = vsel %vm1201, %v3036, 0
        %v3183 = vsel %vm1441, %v3040, 0
        %3185 = vmatprep.subr.bf16.mxu0 0
        %3186 = vmatpush1.bf16.msra.mxu0 %v3183
        %3187 = vmatprep.subr.bf16.mxu0 0
        %3188 = vmatpush1.bf16.msra.mxu0 0
        %3189 = vmatprep.subr.bf16.mxu0 0
        %3190 = vmatpush1.bf16.msra.mxu0 0
        %3191 = vmatprep.subr.bf16.mxu0 0
        %3192 = vmatpush1.bf16.msra.mxu0 0
        %3193 = vmatprep.subr.bf16.mxu0 0
        %3194 = vmatpush1.bf16.msra.mxu0 0
        %3195 = vmatprep.subr.bf16.mxu0 0
        %3196 = vmatpush1.bf16.msra.mxu0 0
        %3197 = vmatprep.subr.bf16.mxu0 0
        %3198 = vmatpush1.bf16.msra.mxu0 0
        %3199 = vmatprep.subr.bf16.mxu0 0
        %3200 = vmatpush1.bf16.msra.mxu0 0
        %3201 = vmatprep.subr.bf16.mxu0 0
        %3202 = vmatpush1.bf16.msra.mxu0 0
        %3203 = vmatprep.subr.bf16.mxu0 0
        %3204 = vmatpush1.bf16.msra.mxu0 0
        %3205 = vmatprep.subr.bf16.mxu0 0
        %3206 = vmatpush1.bf16.msra.mxu0 0
        %3207 = vmatprep.subr.bf16.mxu0 0
        %3208 = vmatpush1.bf16.msra.mxu0 0
        %3209 = vmatprep.subr.bf16.mxu0 0
        %3210 = vmatpush1.bf16.msra.mxu0 0
        %3211 = vmatprep.subr.bf16.mxu0 0
        %3212 = vmatpush1.bf16.msra.mxu0 0
        %3213 = vmatprep.subr.bf16.mxu0 0
        %3214 = vmatpush1.bf16.msra.mxu0 0
        %3215 = vmatprep.subr.bf16.mxu0 0
        %3216 = vmatpush1.bf16.msra.mxu0 0
        %3217 = vmatprep.mubr.bf16.mxu0 0
        %3218 = vmatmul.mubr.bf16.gmra.mrb[0].mxu0 %v3180
        %v3219 = vpop.f32.mrb[0].mxu0
        %v3220 = vadd.f32 0.0, %v3219
        %v3221 = vpop.f32.mrb[0].mxu0
        %v3222 = vpop.f32.mrb[0].mxu0
        %v3223 = vpop.f32.mrb[0].mxu0
        %3224 = vdwg.mxu0
        %v3225 = vpack.c.bf16 %v3082, %v3082
        %v3226 = vpack.c.bf16 %v3128, %v3128
        %v3227 = vpack.c.bf16 %v3174, %v3174
        %v3228 = vpack.c.bf16 %v3220, %v3220
        %s3229 = scalar_lea.vmem %s4, 16
        %v3230 = vld [vmem:[%s3229] sm:$0xf]
        %v3231 = vld [vmem:[%s3229 + $0x4] sm:$0xf]
        %v3232 = vld [vmem:[%s3229 + $0x8] sm:$0xf]
        %v3233 = vld [vmem:[%s3229 + $0xc] sm:$0xf]
        %v3235 = vsel %vm1201, %v3225, 0
        %v3238 = vsel %vm1441, %v3230, 0
        %3240 = vmatprep.subr.bf16.mxu0 0
        %3241 = vmatpush1.bf16.msra.mxu0 %v3238
        %3242 = vmatprep.subr.bf16.mxu0 0
        %3243 = vmatpush1.bf16.msra.mxu0 0
        %3244 = vmatprep.subr.bf16.mxu0 0
        %3245 = vmatpush1.bf16.msra.mxu0 0
        %3246 = vmatprep.subr.bf16.mxu0 0
        %3247 = vmatpush1.bf16.msra.mxu0 0
        %3248 = vmatprep.subr.bf16.mxu0 0
        %3249 = vmatpush1.bf16.msra.mxu0 0
        %3250 = vmatprep.subr.bf16.mxu0 0
        %3251 = vmatpush1.bf16.msra.mxu0 0
        %3252 = vmatprep.subr.bf16.mxu0 0
        %3253 = vmatpush1.bf16.msra.mxu0 0
        %3254 = vmatprep.subr.bf16.mxu0 0
        %3255 = vmatpush1.bf16.msra.mxu0 0
        %3256 = vmatprep.subr.bf16.mxu0 0
        %3257 = vmatpush1.bf16.msra.mxu0 0
        %3258 = vmatprep.subr.bf16.mxu0 0
        %3259 = vmatpush1.bf16.msra.mxu0 0
        %3260 = vmatprep.subr.bf16.mxu0 0
        %3261 = vmatpush1.bf16.msra.mxu0 0
        %3262 = vmatprep.subr.bf16.mxu0 0
        %3263 = vmatpush1.bf16.msra.mxu0 0
        %3264 = vmatprep.subr.bf16.mxu0 0
        %3265 = vmatpush1.bf16.msra.mxu0 0
        %3266 = vmatprep.subr.bf16.mxu0 0
        %3267 = vmatpush1.bf16.msra.mxu0 0
        %3268 = vmatprep.subr.bf16.mxu0 0
        %3269 = vmatpush1.bf16.msra.mxu0 0
        %3270 = vmatprep.subr.bf16.mxu0 0
        %3271 = vmatpush1.bf16.msra.mxu0 0
        %3272 = vmatprep.mubr.bf16.mxu0 0
        %3273 = vmatmul.mubr.bf16.gmra.mrb[0].mxu0 %v3235
        %v3274 = vpop.f32.mrb[0].mxu0
        %v3275 = vadd.f32 0.0, %v3274
        %v3276 = vpop.f32.mrb[0].mxu0
        %v3277 = vpop.f32.mrb[0].mxu0
        %v3278 = vpop.f32.mrb[0].mxu0
        %3279 = vdwg.mxu0
        %v3281 = vsel %vm1201, %v3226, 0
        %v3284 = vsel %vm1441, %v3231, 0
        %3286 = vmatprep.subr.bf16.mxu0 0
        %3287 = vmatpush1.bf16.msra.mxu0 %v3284
        %3288 = vmatprep.subr.bf16.mxu0 0
        %3289 = vmatpush1.bf16.msra.mxu0 0
        %3290 = vmatprep.subr.bf16.mxu0 0
        %3291 = vmatpush1.bf16.msra.mxu0 0
        %3292 = vmatprep.subr.bf16.mxu0 0
        %3293 = vmatpush1.bf16.msra.mxu0 0
        %3294 = vmatprep.subr.bf16.mxu0 0
        %3295 = vmatpush1.bf16.msra.mxu0 0
        %3296 = vmatprep.subr.bf16.mxu0 0
        %3297 = vmatpush1.bf16.msra.mxu0 0
        %3298 = vmatprep.subr.bf16.mxu0 0
        %3299 = vmatpush1.bf16.msra.mxu0 0
        %3300 = vmatprep.subr.bf16.mxu0 0
        %3301 = vmatpush1.bf16.msra.mxu0 0
        %3302 = vmatprep.subr.bf16.mxu0 0
        %3303 = vmatpush1.bf16.msra.mxu0 0
        %3304 = vmatprep.subr.bf16.mxu0 0
        %3305 = vmatpush1.bf16.msra.mxu0 0
        %3306 = vmatprep.subr.bf16.mxu0 0
        %3307 = vmatpush1.bf16.msra.mxu0 0
        %3308 = vmatprep.subr.bf16.mxu0 0
        %3309 = vmatpush1.bf16.msra.mxu0 0
        %3310 = vmatprep.subr.bf16.mxu0 0
        %3311 = vmatpush1.bf16.msra.mxu0 0
        %3312 = vmatprep.subr.bf16.mxu0 0
        %3313 = vmatpush1.bf16.msra.mxu0 0
        %3314 = vmatprep.subr.bf16.mxu0 0
        %3315 = vmatpush1.bf16.msra.mxu0 0
        %3316 = vmatprep.subr.bf16.mxu0 0
        %3317 = vmatpush1.bf16.msra.mxu0 0
        %3318 = vmatprep.mubr.bf16.mxu0 0
        %3319 = vmatmul.mubr.bf16.gmra.mrb[0].mxu0 %v3281
        %v3320 = vpop.f32.mrb[0].mxu0
        %v3321 = vadd.f32 0.0, %v3320
        %v3322 = vpop.f32.mrb[0].mxu0
        %v3323 = vpop.f32.mrb[0].mxu0
        %v3324 = vpop.f32.mrb[0].mxu0
        %3325 = vdwg.mxu0
        %v3327 = vsel %vm1201, %v3227, 0
        %v3330 = vsel %vm1441, %v3232, 0
        %3332 = vmatprep.subr.bf16.mxu0 0
        %3333 = vmatpush1.bf16.msra.mxu0 %v3330
        %3334 = vmatprep.subr.bf16.mxu0 0
        %3335 = vmatpush1.bf16.msra.mxu0 0
        %3336 = vmatprep.subr.bf16.mxu0 0
        %3337 = vmatpush1.bf16.msra.mxu0 0
        %3338 = vmatprep.subr.bf16.mxu0 0
        %3339 = vmatpush1.bf16.msra.mxu0 0
        %3340 = vmatprep.subr.bf16.mxu0 0
        %3341 = vmatpush1.bf16.msra.mxu0 0
        %3342 = vmatprep.subr.bf16.mxu0 0
        %3343 = vmatpush1.bf16.msra.mxu0 0
        %3344 = vmatprep.subr.bf16.mxu0 0
        %3345 = vmatpush1.bf16.msra.mxu0 0
        %3346 = vmatprep.subr.bf16.mxu0 0
        %3347 = vmatpush1.bf16.msra.mxu0 0
        %3348 = vmatprep.subr.bf16.mxu0 0
        %3349 = vmatpush1.bf16.msra.mxu0 0
        %3350 = vmatprep.subr.bf16.mxu0 0
        %3351 = vmatpush1.bf16.msra.mxu0 0
        %3352 = vmatprep.subr.bf16.mxu0 0
        %3353 = vmatpush1.bf16.msra.mxu0 0
        %3354 = vmatprep.subr.bf16.mxu0 0
        %3355 = vmatpush1.bf16.msra.mxu0 0
        %3356 = vmatprep.subr.bf16.mxu0 0
        %3357 = vmatpush1.bf16.msra.mxu0 0
        %3358 = vmatprep.subr.bf16.mxu0 0
        %3359 = vmatpush1.bf16.msra.mxu0 0
        %3360 = vmatprep.subr.bf16.mxu0 0
        %3361 = vmatpush1.bf16.msra.mxu0 0
        %3362 = vmatprep.subr.bf16.mxu0 0
        %3363 = vmatpush1.bf16.msra.mxu0 0
        %3364 = vmatprep.mubr.bf16.mxu0 0
        %3365 = vmatmul.mubr.bf16.gmra.mrb[0].mxu0 %v3327
        %v3366 = vpop.f32.mrb[0].mxu0
        %v3367 = vadd.f32 0.0, %v3366
        %v3368 = vpop.f32.mrb[0].mxu0
        %v3369 = vpop.f32.mrb[0].mxu0
        %v3370 = vpop.f32.mrb[0].mxu0
        %3371 = vdwg.mxu0
        %v3373 = vsel %vm1201, %v3228, 0
        %v3376 = vsel %vm1441, %v3233, 0
        %3378 = vmatprep.subr.bf16.mxu0 0
        %3379 = vmatpush1.bf16.msra.mxu0 %v3376
        %3380 = vmatprep.subr.bf16.mxu0 0
        %3381 = vmatpush1.bf16.msra.mxu0 0
        %3382 = vmatprep.subr.bf16.mxu0 0
        %3383 = vmatpush1.bf16.msra.mxu0 0
        %3384 = vmatprep.subr.bf16.mxu0 0
        %3385 = vmatpush1.bf16.msra.mxu0 0
        %3386 = vmatprep.subr.bf16.mxu0 0
        %3387 = vmatpush1.bf16.msra.mxu0 0
        %3388 = vmatprep.subr.bf16.mxu0 0
        %3389 = vmatpush1.bf16.msra.mxu0 0
        %3390 = vmatprep.subr.bf16.mxu0 0
        %3391 = vmatpush1.bf16.msra.mxu0 0
        %3392 = vmatprep.subr.bf16.mxu0 0
        %3393 = vmatpush1.bf16.msra.mxu0 0
        %3394 = vmatprep.subr.bf16.mxu0 0
        %3395 = vmatpush1.bf16.msra.mxu0 0
        %3396 = vmatprep.subr.bf16.mxu0 0
        %3397 = vmatpush1.bf16.msra.mxu0 0
        %3398 = vmatprep.subr.bf16.mxu0 0
        %3399 = vmatpush1.bf16.msra.mxu0 0
        %3400 = vmatprep.subr.bf16.mxu0 0
        %3401 = vmatpush1.bf16.msra.mxu0 0
        %3402 = vmatprep.subr.bf16.mxu0 0
        %3403 = vmatpush1.bf16.msra.mxu0 0
        %3404 = vmatprep.subr.bf16.mxu0 0
        %3405 = vmatpush1.bf16.msra.mxu0 0
        %3406 = vmatprep.subr.bf16.mxu0 0
        %3407 = vmatpush1.bf16.msra.mxu0 0
        %3408 = vmatprep.subr.bf16.mxu0 0
        %3409 = vmatpush1.bf16.msra.mxu0 0
        %3410 = vmatprep.mubr.bf16.mxu0 0
        %3411 = vmatmul.mubr.bf16.gmra.mrb[0].mxu0 %v3373
        %v3412 = vpop.f32.mrb[0].mxu0
        %v3413 = vadd.f32 0.0, %v3412
        %v3414 = vpop.f32.mrb[0].mxu0
        %v3415 = vpop.f32.mrb[0].mxu0
        %v3416 = vpop.f32.mrb[0].mxu0
        %3417 = vdwg.mxu0
        %v3418 = vsel %vm399, %v3275, 0.0
        %v3419 = vsel %vm399, %v3321, 0.0
        %v3420 = vadd.f32 %v3418, %v3419
        %v3421 = vsel %vm399, %v3367, 0.0
        %v3422 = vadd.f32 %v3420, %v3421
        %v3423 = vsel %vm399, %v3413, 0.0
        %v3424 = vadd.f32 %v3422, %v3423
        %v3425 = vlaneseq
        %v3426 = vshrl.u32 %v3425, 7
        %v3427 = vsub.s32 0, %v3426
        %v3428 = vrot.slane %v2034, %v3427
        %v3429 = vadd.f32 %v3424, %v3428
        %v3430 = vadd.f32 %v2032, %v3429
        %v3431 = vsel %vm399, %v3430, 0.0
        %3432 = vadd.xlane.f32.xlu0 %v3431
        %v3433 = vpop.xlane.xlu0 %3432
        %v3434 = vmul.f32 %v3433, 0.03125
        %v3435 = vmul.f32 %v3430, %v3430
        %v3436 = vsel %vm399, %v3435, 0.0
        %3437 = vadd.xlane.f32.xlu0 %v3436
        %v3438 = vpop.xlane.xlu0 %3437
        %v3439 = vmul.f32 %v3438, 0.03125
        %v3440 = vmul.f32 %v3434, %v3434
        %v3441 = vsub.f32 %v3439, %v3440
        %v3442 = vsub.f32 %v3430, %v3434
        %v3443 = vadd.f32 %v3441, 1e-12
        %v3444 = vrsqrt.pop %v3443
        %v3445 = vmul.f32 %v3442, %v3444
        %v3446 = vlaneseq
        %v3447 = vshrl.u32 %v3446, 7
        %v3448 = vsub.s32 3, %v3447
        %v3449 = vrot.slane %v2034, %v3448
        %v3450 = vmul.f32 %v3445, %v3449
        %v3451 = vlaneseq
        %v3452 = vshrl.u32 %v3451, 7
        %v3453 = vsub.s32 4, %v3452
        %v3454 = vrot.slane %v2034, %v3453
        %v3455 = vadd.f32 %v3450, %v3454
        %v3456 = vpack.c.bf16 %v3455, %v3455
        %s3457 = scalar_lea.vmem %s5, 16
        %v3458 = vld [vmem:[%s3457] sm:$0xf]
        %v3459 = vld [vmem:[%s3457 + $0x4] sm:$0xf]
        %v3460 = vld [vmem:[%s3457 + $0x8] sm:$0xf]
        %v3461 = vld [vmem:[%s3457 + $0xc] sm:$0xf]
        %v3462 = vlaneseq
        %v3463 = vshrl.u32 %v3462, 7
        %v3464 = vsub.s32 1, %v3463
        %v3465 = vrot.slane %v2034, %v3464
        %v3470 = vunpack.c.l.b16 %v3458
        %v3471 = vunpack.c.l.b16 %v3459
        %v3472 = vunpack.c.l.b16 %v3460
        %v3473 = vunpack.c.l.b16 %v3461
        %v3474 = vpack.c.b16 %v3471, %v3470
        %v3475 = vpack.c.b16 %v3473, %v3472
        %v3479 = vsel %vm399, %v3456, 0
        %3481 = vmatprep.subr.bf16.mxu0 0
        %3482 = vmatpush1.bf16.msra.mxu0 %v3474
        %3483 = vmatprep.subr.bf16.mxu0 0
        %3484 = vmatpush1.bf16.msra.mxu0 %v3475
        %3485 = vmatprep.subr.bf16.mxu0 0
        %3486 = vmatpush1.bf16.msra.mxu0 0
        %3487 = vmatprep.subr.bf16.mxu0 0
        %3488 = vmatpush1.bf16.msra.mxu0 0
        %3489 = vmatprep.subr.bf16.mxu0 0
        %3490 = vmatpush1.bf16.msra.mxu0 0
        %3491 = vmatprep.subr.bf16.mxu0 0
        %3492 = vmatpush1.bf16.msra.mxu0 0
        %3493 = vmatprep.subr.bf16.mxu0 0
        %3494 = vmatpush1.bf16.msra.mxu0 0
        %3495 = vmatprep.subr.bf16.mxu0 0
        %3496 = vmatpush1.bf16.msra.mxu0 0
        %3497 = vmatprep.subr.bf16.mxu0 0
        %3498 = vmatpush1.bf16.msra.mxu0 0
        %3499 = vmatprep.subr.bf16.mxu0 0
        %3500 = vmatpush1.bf16.msra.mxu0 0
        %3501 = vmatprep.subr.bf16.mxu0 0
        %3502 = vmatpush1.bf16.msra.mxu0 0
        %3503 = vmatprep.subr.bf16.mxu0 0
        %3504 = vmatpush1.bf16.msra.mxu0 0
        %3505 = vmatprep.subr.bf16.mxu0 0
        %3506 = vmatpush1.bf16.msra.mxu0 0
        %3507 = vmatprep.subr.bf16.mxu0 0
        %3508 = vmatpush1.bf16.msra.mxu0 0
        %3509 = vmatprep.subr.bf16.mxu0 0
        %3510 = vmatpush1.bf16.msra.mxu0 0
        %3511 = vmatprep.subr.bf16.mxu0 0
        %3512 = vmatpush1.bf16.msra.mxu0 0
        %3513 = vmatprep.mubr.bf16.mxu0 0
        %3514 = vmatmul.mubr.bf16.gmra.mrb[0].mxu0 %v3479
        %v3515 = vpop.f32.mrb[0].mxu0
        %v3516 = vadd.f32 %v3465, %v3515
        %v3517 = vpop.f32.mrb[0].mxu0
        %v3518 = vpop.f32.mrb[0].mxu0
        %v3519 = vpop.f32.mrb[0].mxu0
        %3520 = vdwg.mxu0
        %v3521 = vmul.f32 %v3516, 0.5
        %v3522 = vmul.f32 %v3516, 0.044715
        %v3523 = vmul.f32 %v3522, %v3516
        %v3524 = vmul.f32 %v3523, %v3516
        %v3525 = vadd.f32 %v3516, %v3524
        %v3526 = vmul.f32 %v3525, 0.7978846
        %v3527 = vtanh.pop %v3526
        %v3528 = vadd.f32 %v3527, 1.0
        %v3529 = vmul.f32 %v3521, %v3528
        %v3530 = vpack.c.bf16 %v3529, %v3529
        %s3531 = scalar_lea.vmem %s6, 32
        %v3532 = vld [vmem:[%s3531] sm:$0xf]
        %v3533 = vld [vmem:[%s3531 + $0x4] sm:$0xf]
        %v3534 = vld [vmem:[%s3531 + $0x8] sm:$0xf]
        %v3535 = vld [vmem:[%s3531 + $0xc] sm:$0xf]
        %v3536 = vld [vmem:[%s3531 + $0x10] sm:$0xf]
        %v3537 = vld [vmem:[%s3531 + $0x14] sm:$0xf]
        %v3538 = vld [vmem:[%s3531 + $0x18] sm:$0xf]
        %v3539 = vld [vmem:[%s3531 + $0x1c] sm:$0xf]
        %v3540 = vlaneseq
        %v3541 = vshrl.u32 %v3540, 7
        %v3542 = vsub.s32 2, %v3541
        %v3543 = vrot.slane %v2034, %v3542
        %v3552 = vunpack.c.l.b16 %v3532
        %v3553 = vunpack.c.l.b16 %v3533
        %v3554 = vunpack.c.l.b16 %v3534
        %v3555 = vunpack.c.l.b16 %v3535
        %v3556 = vunpack.c.l.b16 %v3536
        %v3557 = vunpack.c.l.b16 %v3537
        %v3558 = vunpack.c.l.b16 %v3538
        %v3559 = vunpack.c.l.b16 %v3539
        %v3560 = vpack.c.b16 %v3553, %v3552
        %v3561 = vpack.c.b16 %v3555, %v3554
        %v3562 = vpack.c.b16 %v3557, %v3556
        %v3563 = vpack.c.b16 %v3559, %v3558
        %v3569 = vsel %vm1963, %v3530, 0
        %3571 = vmatprep.subr.bf16.mxu0 0
        %3572 = vmatpush1.bf16.msra.mxu0 %v3560
        %3573 = vmatprep.subr.bf16.mxu0 0
        %3574 = vmatpush1.bf16.msra.mxu0 %v3561
        %3575 = vmatprep.subr.bf16.mxu0 0
        %3576 = vmatpush1.bf16.msra.mxu0 %v3562
        %3577 = vmatprep.subr.bf16.mxu0 0
        %3578 = vmatpush1.bf16.msra.mxu0 %v3563
        %3579 = vmatprep.subr.bf16.mxu0 0
        %3580 = vmatpush1.bf16.msra.mxu0 0
        %3581 = vmatprep.subr.bf16.mxu0 0
        %3582 = vmatpush1.bf16.msra.mxu0 0
        %3583 = vmatprep.subr.bf16.mxu0 0
        %3584 = vmatpush1.bf16.msra.mxu0 0
        %3585 = vmatprep.subr.bf16.mxu0 0
        %3586 = vmatpush1.bf16.msra.mxu0 0
        %3587 = vmatprep.subr.bf16.mxu0 0
        %3588 = vmatpush1.bf16.msra.mxu0 0
        %3589 = vmatprep.subr.bf16.mxu0 0
        %3590 = vmatpush1.bf16.msra.mxu0 0
        %3591 = vmatprep.subr.bf16.mxu0 0
        %3592 = vmatpush1.bf16.msra.mxu0 0
        %3593 = vmatprep.subr.bf16.mxu0 0
        %3594 = vmatpush1.bf16.msra.mxu0 0
        %3595 = vmatprep.subr.bf16.mxu0 0
        %3596 = vmatpush1.bf16.msra.mxu0 0
        %3597 = vmatprep.subr.bf16.mxu0 0
        %3598 = vmatpush1.bf16.msra.mxu0 0
        %3599 = vmatprep.subr.bf16.mxu0 0
        %3600 = vmatpush1.bf16.msra.mxu0 0
        %3601 = vmatprep.subr.bf16.mxu0 0
        %3602 = vmatpush1.bf16.msra.mxu0 0
        %3603 = vmatprep.mubr.bf16.mxu0 0
        %3604 = vmatmul.mubr.bf16.gmra.mrb[0].mxu0 %v3569
        %v3605 = vpop.f32.mrb[0].mxu0
        %v3606 = vadd.f32 %v3543, %v3605
        %v3607 = vpop.f32.mrb[0].mxu0
        %v3608 = vpop.f32.mrb[0].mxu0
        %v3609 = vpop.f32.mrb[0].mxu0
        %3610 = vdwg.mxu0
        %v3611 = vadd.f32 %v3455, %v3606
        %v3612 = vsel %vm399, %v3611, 0.0
        %3613 = vadd.xlane.f32.xlu0 %v3612
        %v3614 = vpop.xlane.xlu0 %3613
        %v3615 = vmul.f32 %v3614, 0.03125
        %v3616 = vmul.f32 %v3611, %v3611
        %v3617 = vsel %vm399, %v3616, 0.0
        %3618 = vadd.xlane.f32.xlu0 %v3617
        %v3619 = vpop.xlane.xlu0 %3618
        %v3620 = vmul.f32 %v3619, 0.03125
        %v3621 = vmul.f32 %v3615, %v3615
        %v3622 = vsub.f32 %v3620, %v3621
        %v3623 = vsub.f32 %v3611, %v3615
        %v3624 = vadd.f32 %v3622, 1e-12
        %v3625 = vrsqrt.pop %v3624
        %v3626 = vmul.f32 %v3623, %v3625
        %v3627 = vlaneseq
        %v3628 = vshrl.u32 %v3627, 7
        %v3629 = vsub.s32 5, %v3628
        %v3630 = vrot.slane %v2034, %v3629
        %v3631 = vmul.f32 %v3626, %v3630
        %v3632 = vlaneseq
        %v3633 = vshrl.u32 %v3632, 7
        %v3634 = vsub.s32 6, %v3633
        %v3635 = vrot.slane %v2034, %v3634
        %v3636 = vadd.f32 %v3631, %v3635
        %v3637 = vpack.c.bf16 %v3636, %v3636
        %v3638 = vld [vmem:[%s9] sm:$0xf]
        %v3639 = vld [vmem:[%s9 + $0x4] sm:$0xf]
        %v3640 = vld [vmem:[%s9 + $0x8] sm:$0xf]
        %v3641 = vld [vmem:[%s9 + $0xc] sm:$0xf]
        %v3646 = vunpack.c.l.b16 %v3638
        %v3647 = vunpack.c.l.b16 %v3639
        %v3648 = vunpack.c.l.b16 %v3640
        %v3649 = vunpack.c.l.b16 %v3641
        %v3650 = vpack.c.b16 %v3647, %v3646
        %v3651 = vpack.c.b16 %v3649, %v3648
        %v3655 = vrot.slane %v396, 2
        %v3658 = vsel %vm399, %v3637, 0
        %3660 = vmatprep.subr.bf16.mxu0 0
        %3661 = vmatpush1.bf16.msra.mxu0 %v3650
        %3662 = vmatprep.subr.bf16.mxu0 0
        %3663 = vmatpush1.bf16.msra.mxu0 %v3651
        %3664 = vmatprep.subr.bf16.mxu0 0
        %3665 = vmatpush1.bf16.msra.mxu0 0
        %3666 = vmatprep.subr.bf16.mxu0 0
        %3667 = vmatpush1.bf16.msra.mxu0 0
        %3668 = vmatprep.subr.bf16.mxu0 0
        %3669 = vmatpush1.bf16.msra.mxu0 0
        %3670 = vmatprep.subr.bf16.mxu0 0
        %3671 = vmatpush1.bf16.msra.mxu0 0
        %3672 = vmatprep.subr.bf16.mxu0 0
        %3673 = vmatpush1.bf16.msra.mxu0 0
        %3674 = vmatprep.subr.bf16.mxu0 0
        %3675 = vmatpush1.bf16.msra.mxu0 0
        %3676 = vmatprep.subr.bf16.mxu0 0
        %3677 = vmatpush1.bf16.msra.mxu0 0
        %3678 = vmatprep.subr.bf16.mxu0 0
        %3679 = vmatpush1.bf16.msra.mxu0 0
        %3680 = vmatprep.subr.bf16.mxu0 0
        %3681 = vmatpush1.bf16.msra.mxu0 0
        %3682 = vmatprep.subr.bf16.mxu0 0
        %3683 = vmatpush1.bf16.msra.mxu0 0
        %3684 = vmatprep.subr.bf16.mxu0 0
        %3685 = vmatpush1.bf16.msra.mxu0 0
        %3686 = vmatprep.subr.bf16.mxu0 0
        %3687 = vmatpush1.bf16.msra.mxu0 0
        %3688 = vmatprep.subr.bf16.mxu0 0
        %3689 = vmatpush1.bf16.msra.mxu0 0
        %3690 = vmatprep.subr.bf16.mxu0 0
        %3691 = vmatpush1.bf16.msra.mxu0 0
        %3692 = vmatprep.mubr.bf16.mxu0 0
        %3693 = vmatmul.mubr.bf16.gmra.mrb[0].mxu0 %v3658
        %v3694 = vpop.f32.mrb[0].mxu0
        %v3695 = vadd.f32 %v3655, %v3694
        %v3696 = vpop.f32.mrb[0].mxu0
        %v3697 = vpop.f32.mrb[0].mxu0
        %v3698 = vpop.f32.mrb[0].mxu0
        %3699 = vdwg.mxu0
        %v3700 = vmax.f32 %v3695, 0.0
        %v3701 = vpack.c.bf16 %v3700, %v3700
        %v3702 = vld [vmem:[%s10] sm:$0xf]
        %v3703 = vld [vmem:[%s10 + $0x4] sm:$0xf]
        %v3704 = vld [vmem:[%s10 + $0x8] sm:$0xf]
        %v3705 = vld [vmem:[%s10 + $0xc] sm:$0xf]
        %v3710 = vunpack.c.l.b16 %v3702
        %v3711 = vunpack.c.l.b16 %v3703
        %v3712 = vunpack.c.l.b16 %v3704
        %v3713 = vunpack.c.l.b16 %v3705
        %v3714 = vpack.c.b16 %v3711, %v3710
        %v3715 = vpack.c.b16 %v3713, %v3712
        %v3718 = vrot.slane %v396, 3
        %v3721 = vsel %vm399, %v3701, 0
        %3723 = vmatprep.subr.bf16.mxu0 0
        %3724 = vmatpush1.bf16.msra.mxu0 %v3714
        %3725 = vmatprep.subr.bf16.mxu0 0
        %3726 = vmatpush1.bf16.msra.mxu0 %v3715
        %3727 = vmatprep.subr.bf16.mxu0 0
        %3728 = vmatpush1.bf16.msra.mxu0 0
        %3729 = vmatprep.subr.bf16.mxu0 0
        %3730 = vmatpush1.bf16.msra.mxu0 0
        %3731 = vmatprep.subr.bf16.mxu0 0
        %3732 = vmatpush1.bf16.msra.mxu0 0
        %3733 = vmatprep.subr.bf16.mxu0 0
        %3734 = vmatpush1.bf16.msra.mxu0 0
        %3735 = vmatprep.subr.bf16.mxu0 0
        %3736 = vmatpush1.bf16.msra.mxu0 0
        %3737 = vmatprep.subr.bf16.mxu0 0
        %3738 = vmatpush1.bf16.msra.mxu0 0
        %3739 = vmatprep.subr.bf16.mxu0 0
        %3740 = vmatpush1.bf16.msra.mxu0 0
        %3741 = vmatprep.subr.bf16.mxu0 0
        %3742 = vmatpush1.bf16.msra.mxu0 0
        %3743 = vmatprep.subr.bf16.mxu0 0
        %3744 = vmatpush1.bf16.msra.mxu0 0
        %3745 = vmatprep.subr.bf16.mxu0 0
        %3746 = vmatpush1.bf16.msra.mxu0 0
        %3747 = vmatprep.subr.bf16.mxu0 0
        %3748 = vmatpush1.bf16.msra.mxu0 0
        %3749 = vmatprep.subr.bf16.mxu0 0
        %3750 = vmatpush1.bf16.msra.mxu0 0
        %3751 = vmatprep.subr.bf16.mxu0 0
        %3752 = vmatpush1.bf16.msra.mxu0 0
        %3753 = vmatprep.subr.bf16.mxu0 0
        %3754 = vmatpush1.bf16.msra.mxu0 0
        %3755 = vmatprep.mubr.bf16.mxu0 0
        %3756 = vmatmul.mubr.bf16.gmra.mrb[0].mxu0 %v3721
        %v3757 = vpop.f32.mrb[0].mxu0
        %v3758 = vadd.f32 %v3718, %v3757
        %v3759 = vpop.f32.mrb[0].mxu0
        %v3760 = vpop.f32.mrb[0].mxu0
        %v3761 = vpop.f32.mrb[0].mxu0
        %3762 = vdwg.mxu0
        %3763 = vst [vmem:[%s387] sm:$0x1] %v3758
        %s3764 = sand.u32 %s274, 1
        %s3765 = scalar_lea.sflag [#allocation3], %s3764
        %s3766 = sand.u32 %s274, 1
        %s3767 = scalar_lea.vmem [#allocation2], %s3766
        // Predicated region
        $region65: #{bert_classifier_forward.1} parent=63 // pred_check
          %p3768 = pneg %p284
        $region66: #{bert_classifier_forward.1} parent=63 // pred_check_branch
          %3770 = sbr.rel (%p3768) target = $region68
        $region67: #{bert_classifier_forward.1} parent=63 // pred_region
          %s3772 = ssub.s32 16, 16
          %3773 = vsyncadd %s3765, %s3772
          %s3774 = smul.addr %s25, 16
          %s3775 = scalar_lea.hbm %s11, %s3774
          %s3777 = sshll.u32 %s3767, 4
          %s3778 = int_to_ptr.vmem [resolvable:$true] %s3777
          %3780 = dma.vmem_to_hbm [thread:$0]  %s3778, 16, %s3775, %s3765
        $region68: #{bert_classifier_forward.1} parent=63 // pred_fallthru
          _
      $region64: #{bert_classifier_forward.1} parent=5 // pred_fallthru
        _
      %p3781 = scmp.le.s32.totalorder 2, %s20
      // Predicated region
      $region69: #{bert_classifier_forward.1} parent=5 // pred_check
        %p3782 = pneg %p3781
      $region70: #{bert_classifier_forward.1} parent=5 // pred_check_branch
        %3784 = sbr.rel (%p3782) target = $region72
      $region71: #{bert_classifier_forward.1} parent=5 // pred_region
        %s3785 = ssub.s32 %s20, 2
        // Predicated region
        $region73: #{bert_classifier_forward.1} parent=71 // pred_check
          %p3786 = pneg %p290
        $region74: #{bert_classifier_forward.1} parent=71 // pred_check_branch
          %3788 = sbr.rel (%p3786) target = $region76
        $region75: #{bert_classifier_forward.1} parent=71 // pred_region
          %s3789 = sand.u32 %s275, 1
          %s3790 = scalar_lea.sflag [#allocation3], %s3789
          %s3791 = sand.u32 %s275, 1
          %s3792 = scalar_lea.vmem [#allocation2], %s3791
          %3793 = dma.done %s3790, 16
        $region76: #{bert_classifier_forward.1} parent=71 // pred_fallthru
          _
      $region72: #{bert_classifier_forward.1} parent=5 // pred_fallthru
        _
    $region6: #{bert_classifier_forward.1} parent=1 // loop_footer
      %s24 = sadd.s32 1, %s20
    $region7: #{bert_classifier_forward.1} parent=1 // loop_footer_branch
      %19 = sbr.rel target = $region3
    $region8: #{bert_classifier_forward.1} parent=1 // loop_exit
      _
    %3794 = vsyncpa [#allocation3], 1
    %s3795 = scalar_lea.sflag [#allocation3], 1
    %3796 = vsyncpa %s3795, 1

</llo_original>
